<compile_context>
chip_gen: v7x
topology: tpu7x:2x2x1
jax: 0.10.0
libtpu: 0.0.40
codegen_flags: <defaults>
</compile_context>

<pallas_src>
import jax
import jax.numpy as jnp
from jax import lax
from jax.experimental import pallas as pl
from jax.experimental.pallas import tpu as pltpu


def _round_up(v, m):
    return -(-v // m) * m


# ------------------------------- kernel ---------------------------------------------


def _make_kernel(T, Tc, Hp1, Hp2, unroll):
    """Builds the kernel closure over the static sizes (T, Tc, Hp1, Hp2)."""
    need_mask = (T % Tc) != 0

    def kernel(x_ref, wih1_ref, b1_ref, whh1_ref, wih2_ref, whh2_ref, b2_ref,
               wmu_ref, bmu_ref, mu_ref, h1_sc, c1_sc, h2_sc, c2_sc):
        # x_ref   : (Tc, Bb, 1)   f32   streamed time chunk, time-major
        # wih1_ref: (1, 4*Hp1)    f32   LSTM1 input weight row (gate-permuted i|f|o|g)
        # b1_ref  : (1, 4*Hp1)    f32   LSTM1 bias (b_ih + b_hh)
        # whh1_ref: (Hp1, 4*Hp1)  bf16  LSTM1 recurrent weight
        # wih2_ref: (Hp1, 4*Hp2)  bf16  LSTM2 input weight
        # whh2_ref: (Hp2, 4*Hp2)  bf16  LSTM2 recurrent weight
        # b2_ref  : (1, 4*Hp2)    f32   LSTM2 bias (b_ih + b_hh)
        # wmu_ref : (Hp2, H2op)   bf16  fc_mu weight
        # bmu_ref : (1, H2op)     f32   fc_mu bias
        # mu_ref  : (Bb, H2op)    f32   output block
        # *_sc    : persistent VMEM scratch for the h/c carries (f32)
        t_chunk = pl.program_id(1)
        nt = pl.num_programs(1)

        @pl.when(t_chunk == 0)
        def _():
            h1_sc[...] = jnp.zeros_like(h1_sc)
            c1_sc[...] = jnp.zeros_like(c1_sc)
            h2_sc[...] = jnp.zeros_like(h2_sc)
            c2_sc[...] = jnp.zeros_like(c2_sc)

        # Tiny loop-invariant operands hoisted into vregs; the big recurrent weights stay
        # ref-indexed at the dot call sites so MXU operands stream from VMEM.
        wih1_row = wih1_ref[...]     # (1, 4*Hp1) f32
        b1 = b1_ref[...]             # (1, 4*Hp1)
        b2 = b2_ref[...]             # (1, 4*Hp2)

        def cell(gates, c_prev, Hp):
            # gate layout (host-permuted, lane-padded): [ i | f | o | g ], each span Hp
            # (multiple of 128 lanes), so every slice below is vreg-granular.
            ifo = jax.nn.sigmoid(gates[:, :3 * Hp])   # one contiguous EUP span
            g = jnp.tanh(gates[:, 3 * Hp:])           # one EUP span
            i = ifo[:, 0 * Hp:1 * Hp]
            f = ifo[:, 1 * Hp:2 * Hp]
            o = ifo[:, 2 * Hp:3 * Hp]
            c_new = f * c_prev + i * g
            return o * jnp.tanh(c_new), c_new

        def step(s, carry):
            h1, c1, h2, c2 = carry
            # LSTM1 input size is 1: input projection = scalar * weight row (VPU, f32).
            xt = x_ref[s]                              # (Bb, 1)
            rec1 = jnp.dot(h1.astype(jnp.bfloat16), whh1_ref[...],
                           preferred_element_type=jnp.float32)
            gates1 = xt * wih1_row + b1 + rec1
            h1n, c1n = cell(gates1, c1, Hp1)
            # LSTM2: fresh-h1 input projection + recurrent projection of previous h2.
            rec2 = jnp.dot(h2.astype(jnp.bfloat16), whh2_ref[...],
                           preferred_element_type=jnp.float32)
            inp2 = jnp.dot(h1n.astype(jnp.bfloat16), wih2_ref[...],
                           preferred_element_type=jnp.float32)
            gates2 = inp2 + rec2 + b2
            h2n, c2n = cell(gates2, c2, Hp2)
            if need_mask:  # ragged last time chunk: freeze the state on padded steps
                valid = (t_chunk * Tc + s) < T
                h1n = jnp.where(valid, h1n, h1)
                c1n = jnp.where(valid, c1n, c1)
                h2n = jnp.where(valid, h2n, h2)
                c2n = jnp.where(valid, c2n, c2)
            return h1n, c1n, h2n, c2n

        carry0 = (h1_sc[...], c1_sc[...], h2_sc[...], c2_sc[...])
        h1, c1, h2, c2 = lax.fori_loop(0, Tc, step, carry0, unroll=unroll)

        h1_sc[...] = h1
        c1_sc[...] = c1
        h2_sc[...] = h2
        c2_sc[...] = c2

        # fc_mu on the last time step's h2, written once (lane-dense output block).
        @pl.when(t_chunk == nt - 1)
        def _():
            mu_ref[...] = (jnp.dot(h2.astype(jnp.bfloat16), wmu_ref[...],
                                   preferred_element_type=jnp.float32)
                           + bmu_ref[...])

    return kernel


# --------------------------- parameter init & prep ----------------------------------


def init_params(key, H1=32, H2=64):
    """Deterministic kaiming-normal weights (fan_in), zero biases (as in kaiming_init).

    Weights are stored pre-transposed (in_features, out_features) so kernel/ref compute
    h @ W, with the PyTorch LSTM gate order (i, f, g, o) along the output axis."""
    ks = jax.random.split(key, 5)

    def kaiming(k, shape, fan_in):
        return jax.random.normal(k, shape, jnp.float32) * jnp.sqrt(2.0 / fan_in)

    wih1 = kaiming(ks[0], (4 * H1, 1), 1).T        # (1, 4H1)
    whh1 = kaiming(ks[1], (4 * H1, H1), H1).T      # (H1, 4H1)
    wih2 = kaiming(ks[2], (4 * H2, H1), H1).T      # (H1, 4H2)
    whh2 = kaiming(ks[3], (4 * H2, H2), H2).T      # (H2, 4H2)
    wmu = kaiming(ks[4], (H2, H2), H2).T           # (H2, H2)
    b1 = jnp.zeros((1, 4 * H1), jnp.float32)       # b_ih1 + b_hh1 (zeros)
    b2 = jnp.zeros((1, 4 * H2), jnp.float32)       # b_ih2 + b_hh2 (zeros)
    bmu = jnp.zeros((1, H2), jnp.float32)
    return dict(wih1=wih1, whh1=whh1, b1=b1, wih2=wih2, whh2=whh2, b2=b2,
                wmu=wmu, bmu=bmu)


def _permute_and_pad_gates(w, H, Hp):
    """Last axis (4H, PyTorch order i,f,g,o) -> (4Hp, order i,f,o,g), each gate span
    zero-padded from H to Hp so gate slices in the kernel land on 128-lane boundaries."""
    i = w[..., 0 * H:1 * H]
    f = w[..., 1 * H:2 * H]
    g = w[..., 2 * H:3 * H]
    o = w[..., 3 * H:4 * H]
    pad = [(0, 0)] * (w.ndim - 1) + [(0, Hp - H)]
    return jnp.concatenate([jnp.pad(p, pad) for p in (i, f, o, g)], axis=-1)


def _pad_rows(w, rp):
    return jnp.pad(w, ((0, rp - w.shape[0]), (0, 0)))


def _kernel_operands(params, Hp1, Hp2, H2op):
    """Host-side (trace-time) weight prep: gate-permute, lane-pad, cast MXU weights bf16."""
    H1 = params["whh1"].shape[0]
    H2 = params["whh2"].shape[0]
    wih1 = _permute_and_pad_gates(params["wih1"], H1, Hp1)                    # f32 (VPU)
    b1 = _permute_and_pad_gates(params["b1"], H1, Hp1)
    whh1 = _pad_rows(_permute_and_pad_gates(params["whh1"], H1, Hp1), Hp1).astype(jnp.bfloat16)
    wih2 = _pad_rows(_permute_and_pad_gates(params["wih2"], H2, Hp2), Hp1).astype(jnp.bfloat16)
    whh2 = _pad_rows(_permute_and_pad_gates(params["whh2"], H2, Hp2), Hp2).astype(jnp.bfloat16)
    b2 = _permute_and_pad_gates(params["b2"], H2, Hp2)
    wmu = jnp.pad(params["wmu"], ((0, Hp2 - H2), (0, H2op - H2))).astype(jnp.bfloat16)
    bmu = jnp.pad(params["bmu"], ((0, 0), (0, H2op - H2)))
    return wih1, b1, whh1, wih2, whh2, b2, wmu, bmu


# --------------------------------- wrapper -------------------------------------------


def imu_encoder(x, params):
    """x: (B, T) float32  ->  (mu, mu), each (B, H2). Mirrors IMU_encoder.forward."""
    B, T = x.shape
    H2 = params["whh2"].shape[0]
    H1 = params["whh1"].shape[0]
    Hp1 = _round_up(H1, 128)          # identity at the production H1=256
    Hp2 = _round_up(H2, 128)          # identity at the production H2=512
    H2op = _round_up(H2, 128)         # lane-dense output block

    # Batch: pad to the f32 sublane height (8); tile in groups of <=128 rows. The batch
    # grid axis is "parallel" so v7x's two TensorCores split it; padded rows are
    # independent and sliced off at the end.
    if B <= 128:
        Bp = _round_up(max(B, 8), 8)
        Bb = Bp
    else:
        Bp = _round_up(B, 128)
        Bb = 128
    nb = Bp // Bb

    # Time: stream x in (Tc, Bb, 1) chunks over an "arbitrary" grid axis while h/c live
    # in persistent VMEM scratch -> resident VMEM independent of T, DMA pipelines with
    # compute. Unroll capped at 8 inside each chunk.
    Tc = min(T, 128)
    Tpad = _round_up(T, Tc)
    nt = Tpad // Tc
    unroll = min(Tc, 8)

    x_pad = jnp.zeros((Bp, Tpad), jnp.float32).at[:B, :T].set(x.astype(jnp.float32))
    x3 = jnp.transpose(x_pad)[:, :, None]          # (Tpad, Bp, 1), time-major

    operands = _kernel_operands(params, Hp1, Hp2, H2op)

    def full_spec(arr):  # weight/bias resident every grid step (constant block index)
        n = arr.ndim
        return pl.BlockSpec(arr.shape, lambda b, t: (0,) * n)

    kernel = _make_kernel(T, Tc, Hp1, Hp2, unroll)

    mu_p = pl.pallas_call(
        kernel,
        out_shape=jax.ShapeDtypeStruct((Bp, H2op), jnp.float32),
        grid=(nb, nt),
        in_specs=[pl.BlockSpec((Tc, Bb, 1), lambda b, t: (t, b, 0))]
                 + [full_spec(a) for a in operands],
        out_specs=pl.BlockSpec((Bb, H2op), lambda b, t: (b, 0)),
        scratch_shapes=[pltpu.VMEM((Bb, Hp1), jnp.float32),   # h1
                        pltpu.VMEM((Bb, Hp1), jnp.float32),   # c1
                        pltpu.VMEM((Bb, Hp2), jnp.float32),   # h2
                        pltpu.VMEM((Bb, Hp2), jnp.float32)],  # c2
        compiler_params=pltpu.CompilerParams(
            dimension_semantics=("parallel", "arbitrary")),
    )(x3, *operands)

    mu = mu_p[:B, :H2]
    return mu, mu


# -------------------------------- reference ------------------------------------------


def imu_encoder_ref(x, params):
    """Pure-JAX f32 reference with the original (non-permuted, non-padded) math."""
    B, T = x.shape
    H1 = params["whh1"].shape[0]
    H2 = params["whh2"].shape[0]

    def cell(gates, c, H):
        i = jax.nn.sigmoid(gates[:, 0 * H:1 * H])
        f = jax.nn.sigmoid(gates[:, 1 * H:2 * H])
        g = jnp.tanh(gates[:, 2 * H:3 * H])
        o = jax.nn.sigmoid(gates[:, 3 * H:4 * H])
        c = f * c + i * g
        return o * jnp.tanh(c), c

    h1 = jnp.zeros((B, H1)); c1 = jnp.zeros((B, H1))
    h2 = jnp.zeros((B, H2)); c2 = jnp.zeros((B, H2))
    for t in range(T):
        g1 = x[:, t:t + 1] @ params["wih1"] + h1 @ params["whh1"] + params["b1"]
        h1, c1 = cell(g1, c1, H1)
        g2 = h1 @ params["wih2"] + h2 @ params["whh2"] + params["b2"]
        h2, c2 = cell(g2, c2, H2)
    mu = h2 @ params["wmu"] + params["bmu"]
    return mu, mu


if __name__ == "__main__":
    key = jax.random.PRNGKey(0)
    kx, kp = jax.random.split(key)
    B, T, H1, H2 = 2, 8, 32, 64          # small stand-ins for (256, fc_output_dim=512)
    x = jax.random.normal(kx, (B, T), jnp.float32)
    params = init_params(kp, H1=H1, H2=H2)

    mu, mu2 = imu_encoder(x, params)
    jax.block_until_ready(mu)

    mu_ref, _ = imu_encoder_ref(x, params)
    assert mu.shape == (B, H2)
    err = float(jnp.max(jnp.abs(mu - mu_ref)))
    # bf16 recurrent/output weights in the kernel vs an f32 reference -> loose tolerance.
    assert jnp.allclose(mu, mu_ref, rtol=2e-2, atol=2e-2), err
    assert jnp.array_equal(mu, mu2)

    print("KERNEL_OK")
</pallas_src>

<mosaic_0001>
module attributes {stable_mosaic.version = 11 : i64} {
  func.func @kernel(%arg0: i32, %arg1: i32, %arg2: memref<8x8x1xf32, #tpu.memory_space<vmem>>, %arg3: memref<1x512xf32, #tpu.memory_space<vmem>>, %arg4: memref<1x512xf32, #tpu.memory_space<vmem>>, %arg5: memref<128x512xbf16, #tpu.memory_space<vmem>>, %arg6: memref<128x512xbf16, #tpu.memory_space<vmem>>, %arg7: memref<128x512xbf16, #tpu.memory_space<vmem>>, %arg8: memref<1x512xf32, #tpu.memory_space<vmem>>, %arg9: memref<128x128xbf16, #tpu.memory_space<vmem>>, %arg10: memref<1x128xf32, #tpu.memory_space<vmem>>, %arg11: memref<8x128xf32, #tpu.memory_space<vmem>>, %arg12: memref<8x128xf32, #tpu.memory_space<vmem>>, %arg13: memref<8x128xf32, #tpu.memory_space<vmem>>, %arg14: memref<8x128xf32, #tpu.memory_space<vmem>>, %arg15: memref<8x128xf32, #tpu.memory_space<vmem>>) attributes {dimension_semantics = [#tpu.dimension_semantics<parallel>, #tpu.dimension_semantics<arbitrary>], iteration_bounds = array<i64: 1, 1>, scalar_prefetch = 0 : i64, scratch_operands = 4 : i64, tpu.core_type = #tpu.core_type<tc>, window_params = [{transform_indices = @transform_0, window_bounds = array<i64: 8, 8, 1>}, {pipeline_mode = #tpu.pipeline_mode<synchronous>, transform_indices = @transform_1, window_bounds = array<i64: 1, 512>}, {pipeline_mode = #tpu.pipeline_mode<synchronous>, transform_indices = @transform_2, window_bounds = array<i64: 1, 512>}, {pipeline_mode = #tpu.pipeline_mode<synchronous>, transform_indices = @transform_3, window_bounds = array<i64: 128, 512>}, {pipeline_mode = #tpu.pipeline_mode<synchronous>, transform_indices = @transform_4, window_bounds = array<i64: 128, 512>}, {pipeline_mode = #tpu.pipeline_mode<synchronous>, transform_indices = @transform_5, window_bounds = array<i64: 128, 512>}, {pipeline_mode = #tpu.pipeline_mode<synchronous>, transform_indices = @transform_6, window_bounds = array<i64: 1, 512>}, {pipeline_mode = #tpu.pipeline_mode<synchronous>, transform_indices = @transform_7, window_bounds = array<i64: 128, 128>}, {pipeline_mode = #tpu.pipeline_mode<synchronous>, transform_indices = @transform_8, window_bounds = array<i64: 1, 128>}, {transform_indices = @transform_9, window_bounds = array<i64: 8, 128>}]} {
    %c0_i32 = arith.constant 0 : i32
    %0 = arith.cmpi eq, %arg1, %c0_i32 : i32
    %1 = arith.extui %0 : i1 to i32
    %c0_i32_0 = arith.constant 0 : i32
    %2 = arith.cmpi ne, %1, %c0_i32_0 : i32
    scf.if %2 {
      %cst_128 = arith.constant 0.000000e+00 : f32
      %441 = vector.broadcast %cst_128 : f32 to vector<8x128xf32>
      %c0_129 = arith.constant 0 : index
      %c0_130 = arith.constant 0 : index
      %442 = vector.load %arg12[%c0_129, %c0_130] : memref<8x128xf32, #tpu.memory_space<vmem>>, vector<8x128xf32>
      tpu.vector_store %arg12[%c0_129, %c0_130], %441 {strides = array<i32>} : memref<8x128xf32, #tpu.memory_space<vmem>>, vector<8x128xf32>,
      %cst_131 = arith.constant 0.000000e+00 : f32
      %443 = vector.broadcast %cst_131 : f32 to vector<8x128xf32>
      %c0_132 = arith.constant 0 : index
      %c0_133 = arith.constant 0 : index
      %444 = vector.load %arg13[%c0_132, %c0_133] : memref<8x128xf32, #tpu.memory_space<vmem>>, vector<8x128xf32>
      tpu.vector_store %arg13[%c0_132, %c0_133], %443 {strides = array<i32>} : memref<8x128xf32, #tpu.memory_space<vmem>>, vector<8x128xf32>,
      %cst_134 = arith.constant 0.000000e+00 : f32
      %445 = vector.broadcast %cst_134 : f32 to vector<8x128xf32>
      %c0_135 = arith.constant 0 : index
      %c0_136 = arith.constant 0 : index
      %446 = vector.load %arg14[%c0_135, %c0_136] : memref<8x128xf32, #tpu.memory_space<vmem>>, vector<8x128xf32>
      tpu.vector_store %arg14[%c0_135, %c0_136], %445 {strides = array<i32>} : memref<8x128xf32, #tpu.memory_space<vmem>>, vector<8x128xf32>,
      %cst_137 = arith.constant 0.000000e+00 : f32
      %447 = vector.broadcast %cst_137 : f32 to vector<8x128xf32>
      %c0_138 = arith.constant 0 : index
      %c0_139 = arith.constant 0 : index
      %448 = vector.load %arg15[%c0_138, %c0_139] : memref<8x128xf32, #tpu.memory_space<vmem>>, vector<8x128xf32>
      tpu.vector_store %arg15[%c0_138, %c0_139], %447 {strides = array<i32>} : memref<8x128xf32, #tpu.memory_space<vmem>>, vector<8x128xf32>,
    } else {
    }
    %c0 = arith.constant 0 : index
    %c0_1 = arith.constant 0 : index
    %3 = vector.load %arg3[%c0, %c0_1] : memref<1x512xf32, #tpu.memory_space<vmem>>, vector<1x512xf32>
    %c0_2 = arith.constant 0 : index
    %c0_3 = arith.constant 0 : index
    %4 = vector.load %arg4[%c0_2, %c0_3] : memref<1x512xf32, #tpu.memory_space<vmem>>, vector<1x512xf32>
    %c0_4 = arith.constant 0 : index
    %c0_5 = arith.constant 0 : index
    %5 = vector.load %arg8[%c0_4, %c0_5] : memref<1x512xf32, #tpu.memory_space<vmem>>, vector<1x512xf32>
    %c0_6 = arith.constant 0 : index
    %c0_7 = arith.constant 0 : index
    %6 = vector.load %arg12[%c0_6, %c0_7] : memref<8x128xf32, #tpu.memory_space<vmem>>, vector<8x128xf32>
    %c0_8 = arith.constant 0 : index
    %c0_9 = arith.constant 0 : index
    %7 = vector.load %arg13[%c0_8, %c0_9] : memref<8x128xf32, #tpu.memory_space<vmem>>, vector<8x128xf32>
    %c0_10 = arith.constant 0 : index
    %c0_11 = arith.constant 0 : index
    %8 = vector.load %arg14[%c0_10, %c0_11] : memref<8x128xf32, #tpu.memory_space<vmem>>, vector<8x128xf32>
    %c0_12 = arith.constant 0 : index
    %c0_13 = arith.constant 0 : index
    %9 = vector.load %arg15[%c0_12, %c0_13] : memref<8x128xf32, #tpu.memory_space<vmem>>, vector<8x128xf32>
    %c0_i32_14 = arith.constant 0 : i32
    %10 = arith.index_cast %c0_i32_14 : i32 to index
    %c0_15 = arith.constant 0 : index
    %c0_16 = arith.constant 0 : index
    %11 = vector.load %arg2[%10, %c0_15, %c0_16] : memref<8x8x1xf32, #tpu.memory_space<vmem>>, vector<1x8x1xf32>
    %12 = vector.shape_cast %11 : vector<1x8x1xf32> to vector<8x1xf32>
    %13 = arith.truncf %6 : vector<8x128xf32> to vector<8x128xbf16>
    %c0_17 = arith.constant 0 : index
    %c0_18 = arith.constant 0 : index
    %14 = vector.load %arg5[%c0_17, %c0_18] : memref<128x512xbf16, #tpu.memory_space<vmem>>, vector<128x512xbf16>
    %cst = arith.constant dense<0.000000e+00> : vector<8x512xf32>
    %15 = tpu.matmul %13, %14, %cst {dimension_numbers = #tpu.dot_dimension_numbers<[1], [0], [0], [1], [0, 0, 1, 1], [], []>} : vector<8x128xbf16>, vector<128x512xbf16>, vector<8x512xf32> -> vector<8x512xf32>
    %16 = vector.broadcast %12 : vector<8x1xf32> to vector<8x512xf32>
    %17 = vector.broadcast %3 : vector<1x512xf32> to vector<8x512xf32>
    %18 = arith.mulf %16, %17 : vector<8x512xf32>
    %19 = vector.broadcast %4 : vector<1x512xf32> to vector<8x512xf32>
    %20 = arith.addf %18, %19 : vector<8x512xf32>
    %21 = arith.addf %20, %15 : vector<8x512xf32>
    %22 = vector.extract_strided_slice %21 {offsets = [0, 0], sizes = [8, 384], strides = [1, 1]} : vector<8x512xf32> to vector<8x384xf32>
    %23 = arith.negf %22 : vector<8x384xf32>
    %24 = math.exp %23 : vector<8x384xf32>
    %cst_19 = arith.constant 1.000000e+00 : f32
    %25 = vector.broadcast %cst_19 : f32 to vector<8x384xf32>
    %26 = arith.addf %25, %24 : vector<8x384xf32>
    %27 = arith.divf %25, %26 : vector<8x384xf32>
    %28 = vector.extract_strided_slice %21 {offsets = [0, 384], sizes = [8, 128], strides = [1, 1]} : vector<8x512xf32> to vector<8x128xf32>
    %29 = math.tanh %28 : vector<8x128xf32>
    %30 = vector.extract_strided_slice %27 {offsets = [0, 0], sizes = [8, 128], strides = [1, 1]} : vector<8x384xf32> to vector<8x128xf32>
    %31 = vector.extract_strided_slice %27 {offsets = [0, 128], sizes = [8, 128], strides = [1, 1]} : vector<8x384xf32> to vector<8x128xf32>
    %32 = vector.extract_strided_slice %27 {offsets = [0, 256], sizes = [8, 128], strides = [1, 1]} : vector<8x384xf32> to vector<8x128xf32>
    %33 = arith.mulf %31, %7 : vector<8x128xf32>
    %34 = arith.mulf %30, %29 : vector<8x128xf32>
    %35 = arith.addf %33, %34 : vector<8x128xf32>
    %36 = math.tanh %35 : vector<8x128xf32>
    %37 = arith.mulf %32, %36 : vector<8x128xf32>
    %38 = arith.truncf %8 : vector<8x128xf32> to vector<8x128xbf16>
    %c0_20 = arith.constant 0 : index
    %c0_21 = arith.constant 0 : index
    %39 = vector.load %arg7[%c0_20, %c0_21] : memref<128x512xbf16, #tpu.memory_space<vmem>>, vector<128x512xbf16>
    %cst_22 = arith.constant dense<0.000000e+00> : vector<8x512xf32>
    %40 = tpu.matmul %38, %39, %cst_22 {dimension_numbers = #tpu.dot_dimension_numbers<[1], [0], [0], [1], [0, 0, 1, 1], [], []>} : vector<8x128xbf16>, vector<128x512xbf16>, vector<8x512xf32> -> vector<8x512xf32>
    %41 = arith.truncf %37 : vector<8x128xf32> to vector<8x128xbf16>
    %c0_23 = arith.constant 0 : index
    %c0_24 = arith.constant 0 : index
    %42 = vector.load %arg6[%c0_23, %c0_24] : memref<128x512xbf16, #tpu.memory_space<vmem>>, vector<128x512xbf16>
    %cst_25 = arith.constant dense<0.000000e+00> : vector<8x512xf32>
    %43 = tpu.matmul %41, %42, %cst_25 {dimension_numbers = #tpu.dot_dimension_numbers<[1], [0], [0], [1], [0, 0, 1, 1], [], []>} : vector<8x128xbf16>, vector<128x512xbf16>, vector<8x512xf32> -> vector<8x512xf32>
    %44 = arith.addf %43, %40 : vector<8x512xf32>
    %45 = vector.broadcast %5 : vector<1x512xf32> to vector<8x512xf32>
    %46 = arith.addf %44, %45 : vector<8x512xf32>
    %47 = vector.extract_strided_slice %46 {offsets = [0, 0], sizes = [8, 384], strides = [1, 1]} : vector<8x512xf32> to vector<8x384xf32>
    %48 = arith.negf %47 : vector<8x384xf32>
    %49 = math.exp %48 : vector<8x384xf32>
    %cst_26 = arith.constant 1.000000e+00 : f32
    %50 = vector.broadcast %cst_26 : f32 to vector<8x384xf32>
    %51 = arith.addf %50, %49 : vector<8x384xf32>
    %52 = arith.divf %50, %51 : vector<8x384xf32>
    %53 = vector.extract_strided_slice %46 {offsets = [0, 384], sizes = [8, 128], strides = [1, 1]} : vector<8x512xf32> to vector<8x128xf32>
    %54 = math.tanh %53 : vector<8x128xf32>
    %55 = vector.extract_strided_slice %52 {offsets = [0, 0], sizes = [8, 128], strides = [1, 1]} : vector<8x384xf32> to vector<8x128xf32>
    %56 = vector.extract_strided_slice %52 {offsets = [0, 128], sizes = [8, 128], strides = [1, 1]} : vector<8x384xf32> to vector<8x128xf32>
    %57 = vector.extract_strided_slice %52 {offsets = [0, 256], sizes = [8, 128], strides = [1, 1]} : vector<8x384xf32> to vector<8x128xf32>
    %58 = arith.mulf %56, %9 : vector<8x128xf32>
    %59 = arith.mulf %55, %54 : vector<8x128xf32>
    %60 = arith.addf %58, %59 : vector<8x128xf32>
    %61 = math.tanh %60 : vector<8x128xf32>
    %62 = arith.mulf %57, %61 : vector<8x128xf32>
    %c1_i32 = arith.constant 1 : i32
    %63 = arith.index_cast %c1_i32 : i32 to index
    %c0_27 = arith.constant 0 : index
    %c0_28 = arith.constant 0 : index
    %64 = vector.load %arg2[%63, %c0_27, %c0_28] : memref<8x8x1xf32, #tpu.memory_space<vmem>>, vector<1x8x1xf32>
    %65 = vector.shape_cast %64 : vector<1x8x1xf32> to vector<8x1xf32>
    %66 = arith.truncf %37 : vector<8x128xf32> to vector<8x128xbf16>
    %c0_29 = arith.constant 0 : index
    %c0_30 = arith.constant 0 : index
    %67 = vector.load %arg5[%c0_29, %c0_30] : memref<128x512xbf16, #tpu.memory_space<vmem>>, vector<128x512xbf16>
    %cst_31 = arith.constant dense<0.000000e+00> : vector<8x512xf32>
    %68 = tpu.matmul %66, %67, %cst_31 {dimension_numbers = #tpu.dot_dimension_numbers<[1], [0], [0], [1], [0, 0, 1, 1], [], []>} : vector<8x128xbf16>, vector<128x512xbf16>, vector<8x512xf32> -> vector<8x512xf32>
    %69 = vector.broadcast %65 : vector<8x1xf32> to vector<8x512xf32>
    %70 = vector.broadcast %3 : vector<1x512xf32> to vector<8x512xf32>
    %71 = arith.mulf %69, %70 : vector<8x512xf32>
    %72 = vector.broadcast %4 : vector<1x512xf32> to vector<8x512xf32>
    %73 = arith.addf %71, %72 : vector<8x512xf32>
    %74 = arith.addf %73, %68 : vector<8x512xf32>
    %75 = vector.extract_strided_slice %74 {offsets = [0, 0], sizes = [8, 384], strides = [1, 1]} : vector<8x512xf32> to vector<8x384xf32>
    %76 = arith.negf %75 : vector<8x384xf32>
    %77 = math.exp %76 : vector<8x384xf32>
    %cst_32 = arith.constant 1.000000e+00 : f32
    %78 = vector.broadcast %cst_32 : f32 to vector<8x384xf32>
    %79 = arith.addf %78, %77 : vector<8x384xf32>
    %80 = arith.divf %78, %79 : vector<8x384xf32>
    %81 = vector.extract_strided_slice %74 {offsets = [0, 384], sizes = [8, 128], strides = [1, 1]} : vector<8x512xf32> to vector<8x128xf32>
    %82 = math.tanh %81 : vector<8x128xf32>
    %83 = vector.extract_strided_slice %80 {offsets = [0, 0], sizes = [8, 128], strides = [1, 1]} : vector<8x384xf32> to vector<8x128xf32>
    %84 = vector.extract_strided_slice %80 {offsets = [0, 128], sizes = [8, 128], strides = [1, 1]} : vector<8x384xf32> to vector<8x128xf32>
    %85 = vector.extract_strided_slice %80 {offsets = [0, 256], sizes = [8, 128], strides = [1, 1]} : vector<8x384xf32> to vector<8x128xf32>
    %86 = arith.mulf %84, %35 : vector<8x128xf32>
    %87 = arith.mulf %83, %82 : vector<8x128xf32>
    %88 = arith.addf %86, %87 : vector<8x128xf32>
    %89 = math.tanh %88 : vector<8x128xf32>
    %90 = arith.mulf %85, %89 : vector<8x128xf32>
    %91 = arith.truncf %62 : vector<8x128xf32> to vector<8x128xbf16>
    %c0_33 = arith.constant 0 : index
    %c0_34 = arith.constant 0 : index
    %92 = vector.load %arg7[%c0_33, %c0_34] : memref<128x512xbf16, #tpu.memory_space<vmem>>, vector<128x512xbf16>
    %cst_35 = arith.constant dense<0.000000e+00> : vector<8x512xf32>
    %93 = tpu.matmul %91, %92, %cst_35 {dimension_numbers = #tpu.dot_dimension_numbers<[1], [0], [0], [1], [0, 0, 1, 1], [], []>} : vector<8x128xbf16>, vector<128x512xbf16>, vector<8x512xf32> -> vector<8x512xf32>
    %94 = arith.truncf %90 : vector<8x128xf32> to vector<8x128xbf16>
    %c0_36 = arith.constant 0 : index
    %c0_37 = arith.constant 0 : index
    %95 = vector.load %arg6[%c0_36, %c0_37] : memref<128x512xbf16, #tpu.memory_space<vmem>>, vector<128x512xbf16>
    %cst_38 = arith.constant dense<0.000000e+00> : vector<8x512xf32>
    %96 = tpu.matmul %94, %95, %cst_38 {dimension_numbers = #tpu.dot_dimension_numbers<[1], [0], [0], [1], [0, 0, 1, 1], [], []>} : vector<8x128xbf16>, vector<128x512xbf16>, vector<8x512xf32> -> vector<8x512xf32>
    %97 = arith.addf %96, %93 : vector<8x512xf32>
    %98 = vector.broadcast %5 : vector<1x512xf32> to vector<8x512xf32>
    %99 = arith.addf %97, %98 : vector<8x512xf32>
    %100 = vector.extract_strided_slice %99 {offsets = [0, 0], sizes = [8, 384], strides = [1, 1]} : vector<8x512xf32> to vector<8x384xf32>
    %101 = arith.negf %100 : vector<8x384xf32>
    %102 = math.exp %101 : vector<8x384xf32>
    %cst_39 = arith.constant 1.000000e+00 : f32
    %103 = vector.broadcast %cst_39 : f32 to vector<8x384xf32>
    %104 = arith.addf %103, %102 : vector<8x384xf32>
    %105 = arith.divf %103, %104 : vector<8x384xf32>
    %106 = vector.extract_strided_slice %99 {offsets = [0, 384], sizes = [8, 128], strides = [1, 1]} : vector<8x512xf32> to vector<8x128xf32>
    %107 = math.tanh %106 : vector<8x128xf32>
    %108 = vector.extract_strided_slice %105 {offsets = [0, 0], sizes = [8, 128], strides = [1, 1]} : vector<8x384xf32> to vector<8x128xf32>
    %109 = vector.extract_strided_slice %105 {offsets = [0, 128], sizes = [8, 128], strides = [1, 1]} : vector<8x384xf32> to vector<8x128xf32>
    %110 = vector.extract_strided_slice %105 {offsets = [0, 256], sizes = [8, 128], strides = [1, 1]} : vector<8x384xf32> to vector<8x128xf32>
    %111 = arith.mulf %109, %60 : vector<8x128xf32>
    %112 = arith.mulf %108, %107 : vector<8x128xf32>
    %113 = arith.addf %111, %112 : vector<8x128xf32>
    %114 = math.tanh %113 : vector<8x128xf32>
    %115 = arith.mulf %110, %114 : vector<8x128xf32>
    %c2_i32 = arith.constant 2 : i32
    %116 = arith.index_cast %c2_i32 : i32 to index
    %c0_40 = arith.constant 0 : index
    %c0_41 = arith.constant 0 : index
    %117 = vector.load %arg2[%116, %c0_40, %c0_41] : memref<8x8x1xf32, #tpu.memory_space<vmem>>, vector<1x8x1xf32>
    %118 = vector.shape_cast %117 : vector<1x8x1xf32> to vector<8x1xf32>
    %119 = arith.truncf %90 : vector<8x128xf32> to vector<8x128xbf16>
    %c0_42 = arith.constant 0 : index
    %c0_43 = arith.constant 0 : index
    %120 = vector.load %arg5[%c0_42, %c0_43] : memref<128x512xbf16, #tpu.memory_space<vmem>>, vector<128x512xbf16>
    %cst_44 = arith.constant dense<0.000000e+00> : vector<8x512xf32>
    %121 = tpu.matmul %119, %120, %cst_44 {dimension_numbers = #tpu.dot_dimension_numbers<[1], [0], [0], [1], [0, 0, 1, 1], [], []>} : vector<8x128xbf16>, vector<128x512xbf16>, vector<8x512xf32> -> vector<8x512xf32>
    %122 = vector.broadcast %118 : vector<8x1xf32> to vector<8x512xf32>
    %123 = vector.broadcast %3 : vector<1x512xf32> to vector<8x512xf32>
    %124 = arith.mulf %122, %123 : vector<8x512xf32>
    %125 = vector.broadcast %4 : vector<1x512xf32> to vector<8x512xf32>
    %126 = arith.addf %124, %125 : vector<8x512xf32>
    %127 = arith.addf %126, %121 : vector<8x512xf32>
    %128 = vector.extract_strided_slice %127 {offsets = [0, 0], sizes = [8, 384], strides = [1, 1]} : vector<8x512xf32> to vector<8x384xf32>
    %129 = arith.negf %128 : vector<8x384xf32>
    %130 = math.exp %129 : vector<8x384xf32>
    %cst_45 = arith.constant 1.000000e+00 : f32
    %131 = vector.broadcast %cst_45 : f32 to vector<8x384xf32>
    %132 = arith.addf %131, %130 : vector<8x384xf32>
    %133 = arith.divf %131, %132 : vector<8x384xf32>
    %134 = vector.extract_strided_slice %127 {offsets = [0, 384], sizes = [8, 128], strides = [1, 1]} : vector<8x512xf32> to vector<8x128xf32>
    %135 = math.tanh %134 : vector<8x128xf32>
    %136 = vector.extract_strided_slice %133 {offsets = [0, 0], sizes = [8, 128], strides = [1, 1]} : vector<8x384xf32> to vector<8x128xf32>
    %137 = vector.extract_strided_slice %133 {offsets = [0, 128], sizes = [8, 128], strides = [1, 1]} : vector<8x384xf32> to vector<8x128xf32>
    %138 = vector.extract_strided_slice %133 {offsets = [0, 256], sizes = [8, 128], strides = [1, 1]} : vector<8x384xf32> to vector<8x128xf32>
    %139 = arith.mulf %137, %88 : vector<8x128xf32>
    %140 = arith.mulf %136, %135 : vector<8x128xf32>
    %141 = arith.addf %139, %140 : vector<8x128xf32>
    %142 = math.tanh %141 : vector<8x128xf32>
    %143 = arith.mulf %138, %142 : vector<8x128xf32>
    %144 = arith.truncf %115 : vector<8x128xf32> to vector<8x128xbf16>
    %c0_46 = arith.constant 0 : index
    %c0_47 = arith.constant 0 : index
    %145 = vector.load %arg7[%c0_46, %c0_47] : memref<128x512xbf16, #tpu.memory_space<vmem>>, vector<128x512xbf16>
    %cst_48 = arith.constant dense<0.000000e+00> : vector<8x512xf32>
    %146 = tpu.matmul %144, %145, %cst_48 {dimension_numbers = #tpu.dot_dimension_numbers<[1], [0], [0], [1], [0, 0, 1, 1], [], []>} : vector<8x128xbf16>, vector<128x512xbf16>, vector<8x512xf32> -> vector<8x512xf32>
    %147 = arith.truncf %143 : vector<8x128xf32> to vector<8x128xbf16>
    %c0_49 = arith.constant 0 : index
    %c0_50 = arith.constant 0 : index
    %148 = vector.load %arg6[%c0_49, %c0_50] : memref<128x512xbf16, #tpu.memory_space<vmem>>, vector<128x512xbf16>
    %cst_51 = arith.constant dense<0.000000e+00> : vector<8x512xf32>
    %149 = tpu.matmul %147, %148, %cst_51 {dimension_numbers = #tpu.dot_dimension_numbers<[1], [0], [0], [1], [0, 0, 1, 1], [], []>} : vector<8x128xbf16>, vector<128x512xbf16>, vector<8x512xf32> -> vector<8x512xf32>
    %150 = arith.addf %149, %146 : vector<8x512xf32>
    %151 = vector.broadcast %5 : vector<1x512xf32> to vector<8x512xf32>
    %152 = arith.addf %150, %151 : vector<8x512xf32>
    %153 = vector.extract_strided_slice %152 {offsets = [0, 0], sizes = [8, 384], strides = [1, 1]} : vector<8x512xf32> to vector<8x384xf32>
    %154 = arith.negf %153 : vector<8x384xf32>
    %155 = math.exp %154 : vector<8x384xf32>
    %cst_52 = arith.constant 1.000000e+00 : f32
    %156 = vector.broadcast %cst_52 : f32 to vector<8x384xf32>
    %157 = arith.addf %156, %155 : vector<8x384xf32>
    %158 = arith.divf %156, %157 : vector<8x384xf32>
    %159 = vector.extract_strided_slice %152 {offsets = [0, 384], sizes = [8, 128], strides = [1, 1]} : vector<8x512xf32> to vector<8x128xf32>
    %160 = math.tanh %159 : vector<8x128xf32>
    %161 = vector.extract_strided_slice %158 {offsets = [0, 0], sizes = [8, 128], strides = [1, 1]} : vector<8x384xf32> to vector<8x128xf32>
    %162 = vector.extract_strided_slice %158 {offsets = [0, 128], sizes = [8, 128], strides = [1, 1]} : vector<8x384xf32> to vector<8x128xf32>
    %163 = vector.extract_strided_slice %158 {offsets = [0, 256], sizes = [8, 128], strides = [1, 1]} : vector<8x384xf32> to vector<8x128xf32>
    %164 = arith.mulf %162, %113 : vector<8x128xf32>
    %165 = arith.mulf %161, %160 : vector<8x128xf32>
    %166 = arith.addf %164, %165 : vector<8x128xf32>
    %167 = math.tanh %166 : vector<8x128xf32>
    %168 = arith.mulf %163, %167 : vector<8x128xf32>
    %c3_i32 = arith.constant 3 : i32
    %169 = arith.index_cast %c3_i32 : i32 to index
    %c0_53 = arith.constant 0 : index
    %c0_54 = arith.constant 0 : index
    %170 = vector.load %arg2[%169, %c0_53, %c0_54] : memref<8x8x1xf32, #tpu.memory_space<vmem>>, vector<1x8x1xf32>
    %171 = vector.shape_cast %170 : vector<1x8x1xf32> to vector<8x1xf32>
    %172 = arith.truncf %143 : vector<8x128xf32> to vector<8x128xbf16>
    %c0_55 = arith.constant 0 : index
    %c0_56 = arith.constant 0 : index
    %173 = vector.load %arg5[%c0_55, %c0_56] : memref<128x512xbf16, #tpu.memory_space<vmem>>, vector<128x512xbf16>
    %cst_57 = arith.constant dense<0.000000e+00> : vector<8x512xf32>
    %174 = tpu.matmul %172, %173, %cst_57 {dimension_numbers = #tpu.dot_dimension_numbers<[1], [0], [0], [1], [0, 0, 1, 1], [], []>} : vector<8x128xbf16>, vector<128x512xbf16>, vector<8x512xf32> -> vector<8x512xf32>
    %175 = vector.broadcast %171 : vector<8x1xf32> to vector<8x512xf32>
    %176 = vector.broadcast %3 : vector<1x512xf32> to vector<8x512xf32>
    %177 = arith.mulf %175, %176 : vector<8x512xf32>
    %178 = vector.broadcast %4 : vector<1x512xf32> to vector<8x512xf32>
    %179 = arith.addf %177, %178 : vector<8x512xf32>
    %180 = arith.addf %179, %174 : vector<8x512xf32>
    %181 = vector.extract_strided_slice %180 {offsets = [0, 0], sizes = [8, 384], strides = [1, 1]} : vector<8x512xf32> to vector<8x384xf32>
    %182 = arith.negf %181 : vector<8x384xf32>
    %183 = math.exp %182 : vector<8x384xf32>
    %cst_58 = arith.constant 1.000000e+00 : f32
    %184 = vector.broadcast %cst_58 : f32 to vector<8x384xf32>
    %185 = arith.addf %184, %183 : vector<8x384xf32>
    %186 = arith.divf %184, %185 : vector<8x384xf32>
    %187 = vector.extract_strided_slice %180 {offsets = [0, 384], sizes = [8, 128], strides = [1, 1]} : vector<8x512xf32> to vector<8x128xf32>
    %188 = math.tanh %187 : vector<8x128xf32>
    %189 = vector.extract_strided_slice %186 {offsets = [0, 0], sizes = [8, 128], strides = [1, 1]} : vector<8x384xf32> to vector<8x128xf32>
    %190 = vector.extract_strided_slice %186 {offsets = [0, 128], sizes = [8, 128], strides = [1, 1]} : vector<8x384xf32> to vector<8x128xf32>
    %191 = vector.extract_strided_slice %186 {offsets = [0, 256], sizes = [8, 128], strides = [1, 1]} : vector<8x384xf32> to vector<8x128xf32>
    %192 = arith.mulf %190, %141 : vector<8x128xf32>
    %193 = arith.mulf %189, %188 : vector<8x128xf32>
    %194 = arith.addf %192, %193 : vector<8x128xf32>
    %195 = math.tanh %194 : vector<8x128xf32>
    %196 = arith.mulf %191, %195 : vector<8x128xf32>
    %197 = arith.truncf %168 : vector<8x128xf32> to vector<8x128xbf16>
    %c0_59 = arith.constant 0 : index
    %c0_60 = arith.constant 0 : index
    %198 = vector.load %arg7[%c0_59, %c0_60] : memref<128x512xbf16, #tpu.memory_space<vmem>>, vector<128x512xbf16>
    %cst_61 = arith.constant dense<0.000000e+00> : vector<8x512xf32>
    %199 = tpu.matmul %197, %198, %cst_61 {dimension_numbers = #tpu.dot_dimension_numbers<[1], [0], [0], [1], [0, 0, 1, 1], [], []>} : vector<8x128xbf16>, vector<128x512xbf16>, vector<8x512xf32> -> vector<8x512xf32>
    %200 = arith.truncf %196 : vector<8x128xf32> to vector<8x128xbf16>
    %c0_62 = arith.constant 0 : index
    %c0_63 = arith.constant 0 : index
    %201 = vector.load %arg6[%c0_62, %c0_63] : memref<128x512xbf16, #tpu.memory_space<vmem>>, vector<128x512xbf16>
    %cst_64 = arith.constant dense<0.000000e+00> : vector<8x512xf32>
    %202 = tpu.matmul %200, %201, %cst_64 {dimension_numbers = #tpu.dot_dimension_numbers<[1], [0], [0], [1], [0, 0, 1, 1], [], []>} : vector<8x128xbf16>, vector<128x512xbf16>, vector<8x512xf32> -> vector<8x512xf32>
    %203 = arith.addf %202, %199 : vector<8x512xf32>
    %204 = vector.broadcast %5 : vector<1x512xf32> to vector<8x512xf32>
    %205 = arith.addf %203, %204 : vector<8x512xf32>
    %206 = vector.extract_strided_slice %205 {offsets = [0, 0], sizes = [8, 384], strides = [1, 1]} : vector<8x512xf32> to vector<8x384xf32>
    %207 = arith.negf %206 : vector<8x384xf32>
    %208 = math.exp %207 : vector<8x384xf32>
    %cst_65 = arith.constant 1.000000e+00 : f32
    %209 = vector.broadcast %cst_65 : f32 to vector<8x384xf32>
    %210 = arith.addf %209, %208 : vector<8x384xf32>
    %211 = arith.divf %209, %210 : vector<8x384xf32>
    %212 = vector.extract_strided_slice %205 {offsets = [0, 384], sizes = [8, 128], strides = [1, 1]} : vector<8x512xf32> to vector<8x128xf32>
    %213 = math.tanh %212 : vector<8x128xf32>
    %214 = vector.extract_strided_slice %211 {offsets = [0, 0], sizes = [8, 128], strides = [1, 1]} : vector<8x384xf32> to vector<8x128xf32>
    %215 = vector.extract_strided_slice %211 {offsets = [0, 128], sizes = [8, 128], strides = [1, 1]} : vector<8x384xf32> to vector<8x128xf32>
    %216 = vector.extract_strided_slice %211 {offsets = [0, 256], sizes = [8, 128], strides = [1, 1]} : vector<8x384xf32> to vector<8x128xf32>
    %217 = arith.mulf %215, %166 : vector<8x128xf32>
    %218 = arith.mulf %214, %213 : vector<8x128xf32>
    %219 = arith.addf %217, %218 : vector<8x128xf32>
    %220 = math.tanh %219 : vector<8x128xf32>
    %221 = arith.mulf %216, %220 : vector<8x128xf32>
    %c4_i32 = arith.constant 4 : i32
    %222 = arith.index_cast %c4_i32 : i32 to index
    %c0_66 = arith.constant 0 : index
    %c0_67 = arith.constant 0 : index
    %223 = vector.load %arg2[%222, %c0_66, %c0_67] : memref<8x8x1xf32, #tpu.memory_space<vmem>>, vector<1x8x1xf32>
    %224 = vector.shape_cast %223 : vector<1x8x1xf32> to vector<8x1xf32>
    %225 = arith.truncf %196 : vector<8x128xf32> to vector<8x128xbf16>
    %c0_68 = arith.constant 0 : index
    %c0_69 = arith.constant 0 : index
    %226 = vector.load %arg5[%c0_68, %c0_69] : memref<128x512xbf16, #tpu.memory_space<vmem>>, vector<128x512xbf16>
    %cst_70 = arith.constant dense<0.000000e+00> : vector<8x512xf32>
    %227 = tpu.matmul %225, %226, %cst_70 {dimension_numbers = #tpu.dot_dimension_numbers<[1], [0], [0], [1], [0, 0, 1, 1], [], []>} : vector<8x128xbf16>, vector<128x512xbf16>, vector<8x512xf32> -> vector<8x512xf32>
    %228 = vector.broadcast %224 : vector<8x1xf32> to vector<8x512xf32>
    %229 = vector.broadcast %3 : vector<1x512xf32> to vector<8x512xf32>
    %230 = arith.mulf %228, %229 : vector<8x512xf32>
    %231 = vector.broadcast %4 : vector<1x512xf32> to vector<8x512xf32>
    %232 = arith.addf %230, %231 : vector<8x512xf32>
    %233 = arith.addf %232, %227 : vector<8x512xf32>
    %234 = vector.extract_strided_slice %233 {offsets = [0, 0], sizes = [8, 384], strides = [1, 1]} : vector<8x512xf32> to vector<8x384xf32>
    %235 = arith.negf %234 : vector<8x384xf32>
    %236 = math.exp %235 : vector<8x384xf32>
    %cst_71 = arith.constant 1.000000e+00 : f32
    %237 = vector.broadcast %cst_71 : f32 to vector<8x384xf32>
    %238 = arith.addf %237, %236 : vector<8x384xf32>
    %239 = arith.divf %237, %238 : vector<8x384xf32>
    %240 = vector.extract_strided_slice %233 {offsets = [0, 384], sizes = [8, 128], strides = [1, 1]} : vector<8x512xf32> to vector<8x128xf32>
    %241 = math.tanh %240 : vector<8x128xf32>
    %242 = vector.extract_strided_slice %239 {offsets = [0, 0], sizes = [8, 128], strides = [1, 1]} : vector<8x384xf32> to vector<8x128xf32>
    %243 = vector.extract_strided_slice %239 {offsets = [0, 128], sizes = [8, 128], strides = [1, 1]} : vector<8x384xf32> to vector<8x128xf32>
    %244 = vector.extract_strided_slice %239 {offsets = [0, 256], sizes = [8, 128], strides = [1, 1]} : vector<8x384xf32> to vector<8x128xf32>
    %245 = arith.mulf %243, %194 : vector<8x128xf32>
    %246 = arith.mulf %242, %241 : vector<8x128xf32>
    %247 = arith.addf %245, %246 : vector<8x128xf32>
    %248 = math.tanh %247 : vector<8x128xf32>
    %249 = arith.mulf %244, %248 : vector<8x128xf32>
    %250 = arith.truncf %221 : vector<8x128xf32> to vector<8x128xbf16>
    %c0_72 = arith.constant 0 : index
    %c0_73 = arith.constant 0 : index
    %251 = vector.load %arg7[%c0_72, %c0_73] : memref<128x512xbf16, #tpu.memory_space<vmem>>, vector<128x512xbf16>
    %cst_74 = arith.constant dense<0.000000e+00> : vector<8x512xf32>
    %252 = tpu.matmul %250, %251, %cst_74 {dimension_numbers = #tpu.dot_dimension_numbers<[1], [0], [0], [1], [0, 0, 1, 1], [], []>} : vector<8x128xbf16>, vector<128x512xbf16>, vector<8x512xf32> -> vector<8x512xf32>
    %253 = arith.truncf %249 : vector<8x128xf32> to vector<8x128xbf16>
    %c0_75 = arith.constant 0 : index
    %c0_76 = arith.constant 0 : index
    %254 = vector.load %arg6[%c0_75, %c0_76] : memref<128x512xbf16, #tpu.memory_space<vmem>>, vector<128x512xbf16>
    %cst_77 = arith.constant dense<0.000000e+00> : vector<8x512xf32>
    %255 = tpu.matmul %253, %254, %cst_77 {dimension_numbers = #tpu.dot_dimension_numbers<[1], [0], [0], [1], [0, 0, 1, 1], [], []>} : vector<8x128xbf16>, vector<128x512xbf16>, vector<8x512xf32> -> vector<8x512xf32>
    %256 = arith.addf %255, %252 : vector<8x512xf32>
    %257 = vector.broadcast %5 : vector<1x512xf32> to vector<8x512xf32>
    %258 = arith.addf %256, %257 : vector<8x512xf32>
    %259 = vector.extract_strided_slice %258 {offsets = [0, 0], sizes = [8, 384], strides = [1, 1]} : vector<8x512xf32> to vector<8x384xf32>
    %260 = arith.negf %259 : vector<8x384xf32>
    %261 = math.exp %260 : vector<8x384xf32>
    %cst_78 = arith.constant 1.000000e+00 : f32
    %262 = vector.broadcast %cst_78 : f32 to vector<8x384xf32>
    %263 = arith.addf %262, %261 : vector<8x384xf32>
    %264 = arith.divf %262, %263 : vector<8x384xf32>
    %265 = vector.extract_strided_slice %258 {offsets = [0, 384], sizes = [8, 128], strides = [1, 1]} : vector<8x512xf32> to vector<8x128xf32>
    %266 = math.tanh %265 : vector<8x128xf32>
    %267 = vector.extract_strided_slice %264 {offsets = [0, 0], sizes = [8, 128], strides = [1, 1]} : vector<8x384xf32> to vector<8x128xf32>
    %268 = vector.extract_strided_slice %264 {offsets = [0, 128], sizes = [8, 128], strides = [1, 1]} : vector<8x384xf32> to vector<8x128xf32>
    %269 = vector.extract_strided_slice %264 {offsets = [0, 256], sizes = [8, 128], strides = [1, 1]} : vector<8x384xf32> to vector<8x128xf32>
    %270 = arith.mulf %268, %219 : vector<8x128xf32>
    %271 = arith.mulf %267, %266 : vector<8x128xf32>
    %272 = arith.addf %270, %271 : vector<8x128xf32>
    %273 = math.tanh %272 : vector<8x128xf32>
    %274 = arith.mulf %269, %273 : vector<8x128xf32>
    %c5_i32 = arith.constant 5 : i32
    %275 = arith.index_cast %c5_i32 : i32 to index
    %c0_79 = arith.constant 0 : index
    %c0_80 = arith.constant 0 : index
    %276 = vector.load %arg2[%275, %c0_79, %c0_80] : memref<8x8x1xf32, #tpu.memory_space<vmem>>, vector<1x8x1xf32>
    %277 = vector.shape_cast %276 : vector<1x8x1xf32> to vector<8x1xf32>
    %278 = arith.truncf %249 : vector<8x128xf32> to vector<8x128xbf16>
    %c0_81 = arith.constant 0 : index
    %c0_82 = arith.constant 0 : index
    %279 = vector.load %arg5[%c0_81, %c0_82] : memref<128x512xbf16, #tpu.memory_space<vmem>>, vector<128x512xbf16>
    %cst_83 = arith.constant dense<0.000000e+00> : vector<8x512xf32>
    %280 = tpu.matmul %278, %279, %cst_83 {dimension_numbers = #tpu.dot_dimension_numbers<[1], [0], [0], [1], [0, 0, 1, 1], [], []>} : vector<8x128xbf16>, vector<128x512xbf16>, vector<8x512xf32> -> vector<8x512xf32>
    %281 = vector.broadcast %277 : vector<8x1xf32> to vector<8x512xf32>
    %282 = vector.broadcast %3 : vector<1x512xf32> to vector<8x512xf32>
    %283 = arith.mulf %281, %282 : vector<8x512xf32>
    %284 = vector.broadcast %4 : vector<1x512xf32> to vector<8x512xf32>
    %285 = arith.addf %283, %284 : vector<8x512xf32>
    %286 = arith.addf %285, %280 : vector<8x512xf32>
    %287 = vector.extract_strided_slice %286 {offsets = [0, 0], sizes = [8, 384], strides = [1, 1]} : vector<8x512xf32> to vector<8x384xf32>
    %288 = arith.negf %287 : vector<8x384xf32>
    %289 = math.exp %288 : vector<8x384xf32>
    %cst_84 = arith.constant 1.000000e+00 : f32
    %290 = vector.broadcast %cst_84 : f32 to vector<8x384xf32>
    %291 = arith.addf %290, %289 : vector<8x384xf32>
    %292 = arith.divf %290, %291 : vector<8x384xf32>
    %293 = vector.extract_strided_slice %286 {offsets = [0, 384], sizes = [8, 128], strides = [1, 1]} : vector<8x512xf32> to vector<8x128xf32>
    %294 = math.tanh %293 : vector<8x128xf32>
    %295 = vector.extract_strided_slice %292 {offsets = [0, 0], sizes = [8, 128], strides = [1, 1]} : vector<8x384xf32> to vector<8x128xf32>
    %296 = vector.extract_strided_slice %292 {offsets = [0, 128], sizes = [8, 128], strides = [1, 1]} : vector<8x384xf32> to vector<8x128xf32>
    %297 = vector.extract_strided_slice %292 {offsets = [0, 256], sizes = [8, 128], strides = [1, 1]} : vector<8x384xf32> to vector<8x128xf32>
    %298 = arith.mulf %296, %247 : vector<8x128xf32>
    %299 = arith.mulf %295, %294 : vector<8x128xf32>
    %300 = arith.addf %298, %299 : vector<8x128xf32>
    %301 = math.tanh %300 : vector<8x128xf32>
    %302 = arith.mulf %297, %301 : vector<8x128xf32>
    %303 = arith.truncf %274 : vector<8x128xf32> to vector<8x128xbf16>
    %c0_85 = arith.constant 0 : index
    %c0_86 = arith.constant 0 : index
    %304 = vector.load %arg7[%c0_85, %c0_86] : memref<128x512xbf16, #tpu.memory_space<vmem>>, vector<128x512xbf16>
    %cst_87 = arith.constant dense<0.000000e+00> : vector<8x512xf32>
    %305 = tpu.matmul %303, %304, %cst_87 {dimension_numbers = #tpu.dot_dimension_numbers<[1], [0], [0], [1], [0, 0, 1, 1], [], []>} : vector<8x128xbf16>, vector<128x512xbf16>, vector<8x512xf32> -> vector<8x512xf32>
    %306 = arith.truncf %302 : vector<8x128xf32> to vector<8x128xbf16>
    %c0_88 = arith.constant 0 : index
    %c0_89 = arith.constant 0 : index
    %307 = vector.load %arg6[%c0_88, %c0_89] : memref<128x512xbf16, #tpu.memory_space<vmem>>, vector<128x512xbf16>
    %cst_90 = arith.constant dense<0.000000e+00> : vector<8x512xf32>
    %308 = tpu.matmul %306, %307, %cst_90 {dimension_numbers = #tpu.dot_dimension_numbers<[1], [0], [0], [1], [0, 0, 1, 1], [], []>} : vector<8x128xbf16>, vector<128x512xbf16>, vector<8x512xf32> -> vector<8x512xf32>
    %309 = arith.addf %308, %305 : vector<8x512xf32>
    %310 = vector.broadcast %5 : vector<1x512xf32> to vector<8x512xf32>
    %311 = arith.addf %309, %310 : vector<8x512xf32>
    %312 = vector.extract_strided_slice %311 {offsets = [0, 0], sizes = [8, 384], strides = [1, 1]} : vector<8x512xf32> to vector<8x384xf32>
    %313 = arith.negf %312 : vector<8x384xf32>
    %314 = math.exp %313 : vector<8x384xf32>
    %cst_91 = arith.constant 1.000000e+00 : f32
    %315 = vector.broadcast %cst_91 : f32 to vector<8x384xf32>
    %316 = arith.addf %315, %314 : vector<8x384xf32>
    %317 = arith.divf %315, %316 : vector<8x384xf32>
    %318 = vector.extract_strided_slice %311 {offsets = [0, 384], sizes = [8, 128], strides = [1, 1]} : vector<8x512xf32> to vector<8x128xf32>
    %319 = math.tanh %318 : vector<8x128xf32>
    %320 = vector.extract_strided_slice %317 {offsets = [0, 0], sizes = [8, 128], strides = [1, 1]} : vector<8x384xf32> to vector<8x128xf32>
    %321 = vector.extract_strided_slice %317 {offsets = [0, 128], sizes = [8, 128], strides = [1, 1]} : vector<8x384xf32> to vector<8x128xf32>
    %322 = vector.extract_strided_slice %317 {offsets = [0, 256], sizes = [8, 128], strides = [1, 1]} : vector<8x384xf32> to vector<8x128xf32>
    %323 = arith.mulf %321, %272 : vector<8x128xf32>
    %324 = arith.mulf %320, %319 : vector<8x128xf32>
    %325 = arith.addf %323, %324 : vector<8x128xf32>
    %326 = math.tanh %325 : vector<8x128xf32>
    %327 = arith.mulf %322, %326 : vector<8x128xf32>
    %c6_i32 = arith.constant 6 : i32
    %328 = arith.index_cast %c6_i32 : i32 to index
    %c0_92 = arith.constant 0 : index
    %c0_93 = arith.constant 0 : index
    %329 = vector.load %arg2[%328, %c0_92, %c0_93] : memref<8x8x1xf32, #tpu.memory_space<vmem>>, vector<1x8x1xf32>
    %330 = vector.shape_cast %329 : vector<1x8x1xf32> to vector<8x1xf32>
    %331 = arith.truncf %302 : vector<8x128xf32> to vector<8x128xbf16>
    %c0_94 = arith.constant 0 : index
    %c0_95 = arith.constant 0 : index
    %332 = vector.load %arg5[%c0_94, %c0_95] : memref<128x512xbf16, #tpu.memory_space<vmem>>, vector<128x512xbf16>
    %cst_96 = arith.constant dense<0.000000e+00> : vector<8x512xf32>
    %333 = tpu.matmul %331, %332, %cst_96 {dimension_numbers = #tpu.dot_dimension_numbers<[1], [0], [0], [1], [0, 0, 1, 1], [], []>} : vector<8x128xbf16>, vector<128x512xbf16>, vector<8x512xf32> -> vector<8x512xf32>
    %334 = vector.broadcast %330 : vector<8x1xf32> to vector<8x512xf32>
    %335 = vector.broadcast %3 : vector<1x512xf32> to vector<8x512xf32>
    %336 = arith.mulf %334, %335 : vector<8x512xf32>
    %337 = vector.broadcast %4 : vector<1x512xf32> to vector<8x512xf32>
    %338 = arith.addf %336, %337 : vector<8x512xf32>
    %339 = arith.addf %338, %333 : vector<8x512xf32>
    %340 = vector.extract_strided_slice %339 {offsets = [0, 0], sizes = [8, 384], strides = [1, 1]} : vector<8x512xf32> to vector<8x384xf32>
    %341 = arith.negf %340 : vector<8x384xf32>
    %342 = math.exp %341 : vector<8x384xf32>
    %cst_97 = arith.constant 1.000000e+00 : f32
    %343 = vector.broadcast %cst_97 : f32 to vector<8x384xf32>
    %344 = arith.addf %343, %342 : vector<8x384xf32>
    %345 = arith.divf %343, %344 : vector<8x384xf32>
    %346 = vector.extract_strided_slice %339 {offsets = [0, 384], sizes = [8, 128], strides = [1, 1]} : vector<8x512xf32> to vector<8x128xf32>
    %347 = math.tanh %346 : vector<8x128xf32>
    %348 = vector.extract_strided_slice %345 {offsets = [0, 0], sizes = [8, 128], strides = [1, 1]} : vector<8x384xf32> to vector<8x128xf32>
    %349 = vector.extract_strided_slice %345 {offsets = [0, 128], sizes = [8, 128], strides = [1, 1]} : vector<8x384xf32> to vector<8x128xf32>
    %350 = vector.extract_strided_slice %345 {offsets = [0, 256], sizes = [8, 128], strides = [1, 1]} : vector<8x384xf32> to vector<8x128xf32>
    %351 = arith.mulf %349, %300 : vector<8x128xf32>
    %352 = arith.mulf %348, %347 : vector<8x128xf32>
    %353 = arith.addf %351, %352 : vector<8x128xf32>
    %354 = math.tanh %353 : vector<8x128xf32>
    %355 = arith.mulf %350, %354 : vector<8x128xf32>
    %356 = arith.truncf %327 : vector<8x128xf32> to vector<8x128xbf16>
    %c0_98 = arith.constant 0 : index
    %c0_99 = arith.constant 0 : index
    %357 = vector.load %arg7[%c0_98, %c0_99] : memref<128x512xbf16, #tpu.memory_space<vmem>>, vector<128x512xbf16>
    %cst_100 = arith.constant dense<0.000000e+00> : vector<8x512xf32>
    %358 = tpu.matmul %356, %357, %cst_100 {dimension_numbers = #tpu.dot_dimension_numbers<[1], [0], [0], [1], [0, 0, 1, 1], [], []>} : vector<8x128xbf16>, vector<128x512xbf16>, vector<8x512xf32> -> vector<8x512xf32>
    %359 = arith.truncf %355 : vector<8x128xf32> to vector<8x128xbf16>
    %c0_101 = arith.constant 0 : index
    %c0_102 = arith.constant 0 : index
    %360 = vector.load %arg6[%c0_101, %c0_102] : memref<128x512xbf16, #tpu.memory_space<vmem>>, vector<128x512xbf16>
    %cst_103 = arith.constant dense<0.000000e+00> : vector<8x512xf32>
    %361 = tpu.matmul %359, %360, %cst_103 {dimension_numbers = #tpu.dot_dimension_numbers<[1], [0], [0], [1], [0, 0, 1, 1], [], []>} : vector<8x128xbf16>, vector<128x512xbf16>, vector<8x512xf32> -> vector<8x512xf32>
    %362 = arith.addf %361, %358 : vector<8x512xf32>
    %363 = vector.broadcast %5 : vector<1x512xf32> to vector<8x512xf32>
    %364 = arith.addf %362, %363 : vector<8x512xf32>
    %365 = vector.extract_strided_slice %364 {offsets = [0, 0], sizes = [8, 384], strides = [1, 1]} : vector<8x512xf32> to vector<8x384xf32>
    %366 = arith.negf %365 : vector<8x384xf32>
    %367 = math.exp %366 : vector<8x384xf32>
    %cst_104 = arith.constant 1.000000e+00 : f32
    %368 = vector.broadcast %cst_104 : f32 to vector<8x384xf32>
    %369 = arith.addf %368, %367 : vector<8x384xf32>
    %370 = arith.divf %368, %369 : vector<8x384xf32>
    %371 = vector.extract_strided_slice %364 {offsets = [0, 384], sizes = [8, 128], strides = [1, 1]} : vector<8x512xf32> to vector<8x128xf32>
    %372 = math.tanh %371 : vector<8x128xf32>
    %373 = vector.extract_strided_slice %370 {offsets = [0, 0], sizes = [8, 128], strides = [1, 1]} : vector<8x384xf32> to vector<8x128xf32>
    %374 = vector.extract_strided_slice %370 {offsets = [0, 128], sizes = [8, 128], strides = [1, 1]} : vector<8x384xf32> to vector<8x128xf32>
    %375 = vector.extract_strided_slice %370 {offsets = [0, 256], sizes = [8, 128], strides = [1, 1]} : vector<8x384xf32> to vector<8x128xf32>
    %376 = arith.mulf %374, %325 : vector<8x128xf32>
    %377 = arith.mulf %373, %372 : vector<8x128xf32>
    %378 = arith.addf %376, %377 : vector<8x128xf32>
    %379 = math.tanh %378 : vector<8x128xf32>
    %380 = arith.mulf %375, %379 : vector<8x128xf32>
    %c7_i32 = arith.constant 7 : i32
    %381 = arith.index_cast %c7_i32 : i32 to index
    %c0_105 = arith.constant 0 : index
    %c0_106 = arith.constant 0 : index
    %382 = vector.load %arg2[%381, %c0_105, %c0_106] : memref<8x8x1xf32, #tpu.memory_space<vmem>>, vector<1x8x1xf32>
    %383 = vector.shape_cast %382 : vector<1x8x1xf32> to vector<8x1xf32>
    %384 = arith.truncf %355 : vector<8x128xf32> to vector<8x128xbf16>
    %c0_107 = arith.constant 0 : index
    %c0_108 = arith.constant 0 : index
    %385 = vector.load %arg5[%c0_107, %c0_108] : memref<128x512xbf16, #tpu.memory_space<vmem>>, vector<128x512xbf16>
    %cst_109 = arith.constant dense<0.000000e+00> : vector<8x512xf32>
    %386 = tpu.matmul %384, %385, %cst_109 {dimension_numbers = #tpu.dot_dimension_numbers<[1], [0], [0], [1], [0, 0, 1, 1], [], []>} : vector<8x128xbf16>, vector<128x512xbf16>, vector<8x512xf32> -> vector<8x512xf32>
    %387 = vector.broadcast %383 : vector<8x1xf32> to vector<8x512xf32>
    %388 = vector.broadcast %3 : vector<1x512xf32> to vector<8x512xf32>
    %389 = arith.mulf %387, %388 : vector<8x512xf32>
    %390 = vector.broadcast %4 : vector<1x512xf32> to vector<8x512xf32>
    %391 = arith.addf %389, %390 : vector<8x512xf32>
    %392 = arith.addf %391, %386 : vector<8x512xf32>
    %393 = vector.extract_strided_slice %392 {offsets = [0, 0], sizes = [8, 384], strides = [1, 1]} : vector<8x512xf32> to vector<8x384xf32>
    %394 = arith.negf %393 : vector<8x384xf32>
    %395 = math.exp %394 : vector<8x384xf32>
    %cst_110 = arith.constant 1.000000e+00 : f32
    %396 = vector.broadcast %cst_110 : f32 to vector<8x384xf32>
    %397 = arith.addf %396, %395 : vector<8x384xf32>
    %398 = arith.divf %396, %397 : vector<8x384xf32>
    %399 = vector.extract_strided_slice %392 {offsets = [0, 384], sizes = [8, 128], strides = [1, 1]} : vector<8x512xf32> to vector<8x128xf32>
    %400 = math.tanh %399 : vector<8x128xf32>
    %401 = vector.extract_strided_slice %398 {offsets = [0, 0], sizes = [8, 128], strides = [1, 1]} : vector<8x384xf32> to vector<8x128xf32>
    %402 = vector.extract_strided_slice %398 {offsets = [0, 128], sizes = [8, 128], strides = [1, 1]} : vector<8x384xf32> to vector<8x128xf32>
    %403 = vector.extract_strided_slice %398 {offsets = [0, 256], sizes = [8, 128], strides = [1, 1]} : vector<8x384xf32> to vector<8x128xf32>
    %404 = arith.mulf %402, %353 : vector<8x128xf32>
    %405 = arith.mulf %401, %400 : vector<8x128xf32>
    %406 = arith.addf %404, %405 : vector<8x128xf32>
    %407 = math.tanh %406 : vector<8x128xf32>
    %408 = arith.mulf %403, %407 : vector<8x128xf32>
    %409 = arith.truncf %380 : vector<8x128xf32> to vector<8x128xbf16>
    %c0_111 = arith.constant 0 : index
    %c0_112 = arith.constant 0 : index
    %410 = vector.load %arg7[%c0_111, %c0_112] : memref<128x512xbf16, #tpu.memory_space<vmem>>, vector<128x512xbf16>
    %cst_113 = arith.constant dense<0.000000e+00> : vector<8x512xf32>
    %411 = tpu.matmul %409, %410, %cst_113 {dimension_numbers = #tpu.dot_dimension_numbers<[1], [0], [0], [1], [0, 0, 1, 1], [], []>} : vector<8x128xbf16>, vector<128x512xbf16>, vector<8x512xf32> -> vector<8x512xf32>
    %412 = arith.truncf %408 : vector<8x128xf32> to vector<8x128xbf16>
    %c0_114 = arith.constant 0 : index
    %c0_115 = arith.constant 0 : index
    %413 = vector.load %arg6[%c0_114, %c0_115] : memref<128x512xbf16, #tpu.memory_space<vmem>>, vector<128x512xbf16>
    %cst_116 = arith.constant dense<0.000000e+00> : vector<8x512xf32>
    %414 = tpu.matmul %412, %413, %cst_116 {dimension_numbers = #tpu.dot_dimension_numbers<[1], [0], [0], [1], [0, 0, 1, 1], [], []>} : vector<8x128xbf16>, vector<128x512xbf16>, vector<8x512xf32> -> vector<8x512xf32>
    %415 = arith.addf %414, %411 : vector<8x512xf32>
    %416 = vector.broadcast %5 : vector<1x512xf32> to vector<8x512xf32>
    %417 = arith.addf %415, %416 : vector<8x512xf32>
    %418 = vector.extract_strided_slice %417 {offsets = [0, 0], sizes = [8, 384], strides = [1, 1]} : vector<8x512xf32> to vector<8x384xf32>
    %419 = arith.negf %418 : vector<8x384xf32>
    %420 = math.exp %419 : vector<8x384xf32>
    %cst_117 = arith.constant 1.000000e+00 : f32
    %421 = vector.broadcast %cst_117 : f32 to vector<8x384xf32>
    %422 = arith.addf %421, %420 : vector<8x384xf32>
    %423 = arith.divf %421, %422 : vector<8x384xf32>
    %424 = vector.extract_strided_slice %417 {offsets = [0, 384], sizes = [8, 128], strides = [1, 1]} : vector<8x512xf32> to vector<8x128xf32>
    %425 = math.tanh %424 : vector<8x128xf32>
    %426 = vector.extract_strided_slice %423 {offsets = [0, 0], sizes = [8, 128], strides = [1, 1]} : vector<8x384xf32> to vector<8x128xf32>
    %427 = vector.extract_strided_slice %423 {offsets = [0, 128], sizes = [8, 128], strides = [1, 1]} : vector<8x384xf32> to vector<8x128xf32>
    %428 = vector.extract_strided_slice %423 {offsets = [0, 256], sizes = [8, 128], strides = [1, 1]} : vector<8x384xf32> to vector<8x128xf32>
    %429 = arith.mulf %427, %378 : vector<8x128xf32>
    %430 = arith.mulf %426, %425 : vector<8x128xf32>
    %431 = arith.addf %429, %430 : vector<8x128xf32>
    %432 = math.tanh %431 : vector<8x128xf32>
    %433 = arith.mulf %428, %432 : vector<8x128xf32>
    %c8_i32 = arith.constant 8 : i32
    %c0_118 = arith.constant 0 : index
    %c0_119 = arith.constant 0 : index
    %434 = vector.load %arg12[%c0_118, %c0_119] : memref<8x128xf32, #tpu.memory_space<vmem>>, vector<8x128xf32>
    tpu.vector_store %arg12[%c0_118, %c0_119], %408 {strides = array<i32>} : memref<8x128xf32, #tpu.memory_space<vmem>>, vector<8x128xf32>,
    %c0_120 = arith.constant 0 : index
    %c0_121 = arith.constant 0 : index
    %435 = vector.load %arg13[%c0_120, %c0_121] : memref<8x128xf32, #tpu.memory_space<vmem>>, vector<8x128xf32>
    tpu.vector_store %arg13[%c0_120, %c0_121], %406 {strides = array<i32>} : memref<8x128xf32, #tpu.memory_space<vmem>>, vector<8x128xf32>,
    %c0_122 = arith.constant 0 : index
    %c0_123 = arith.constant 0 : index
    %436 = vector.load %arg14[%c0_122, %c0_123] : memref<8x128xf32, #tpu.memory_space<vmem>>, vector<8x128xf32>
    tpu.vector_store %arg14[%c0_122, %c0_123], %433 {strides = array<i32>} : memref<8x128xf32, #tpu.memory_space<vmem>>, vector<8x128xf32>,
    %c0_124 = arith.constant 0 : index
    %c0_125 = arith.constant 0 : index
    %437 = vector.load %arg15[%c0_124, %c0_125] : memref<8x128xf32, #tpu.memory_space<vmem>>, vector<8x128xf32>
    tpu.vector_store %arg15[%c0_124, %c0_125], %431 {strides = array<i32>} : memref<8x128xf32, #tpu.memory_space<vmem>>, vector<8x128xf32>,
    %c0_i32_126 = arith.constant 0 : i32
    %438 = arith.cmpi eq, %arg1, %c0_i32_126 : i32
    %439 = arith.extui %438 : i1 to i32
    %c0_i32_127 = arith.constant 0 : i32
    %440 = arith.cmpi ne, %439, %c0_i32_127 : i32
    scf.if %440 {
      %441 = arith.truncf %433 : vector<8x128xf32> to vector<8x128xbf16>
      %c0_128 = arith.constant 0 : index
      %c0_129 = arith.constant 0 : index
      %442 = vector.load %arg9[%c0_128, %c0_129] : memref<128x128xbf16, #tpu.memory_space<vmem>>, vector<128x128xbf16>
      %cst_130 = arith.constant dense<0.000000e+00> : vector<8x128xf32>
      %443 = tpu.matmul %441, %442, %cst_130 {dimension_numbers = #tpu.dot_dimension_numbers<[1], [0], [0], [1], [0, 0, 1, 1], [], []>} : vector<8x128xbf16>, vector<128x128xbf16>, vector<8x128xf32> -> vector<8x128xf32>
      %c0_131 = arith.constant 0 : index
      %c0_132 = arith.constant 0 : index
      %444 = vector.load %arg10[%c0_131, %c0_132] : memref<1x128xf32, #tpu.memory_space<vmem>>, vector<1x128xf32>
      %445 = vector.broadcast %444 : vector<1x128xf32> to vector<8x128xf32>
      %446 = arith.addf %443, %445 : vector<8x128xf32>
      %c0_133 = arith.constant 0 : index
      %c0_134 = arith.constant 0 : index
      %447 = vector.load %arg11[%c0_133, %c0_134] : memref<8x128xf32, #tpu.memory_space<vmem>>, vector<8x128xf32>
      tpu.vector_store %arg11[%c0_133, %c0_134], %446 {strides = array<i32>} : memref<8x128xf32, #tpu.memory_space<vmem>>, vector<8x128xf32>,
    } else {
    }
    return
  }
  func.func @transform_0(%arg0: i32, %arg1: i32) -> (i32, i32, i32) {
    %c0_i32 = arith.constant 0 : i32
    %c0_i32_0 = arith.constant 0 : i32
    return %arg1, %arg0, %c0_i32 : i32, i32, i32
  }
  func.func @transform_1(%arg0: i32, %arg1: i32) -> (i32, i32) {
    %c0_i32 = arith.constant 0 : i32
    %c0_i32_0 = arith.constant 0 : i32
    %c0_i32_1 = arith.constant 0 : i32
    return %c0_i32, %c0_i32_0 : i32, i32
  }
  func.func @transform_2(%arg0: i32, %arg1: i32) -> (i32, i32) {
    %c0_i32 = arith.constant 0 : i32
    %c0_i32_0 = arith.constant 0 : i32
    %c0_i32_1 = arith.constant 0 : i32
    return %c0_i32, %c0_i32_0 : i32, i32
  }
  func.func @transform_3(%arg0: i32, %arg1: i32) -> (i32, i32) {
    %c0_i32 = arith.constant 0 : i32
    %c0_i32_0 = arith.constant 0 : i32
    %c0_i32_1 = arith.constant 0 : i32
    return %c0_i32, %c0_i32_0 : i32, i32
  }
  func.func @transform_4(%arg0: i32, %arg1: i32) -> (i32, i32) {
    %c0_i32 = arith.constant 0 : i32
    %c0_i32_0 = arith.constant 0 : i32
    %c0_i32_1 = arith.constant 0 : i32
    return %c0_i32, %c0_i32_0 : i32, i32
  }
  func.func @transform_5(%arg0: i32, %arg1: i32) -> (i32, i32) {
    %c0_i32 = arith.constant 0 : i32
    %c0_i32_0 = arith.constant 0 : i32
    %c0_i32_1 = arith.constant 0 : i32
    return %c0_i32, %c0_i32_0 : i32, i32
  }
  func.func @transform_6(%arg0: i32, %arg1: i32) -> (i32, i32) {
    %c0_i32 = arith.constant 0 : i32
    %c0_i32_0 = arith.constant 0 : i32
    %c0_i32_1 = arith.constant 0 : i32
    return %c0_i32, %c0_i32_0 : i32, i32
  }
  func.func @transform_7(%arg0: i32, %arg1: i32) -> (i32, i32) {
    %c0_i32 = arith.constant 0 : i32
    %c0_i32_0 = arith.constant 0 : i32
    %c0_i32_1 = arith.constant 0 : i32
    return %c0_i32, %c0_i32_0 : i32, i32
  }
  func.func @transform_8(%arg0: i32, %arg1: i32) -> (i32, i32) {
    %c0_i32 = arith.constant 0 : i32
    %c0_i32_0 = arith.constant 0 : i32
    %c0_i32_1 = arith.constant 0 : i32
    return %c0_i32, %c0_i32_0 : i32, i32
  }
  func.func @transform_9(%arg0: i32, %arg1: i32) -> (i32, i32) {
    %c0_i32 = arith.constant 0 : i32
    %c0_i32_0 = arith.constant 0 : i32
    return %arg0, %c0_i32 : i32, i32
  }
}

</mosaic_0001>

<llo_original>
// kernel: tpu_custom_call.1
$region0: #{tpu_custom_call.1}
  #allocation0 [shape = 'u32[]', space=smem, size = 0x4, offset = 0x4, fixed_abs, tag = 'smem constant byte address 0x4 - core index']
  #allocation1 [shape = 'u32[144,128]{1,0:T(1,128)}', space=vmem, size = 0x12000, scoped, tag = 'internal scratch']
  #allocation2 [shape = 'f32[8,128]{1,0:T(8,128)}', space=vmem, size = 0x1000, scoped, tag = 'scratch operand']
  #allocation3 [shape = 'f32[8,128]{1,0:T(8,128)}', space=vmem, size = 0x1000, scoped, tag = 'scratch operand']
  #allocation4 [shape = 'f32[8,128]{1,0:T(8,128)}', space=vmem, size = 0x1000, scoped, tag = 'scratch operand']
  #allocation5 [shape = 'f32[8,128]{1,0:T(8,128)}', space=vmem, size = 0x1000, scoped, tag = 'scratch operand']
  %s0 = inlined_call_operand.vmem [shape: f32[8,8,1], index: 0, kind: input, shape index: {}]
  %s1 = inlined_call_operand.vmem [shape: f32[1,512], index: 1, kind: input, shape index: {}]
  %s2 = inlined_call_operand.vmem [shape: f32[1,512], index: 2, kind: input, shape index: {}]
  %s3 = inlined_call_operand.hbm [shape: bf16[128,512], index: 3, kind: input, shape index: {}]
  %s4 = inlined_call_operand.hbm [shape: bf16[128,512], index: 4, kind: input, shape index: {}]
  %s5 = inlined_call_operand.hbm [shape: bf16[128,512], index: 5, kind: input, shape index: {}]
  %s6 = inlined_call_operand.vmem [shape: f32[1,512], index: 6, kind: input, shape index: {}]
  %s7 = inlined_call_operand.vmem [shape: bf16[128,128], index: 7, kind: input, shape index: {}]
  %s8 = inlined_call_operand.vmem [shape: f32[1,128], index: 8, kind: input, shape index: {}]
  %s9 = inlined_call_operand.hbm [shape: f32[8,128], index: 9, kind: output, shape index: {}]
  %s10 = sld [smem:[#allocation0]]
  $region66: #{tpu_custom_call.1} parent=0
    _
  %s12 = ssub.s32 1, %s10
  %s13 = scalar_select 0, %s12, %s10
  $region1: #{tpu_custom_call.1} parent=0
    #allocation6 [shape = 'u8[131072]{0}', space=vmem, size = 0x20000, scoped, tag = 'input window, operand 3, single buffered']
    #allocation7 [shape = 's32[1]{0}', space=sflag, size = 0x4, scoped, tag = 'scoped memory for tpu_custom_call.1']
    #allocation8 [shape = 's32[1]{0}', space=sflag, size = 0x4, scoped, tag = 'scoped memory for tpu_custom_call.1']
    #allocation9 [shape = 'u8[131072]{0}', space=vmem, size = 0x20000, scoped, tag = 'input window, operand 4, single buffered']
    #allocation10 [shape = 's32[1]{0}', space=sflag, size = 0x4, scoped, tag = 'scoped memory for tpu_custom_call.1']
    #allocation11 [shape = 'u8[131072]{0}', space=vmem, size = 0x20000, scoped, tag = 'input window, operand 5, single buffered']
    #allocation12 [shape = 'u8[4096]{0}', space=vmem, size = 0x1000, scoped, tag = 'output window, operand 0, single buffered']
    %14 = vsyncpa [#allocation7], 0
    %15 = vsyncpa [#allocation10], 0
    %16 = vsyncpa [#allocation8], 0
    // Predicated region
    $region2: #{tpu_custom_call.1} parent=1 // pred_check
      _
    $region3: #{tpu_custom_call.1} parent=1 // pred_check_branch
      %18 = sbr.rel (0) target = $region5
    $region4: #{tpu_custom_call.1} parent=1 // pred_region
      _
    $region5: #{tpu_custom_call.1} parent=1 // pred_fallthru
      _
    // Predicated region
    $region6: #{tpu_custom_call.1} parent=1 // pred_check
      _
    $region7: #{tpu_custom_call.1} parent=1 // pred_check_branch
      %20 = sbr.rel (0) target = $region9
    $region8: #{tpu_custom_call.1} parent=1 // pred_region
      _
    $region9: #{tpu_custom_call.1} parent=1 // pred_fallthru
      _
    // Predicated region
    $region10: #{tpu_custom_call.1} parent=1 // pred_check
      _
    $region11: #{tpu_custom_call.1} parent=1 // pred_check_branch
      %22 = sbr.rel (0) target = $region13
    $region12: #{tpu_custom_call.1} parent=1 // pred_region
      _
    $region13: #{tpu_custom_call.1} parent=1 // pred_fallthru
      _
    // Predicated region
    $region14: #{tpu_custom_call.1} parent=1 // pred_check
      _
    $region15: #{tpu_custom_call.1} parent=1 // pred_check_branch
      %24 = sbr.rel (0) target = $region17
    $region16: #{tpu_custom_call.1} parent=1 // pred_region
      %s26 = ssub.s32 4096, 4096
      %27 = vsyncadd [#allocation7], %s26
      %s28 = sshll.u32 [#allocation6], 4
      %s29 = int_to_ptr.vmem [resolvable:$true] %s28
      %34 = dma.hbm_to_vmem [thread:$0]  %s3, 4096, %s29, [#allocation7], 256, 256, 16
    $region17: #{tpu_custom_call.1} parent=1 // pred_fallthru
      _
    // Predicated region
    $region18: #{tpu_custom_call.1} parent=1 // pred_check
      _
    $region19: #{tpu_custom_call.1} parent=1 // pred_check_branch
      %36 = sbr.rel (0) target = $region21
    $region20: #{tpu_custom_call.1} parent=1 // pred_region
      %s38 = ssub.s32 4096, 4096
      %39 = vsyncadd [#allocation10], %s38
      %s40 = sshll.u32 [#allocation9], 4
      %s41 = int_to_ptr.vmem [resolvable:$true] %s40
      %46 = dma.hbm_to_vmem [thread:$0]  %s4, 4096, %s41, [#allocation10], 256, 256, 16
    $region21: #{tpu_custom_call.1} parent=1 // pred_fallthru
      _
    // Predicated region
    $region22: #{tpu_custom_call.1} parent=1 // pred_check
      _
    $region23: #{tpu_custom_call.1} parent=1 // pred_check_branch
      %48 = sbr.rel (0) target = $region25
    $region24: #{tpu_custom_call.1} parent=1 // pred_region
      %s50 = ssub.s32 4096, 4096
      %51 = vsyncadd [#allocation10], %s50
      %s52 = sshll.u32 [#allocation11], 4
      %s53 = int_to_ptr.vmem [resolvable:$true] %s52
      %58 = dma.hbm_to_vmem [thread:$0]  %s5, 4096, %s53, [#allocation10], 256, 256, 16
    $region25: #{tpu_custom_call.1} parent=1 // pred_fallthru
      _
    // Predicated region
    $region26: #{tpu_custom_call.1} parent=1 // pred_check
      _
    $region27: #{tpu_custom_call.1} parent=1 // pred_check_branch
      %60 = sbr.rel (0) target = $region29
    $region28: #{tpu_custom_call.1} parent=1 // pred_region
      _
    $region29: #{tpu_custom_call.1} parent=1 // pred_fallthru
      _
    // Predicated region
    $region30: #{tpu_custom_call.1} parent=1 // pred_check
      _
    $region31: #{tpu_custom_call.1} parent=1 // pred_check_branch
      %62 = sbr.rel (0) target = $region33
    $region32: #{tpu_custom_call.1} parent=1 // pred_region
      _
    $region33: #{tpu_custom_call.1} parent=1 // pred_fallthru
      _
    // Predicated region
    $region34: #{tpu_custom_call.1} parent=1 // pred_check
      _
    $region35: #{tpu_custom_call.1} parent=1 // pred_check_branch
      %64 = sbr.rel (0) target = $region37
    $region36: #{tpu_custom_call.1} parent=1 // pred_region
      _
    $region37: #{tpu_custom_call.1} parent=1 // pred_fallthru
      _
    // Predicated region
    $region38: #{tpu_custom_call.1} parent=1 // pred_check
      _
    $region39: #{tpu_custom_call.1} parent=1 // pred_check_branch
      %66 = sbr.rel (0) target = $region41
    $region40: #{tpu_custom_call.1} parent=1 // pred_region
      %67 = dma.done [#allocation7], 4096
    $region41: #{tpu_custom_call.1} parent=1 // pred_fallthru
      _
    // Predicated region
    $region42: #{tpu_custom_call.1} parent=1 // pred_check
      _
    $region43: #{tpu_custom_call.1} parent=1 // pred_check_branch
      %69 = sbr.rel (0) target = $region45
    $region44: #{tpu_custom_call.1} parent=1 // pred_region
      %70 = dma.done [#allocation10], 4096
    $region45: #{tpu_custom_call.1} parent=1 // pred_fallthru
      _
    // Predicated region
    $region46: #{tpu_custom_call.1} parent=1 // pred_check
      _
    $region47: #{tpu_custom_call.1} parent=1 // pred_check_branch
      %72 = sbr.rel (0) target = $region49
    $region48: #{tpu_custom_call.1} parent=1 // pred_region
      %73 = dma.done [#allocation10], 4096
    $region49: #{tpu_custom_call.1} parent=1 // pred_fallthru
      _
    %p75 = scmp.eq.s32.totalorder 0, 0
    // Predicated region
    $region50: #{tpu_custom_call.1} parent=1 // pred_check
      %p76 = pneg %p75
    $region51: #{tpu_custom_call.1} parent=1 // pred_check_branch
      %78 = sbr.rel (%p76) target = $region53
    $region52: #{tpu_custom_call.1} parent=1 // pred_region
      %79 = vst [vmem:[#allocation2] sm:$0xff] 0.0
      %80 = vst [vmem:[#allocation3] sm:$0xff] 0.0
      %81 = vst [vmem:[#allocation4] sm:$0xff] 0.0
      %82 = vst [vmem:[#allocation5] sm:$0xff] 0.0
    $region53: #{tpu_custom_call.1} parent=1 // pred_fallthru
      _
    %v83 = vld [vmem:[%s1] sm:$0xf]
    %v84 = vld [vmem:[%s2] sm:$0xf]
    %v85 = vld [vmem:[%s6] sm:$0xf]
    %v86 = vld [vmem:[#allocation2] sm:$0xff]
    %v87 = vld [vmem:[#allocation3] sm:$0xff]
    %v88 = vld [vmem:[#allocation4] sm:$0xff]
    %v89 = vld [vmem:[#allocation5] sm:$0xff]
    %v90 = vld [vmem:[%s0] sm:$0xff]
    %v91 = vpack.c.bf16 %v86, %v86
    %v92 = vld [vmem:[#allocation6] sm:$0xff]
    %v93 = vld [vmem:[#allocation6 + $0x8] sm:$0xff]
    %v94 = vld [vmem:[#allocation6 + $0x10] sm:$0xff]
    %v95 = vld [vmem:[#allocation6 + $0x18] sm:$0xff]
    %v96 = vld [vmem:[#allocation6 + $0x20] sm:$0xff]
    %v97 = vld [vmem:[#allocation6 + $0x28] sm:$0xff]
    %v98 = vld [vmem:[#allocation6 + $0x30] sm:$0xff]
    %v99 = vld [vmem:[#allocation6 + $0x38] sm:$0xff]
    %v100 = vld [vmem:[#allocation6 + $0x40] sm:$0xff]
    %v101 = vld [vmem:[#allocation6 + $0x48] sm:$0xff]
    %v102 = vld [vmem:[#allocation6 + $0x50] sm:$0xff]
    %v103 = vld [vmem:[#allocation6 + $0x58] sm:$0xff]
    %v104 = vld [vmem:[#allocation6 + $0x60] sm:$0xff]
    %v105 = vld [vmem:[#allocation6 + $0x68] sm:$0xff]
    %v106 = vld [vmem:[#allocation6 + $0x70] sm:$0xff]
    %v107 = vld [vmem:[#allocation6 + $0x78] sm:$0xff]
    %v108 = vld [vmem:[#allocation6 + $0x80] sm:$0xff]
    %v109 = vld [vmem:[#allocation6 + $0x88] sm:$0xff]
    %v110 = vld [vmem:[#allocation6 + $0x90] sm:$0xff]
    %v111 = vld [vmem:[#allocation6 + $0x98] sm:$0xff]
    %v112 = vld [vmem:[#allocation6 + $0xa0] sm:$0xff]
    %v113 = vld [vmem:[#allocation6 + $0xa8] sm:$0xff]
    %v114 = vld [vmem:[#allocation6 + $0xb0] sm:$0xff]
    %v115 = vld [vmem:[#allocation6 + $0xb8] sm:$0xff]
    %v116 = vld [vmem:[#allocation6 + $0xc0] sm:$0xff]
    %v117 = vld [vmem:[#allocation6 + $0xc8] sm:$0xff]
    %v118 = vld [vmem:[#allocation6 + $0xd0] sm:$0xff]
    %v119 = vld [vmem:[#allocation6 + $0xd8] sm:$0xff]
    %v120 = vld [vmem:[#allocation6 + $0xe0] sm:$0xff]
    %v121 = vld [vmem:[#allocation6 + $0xe8] sm:$0xff]
    %v122 = vld [vmem:[#allocation6 + $0xf0] sm:$0xff]
    %v123 = vld [vmem:[#allocation6 + $0xf8] sm:$0xff]
    %v156 = vunpack.c.l.b16 %v92
    %v157 = vunpack.c.h.b16 %v92
    %v158 = vunpack.c.l.b16 %v93
    %v159 = vunpack.c.h.b16 %v93
    %v160 = vunpack.c.l.b16 %v94
    %v161 = vunpack.c.h.b16 %v94
    %v162 = vunpack.c.l.b16 %v95
    %v163 = vunpack.c.h.b16 %v95
    %v164 = vunpack.c.l.b16 %v96
    %v165 = vunpack.c.h.b16 %v96
    %v166 = vunpack.c.l.b16 %v97
    %v167 = vunpack.c.h.b16 %v97
    %v168 = vunpack.c.l.b16 %v98
    %v169 = vunpack.c.h.b16 %v98
    %v170 = vunpack.c.l.b16 %v99
    %v171 = vunpack.c.h.b16 %v99
    %v172 = vunpack.c.l.b16 %v100
    %v173 = vunpack.c.h.b16 %v100
    %v174 = vunpack.c.l.b16 %v101
    %v175 = vunpack.c.h.b16 %v101
    %v176 = vunpack.c.l.b16 %v102
    %v177 = vunpack.c.h.b16 %v102
    %v178 = vunpack.c.l.b16 %v103
    %v179 = vunpack.c.h.b16 %v103
    %v180 = vunpack.c.l.b16 %v104
    %v181 = vunpack.c.h.b16 %v104
    %v182 = vunpack.c.l.b16 %v105
    %v183 = vunpack.c.h.b16 %v105
    %v184 = vunpack.c.l.b16 %v106
    %v185 = vunpack.c.h.b16 %v106
    %v186 = vunpack.c.l.b16 %v107
    %v187 = vunpack.c.h.b16 %v107
    %v188 = vunpack.c.l.b16 %v108
    %v189 = vunpack.c.h.b16 %v108
    %v190 = vunpack.c.l.b16 %v109
    %v191 = vunpack.c.h.b16 %v109
    %v192 = vunpack.c.l.b16 %v110
    %v193 = vunpack.c.h.b16 %v110
    %v194 = vunpack.c.l.b16 %v111
    %v195 = vunpack.c.h.b16 %v111
    %v196 = vunpack.c.l.b16 %v112
    %v197 = vunpack.c.h.b16 %v112
    %v198 = vunpack.c.l.b16 %v113
    %v199 = vunpack.c.h.b16 %v113
    %v200 = vunpack.c.l.b16 %v114
    %v201 = vunpack.c.h.b16 %v114
    %v202 = vunpack.c.l.b16 %v115
    %v203 = vunpack.c.h.b16 %v115
    %v204 = vunpack.c.l.b16 %v116
    %v205 = vunpack.c.h.b16 %v116
    %v206 = vunpack.c.l.b16 %v117
    %v207 = vunpack.c.h.b16 %v117
    %v208 = vunpack.c.l.b16 %v118
    %v209 = vunpack.c.h.b16 %v118
    %v210 = vunpack.c.l.b16 %v119
    %v211 = vunpack.c.h.b16 %v119
    %v212 = vunpack.c.l.b16 %v120
    %v213 = vunpack.c.h.b16 %v120
    %v214 = vunpack.c.l.b16 %v121
    %v215 = vunpack.c.h.b16 %v121
    %v216 = vunpack.c.l.b16 %v122
    %v217 = vunpack.c.h.b16 %v122
    %v218 = vunpack.c.l.b16 %v123
    %v219 = vunpack.c.h.b16 %v123
    %v220 = vpack.c.b16 %v160, %v156
    %v221 = vpack.c.b16 %v161, %v157
    %v222 = vpack.c.b16 %v162, %v158
    %v223 = vpack.c.b16 %v163, %v159
    %v224 = vpack.c.b16 %v168, %v164
    %v225 = vpack.c.b16 %v169, %v165
    %v226 = vpack.c.b16 %v170, %v166
    %v227 = vpack.c.b16 %v171, %v167
    %v228 = vpack.c.b16 %v176, %v172
    %v229 = vpack.c.b16 %v177, %v173
    %v230 = vpack.c.b16 %v178, %v174
    %v231 = vpack.c.b16 %v179, %v175
    %v232 = vpack.c.b16 %v184, %v180
    %v233 = vpack.c.b16 %v185, %v181
    %v234 = vpack.c.b16 %v186, %v182
    %v235 = vpack.c.b16 %v187, %v183
    %v236 = vpack.c.b16 %v192, %v188
    %v237 = vpack.c.b16 %v193, %v189
    %v238 = vpack.c.b16 %v194, %v190
    %v239 = vpack.c.b16 %v195, %v191
    %v240 = vpack.c.b16 %v200, %v196
    %v241 = vpack.c.b16 %v201, %v197
    %v242 = vpack.c.b16 %v202, %v198
    %v243 = vpack.c.b16 %v203, %v199
    %v244 = vpack.c.b16 %v208, %v204
    %v245 = vpack.c.b16 %v209, %v205
    %v246 = vpack.c.b16 %v210, %v206
    %v247 = vpack.c.b16 %v211, %v207
    %v248 = vpack.c.b16 %v216, %v212
    %v249 = vpack.c.b16 %v217, %v213
    %v250 = vpack.c.b16 %v218, %v214
    %v251 = vpack.c.b16 %v219, %v215
    %284 = vmatprep.subr.bf16.mxu0 %v221
    %285 = vmatpush1.bf16.msra.mxu0 %v220
    %286 = vmatprep.subr.bf16.mxu0 %v225
    %287 = vmatpush1.bf16.msra.mxu0 %v224
    %288 = vmatprep.subr.bf16.mxu0 %v229
    %289 = vmatpush1.bf16.msra.mxu0 %v228
    %290 = vmatprep.subr.bf16.mxu0 %v233
    %291 = vmatpush1.bf16.msra.mxu0 %v232
    %292 = vmatprep.subr.bf16.mxu0 %v237
    %293 = vmatpush1.bf16.msra.mxu0 %v236
    %294 = vmatprep.subr.bf16.mxu0 %v241
    %295 = vmatpush1.bf16.msra.mxu0 %v240
    %296 = vmatprep.subr.bf16.mxu0 %v245
    %297 = vmatpush1.bf16.msra.mxu0 %v244
    %298 = vmatprep.subr.bf16.mxu0 %v249
    %299 = vmatpush1.bf16.msra.mxu0 %v248
    %300 = vmatprep.subr.bf16.mxu0 0
    %301 = vmatpush1.bf16.msra.mxu0 0
    %302 = vmatprep.subr.bf16.mxu0 0
    %303 = vmatpush1.bf16.msra.mxu0 0
    %304 = vmatprep.subr.bf16.mxu0 0
    %305 = vmatpush1.bf16.msra.mxu0 0
    %306 = vmatprep.subr.bf16.mxu0 0
    %307 = vmatpush1.bf16.msra.mxu0 0
    %308 = vmatprep.subr.bf16.mxu0 0
    %309 = vmatpush1.bf16.msra.mxu0 0
    %310 = vmatprep.subr.bf16.mxu0 0
    %311 = vmatpush1.bf16.msra.mxu0 0
    %312 = vmatprep.subr.bf16.mxu0 0
    %313 = vmatpush1.bf16.msra.mxu0 0
    %314 = vmatprep.subr.bf16.mxu0 0
    %315 = vmatpush1.bf16.msra.mxu0 0
    %316 = vmatprep.mubr.bf16.mxu0 0
    %317 = vmatmul.mubr.bf16.gmra.mrb[0].mxu0 %v91
    %v318 = vpop.f32.mrb[0].mxu0
    %v319 = vadd.f32 0.0, %v318
    %v320 = vpop.f32.mrb[0].mxu0
    %v321 = vadd.f32 0.0, %v320
    %v322 = vpop.f32.mrb[0].mxu0
    %v323 = vpop.f32.mrb[0].mxu0
    %324 = vdwg.mxu0
    %325 = vmatprep.subr.bf16.mxu0 %v223
    %326 = vmatpush1.bf16.msra.mxu0 %v222
    %327 = vmatprep.subr.bf16.mxu0 %v227
    %328 = vmatpush1.bf16.msra.mxu0 %v226
    %329 = vmatprep.subr.bf16.mxu0 %v231
    %330 = vmatpush1.bf16.msra.mxu0 %v230
    %331 = vmatprep.subr.bf16.mxu0 %v235
    %332 = vmatpush1.bf16.msra.mxu0 %v234
    %333 = vmatprep.subr.bf16.mxu0 %v239
    %334 = vmatpush1.bf16.msra.mxu0 %v238
    %335 = vmatprep.subr.bf16.mxu0 %v243
    %336 = vmatpush1.bf16.msra.mxu0 %v242
    %337 = vmatprep.subr.bf16.mxu0 %v247
    %338 = vmatpush1.bf16.msra.mxu0 %v246
    %339 = vmatprep.subr.bf16.mxu0 %v251
    %340 = vmatpush1.bf16.msra.mxu0 %v250
    %341 = vmatprep.subr.bf16.mxu0 0
    %342 = vmatpush1.bf16.msra.mxu0 0
    %343 = vmatprep.subr.bf16.mxu0 0
    %344 = vmatpush1.bf16.msra.mxu0 0
    %345 = vmatprep.subr.bf16.mxu0 0
    %346 = vmatpush1.bf16.msra.mxu0 0
    %347 = vmatprep.subr.bf16.mxu0 0
    %348 = vmatpush1.bf16.msra.mxu0 0
    %349 = vmatprep.subr.bf16.mxu0 0
    %350 = vmatpush1.bf16.msra.mxu0 0
    %351 = vmatprep.subr.bf16.mxu0 0
    %352 = vmatpush1.bf16.msra.mxu0 0
    %353 = vmatprep.subr.bf16.mxu0 0
    %354 = vmatpush1.bf16.msra.mxu0 0
    %355 = vmatprep.subr.bf16.mxu0 0
    %356 = vmatpush1.bf16.msra.mxu0 0
    %357 = vmatprep.mubr.bf16.mxu0 0
    %358 = vmatmul.mubr.bf16.gmra.mrb[0].mxu0 %v91
    %v359 = vpop.f32.mrb[0].mxu0
    %v360 = vadd.f32 0.0, %v359
    %v361 = vpop.f32.mrb[0].mxu0
    %v362 = vadd.f32 0.0, %v361
    %v363 = vpop.f32.mrb[0].mxu0
    %v364 = vpop.f32.mrb[0].mxu0
    %365 = vdwg.mxu0
    %367 = vset.pattern.permute.xlu0 0
    %368 = vperm.xlu0 %367, %v90
    %v369 = vpop.permute.xlu0 %368
    %v372 = vlaneseq
    %v373 = vshrl.u32 %v372, 7
    %v374 = vsub.s32 0, %v373
    %v375 = vrot.slane %v83, %v374
    %v376 = vlaneseq
    %v377 = vshrl.u32 %v376, 7
    %v378 = vsub.s32 1, %v377
    %v379 = vrot.slane %v83, %v378
    %v380 = vlaneseq
    %v381 = vshrl.u32 %v380, 7
    %v382 = vsub.s32 2, %v381
    %v383 = vrot.slane %v83, %v382
    %v384 = vlaneseq
    %v385 = vshrl.u32 %v384, 7
    %v386 = vsub.s32 3, %v385
    %v387 = vrot.slane %v83, %v386
    %v392 = vmul.f32 %v369, %v375
    %v393 = vmul.f32 %v369, %v379
    %v394 = vmul.f32 %v369, %v383
    %v395 = vmul.f32 %v369, %v387
    %v397 = vlaneseq
    %v398 = vshrl.u32 %v397, 7
    %v399 = vsub.s32 0, %v398
    %v400 = vrot.slane %v84, %v399
    %v401 = vlaneseq
    %v402 = vshrl.u32 %v401, 7
    %v403 = vsub.s32 1, %v402
    %v404 = vrot.slane %v84, %v403
    %v405 = vlaneseq
    %v406 = vshrl.u32 %v405, 7
    %v407 = vsub.s32 2, %v406
    %v408 = vrot.slane %v84, %v407
    %v409 = vlaneseq
    %v410 = vshrl.u32 %v409, 7
    %v411 = vsub.s32 3, %v410
    %v412 = vrot.slane %v84, %v411
    %v417 = vadd.f32 %v392, %v400
    %v418 = vadd.f32 %v393, %v404
    %v419 = vadd.f32 %v394, %v408
    %v420 = vadd.f32 %v395, %v412
    %v421 = vadd.f32 %v417, %v319
    %v422 = vadd.f32 %v418, %v321
    %v423 = vadd.f32 %v419, %v360
    %v424 = vadd.f32 %v420, %v362
    %v425 = vxor.u32 %v421, 2147483648
    %v426 = vxor.u32 %v422, 2147483648
    %v427 = vxor.u32 %v423, 2147483648
    %v428 = vmul.f32 %v425, 1.442695
    %v429 = vpow.pop %v428
    %v430 = vmul.f32 %v426, 1.442695
    %v431 = vpow.pop %v430
    %v432 = vmul.f32 %v427, 1.442695
    %v433 = vpow.pop %v432
    %v434 = vadd.f32 %v429, 1.0
    %v435 = vadd.f32 %v431, 1.0
    %v436 = vadd.f32 %v433, 1.0
    %v437 = vrcp.pop %v434
    %v438 = vmul.f32 1.0, %v437
    %v439 = vrcp.pop %v435
    %v440 = vmul.f32 1.0, %v439
    %v441 = vrcp.pop %v436
    %v442 = vmul.f32 1.0, %v441
    %v443 = vtanh.pop %v424
    %v444 = vmul.f32 %v440, %v87
    %v445 = vmul.f32 %v438, %v443
    %v446 = vadd.f32 %v444, %v445
    %v447 = vtanh.pop %v446
    %v448 = vmul.f32 %v442, %v447
    %v449 = vpack.c.bf16 %v88, %v88
    %v450 = vld [vmem:[#allocation11] sm:$0xff]
    %v451 = vld [vmem:[#allocation11 + $0x8] sm:$0xff]
    %v452 = vld [vmem:[#allocation11 + $0x10] sm:$0xff]
    %v453 = vld [vmem:[#allocation11 + $0x18] sm:$0xff]
    %v454 = vld [vmem:[#allocation11 + $0x20] sm:$0xff]
    %v455 = vld [vmem:[#allocation11 + $0x28] sm:$0xff]
    %v456 = vld [vmem:[#allocation11 + $0x30] sm:$0xff]
    %v457 = vld [vmem:[#allocation11 + $0x38] sm:$0xff]
    %v458 = vld [vmem:[#allocation11 + $0x40] sm:$0xff]
    %v459 = vld [vmem:[#allocation11 + $0x48] sm:$0xff]
    %v460 = vld [vmem:[#allocation11 + $0x50] sm:$0xff]
    %v461 = vld [vmem:[#allocation11 + $0x58] sm:$0xff]
    %v462 = vld [vmem:[#allocation11 + $0x60] sm:$0xff]
    %v463 = vld [vmem:[#allocation11 + $0x68] sm:$0xff]
    %v464 = vld [vmem:[#allocation11 + $0x70] sm:$0xff]
    %v465 = vld [vmem:[#allocation11 + $0x78] sm:$0xff]
    %v466 = vld [vmem:[#allocation11 + $0x80] sm:$0xff]
    %v467 = vld [vmem:[#allocation11 + $0x88] sm:$0xff]
    %v468 = vld [vmem:[#allocation11 + $0x90] sm:$0xff]
    %v469 = vld [vmem:[#allocation11 + $0x98] sm:$0xff]
    %v470 = vld [vmem:[#allocation11 + $0xa0] sm:$0xff]
    %v471 = vld [vmem:[#allocation11 + $0xa8] sm:$0xff]
    %v472 = vld [vmem:[#allocation11 + $0xb0] sm:$0xff]
    %v473 = vld [vmem:[#allocation11 + $0xb8] sm:$0xff]
    %v474 = vld [vmem:[#allocation11 + $0xc0] sm:$0xff]
    %v475 = vld [vmem:[#allocation11 + $0xc8] sm:$0xff]
    %v476 = vld [vmem:[#allocation11 + $0xd0] sm:$0xff]
    %v477 = vld [vmem:[#allocation11 + $0xd8] sm:$0xff]
    %v478 = vld [vmem:[#allocation11 + $0xe0] sm:$0xff]
    %v479 = vld [vmem:[#allocation11 + $0xe8] sm:$0xff]
    %v480 = vld [vmem:[#allocation11 + $0xf0] sm:$0xff]
    %v481 = vld [vmem:[#allocation11 + $0xf8] sm:$0xff]
    %v514 = vunpack.c.l.b16 %v450
    %v515 = vunpack.c.h.b16 %v450
    %v516 = vunpack.c.l.b16 %v451
    %v517 = vunpack.c.h.b16 %v451
    %v518 = vunpack.c.l.b16 %v452
    %v519 = vunpack.c.h.b16 %v452
    %v520 = vunpack.c.l.b16 %v453
    %v521 = vunpack.c.h.b16 %v453
    %v522 = vunpack.c.l.b16 %v454
    %v523 = vunpack.c.h.b16 %v454
    %v524 = vunpack.c.l.b16 %v455
    %v525 = vunpack.c.h.b16 %v455
    %v526 = vunpack.c.l.b16 %v456
    %v527 = vunpack.c.h.b16 %v456
    %v528 = vunpack.c.l.b16 %v457
    %v529 = vunpack.c.h.b16 %v457
    %v530 = vunpack.c.l.b16 %v458
    %v531 = vunpack.c.h.b16 %v458
    %v532 = vunpack.c.l.b16 %v459
    %v533 = vunpack.c.h.b16 %v459
    %v534 = vunpack.c.l.b16 %v460
    %v535 = vunpack.c.h.b16 %v460
    %v536 = vunpack.c.l.b16 %v461
    %v537 = vunpack.c.h.b16 %v461
    %v538 = vunpack.c.l.b16 %v462
    %v539 = vunpack.c.h.b16 %v462
    %v540 = vunpack.c.l.b16 %v463
    %v541 = vunpack.c.h.b16 %v463
    %v542 = vunpack.c.l.b16 %v464
    %v543 = vunpack.c.h.b16 %v464
    %v544 = vunpack.c.l.b16 %v465
    %v545 = vunpack.c.h.b16 %v465
    %v546 = vunpack.c.l.b16 %v466
    %v547 = vunpack.c.h.b16 %v466
    %v548 = vunpack.c.l.b16 %v467
    %v549 = vunpack.c.h.b16 %v467
    %v550 = vunpack.c.l.b16 %v468
    %v551 = vunpack.c.h.b16 %v468
    %v552 = vunpack.c.l.b16 %v469
    %v553 = vunpack.c.h.b16 %v469
    %v554 = vunpack.c.l.b16 %v470
    %v555 = vunpack.c.h.b16 %v470
    %v556 = vunpack.c.l.b16 %v471
    %v557 = vunpack.c.h.b16 %v471
    %v558 = vunpack.c.l.b16 %v472
    %v559 = vunpack.c.h.b16 %v472
    %v560 = vunpack.c.l.b16 %v473
    %v561 = vunpack.c.h.b16 %v473
    %v562 = vunpack.c.l.b16 %v474
    %v563 = vunpack.c.h.b16 %v474
    %v564 = vunpack.c.l.b16 %v475
    %v565 = vunpack.c.h.b16 %v475
    %v566 = vunpack.c.l.b16 %v476
    %v567 = vunpack.c.h.b16 %v476
    %v568 = vunpack.c.l.b16 %v477
    %v569 = vunpack.c.h.b16 %v477
    %v570 = vunpack.c.l.b16 %v478
    %v571 = vunpack.c.h.b16 %v478
    %v572 = vunpack.c.l.b16 %v479
    %v573 = vunpack.c.h.b16 %v479
    %v574 = vunpack.c.l.b16 %v480
    %v575 = vunpack.c.h.b16 %v480
    %v576 = vunpack.c.l.b16 %v481
    %v577 = vunpack.c.h.b16 %v481
    %v578 = vpack.c.b16 %v518, %v514
    %v579 = vpack.c.b16 %v519, %v515
    %v580 = vpack.c.b16 %v520, %v516
    %v581 = vpack.c.b16 %v521, %v517
    %v582 = vpack.c.b16 %v526, %v522
    %v583 = vpack.c.b16 %v527, %v523
    %v584 = vpack.c.b16 %v528, %v524
    %v585 = vpack.c.b16 %v529, %v525
    %v586 = vpack.c.b16 %v534, %v530
    %v587 = vpack.c.b16 %v535, %v531
    %v588 = vpack.c.b16 %v536, %v532
    %v589 = vpack.c.b16 %v537, %v533
    %v590 = vpack.c.b16 %v542, %v538
    %v591 = vpack.c.b16 %v543, %v539
    %v592 = vpack.c.b16 %v544, %v540
    %v593 = vpack.c.b16 %v545, %v541
    %v594 = vpack.c.b16 %v550, %v546
    %v595 = vpack.c.b16 %v551, %v547
    %v596 = vpack.c.b16 %v552, %v548
    %v597 = vpack.c.b16 %v553, %v549
    %v598 = vpack.c.b16 %v558, %v554
    %v599 = vpack.c.b16 %v559, %v555
    %v600 = vpack.c.b16 %v560, %v556
    %v601 = vpack.c.b16 %v561, %v557
    %v602 = vpack.c.b16 %v566, %v562
    %v603 = vpack.c.b16 %v567, %v563
    %v604 = vpack.c.b16 %v568, %v564
    %v605 = vpack.c.b16 %v569, %v565
    %v606 = vpack.c.b16 %v574, %v570
    %v607 = vpack.c.b16 %v575, %v571
    %v608 = vpack.c.b16 %v576, %v572
    %v609 = vpack.c.b16 %v577, %v573
    %642 = vmatprep.subr.bf16.mxu0 %v579
    %643 = vmatpush1.bf16.msra.mxu0 %v578
    %644 = vmatprep.subr.bf16.mxu0 %v583
    %645 = vmatpush1.bf16.msra.mxu0 %v582
    %646 = vmatprep.subr.bf16.mxu0 %v587
    %647 = vmatpush1.bf16.msra.mxu0 %v586
    %648 = vmatprep.subr.bf16.mxu0 %v591
    %649 = vmatpush1.bf16.msra.mxu0 %v590
    %650 = vmatprep.subr.bf16.mxu0 %v595
    %651 = vmatpush1.bf16.msra.mxu0 %v594
    %652 = vmatprep.subr.bf16.mxu0 %v599
    %653 = vmatpush1.bf16.msra.mxu0 %v598
    %654 = vmatprep.subr.bf16.mxu0 %v603
    %655 = vmatpush1.bf16.msra.mxu0 %v602
    %656 = vmatprep.subr.bf16.mxu0 %v607
    %657 = vmatpush1.bf16.msra.mxu0 %v606
    %658 = vmatprep.subr.bf16.mxu0 0
    %659 = vmatpush1.bf16.msra.mxu0 0
    %660 = vmatprep.subr.bf16.mxu0 0
    %661 = vmatpush1.bf16.msra.mxu0 0
    %662 = vmatprep.subr.bf16.mxu0 0
    %663 = vmatpush1.bf16.msra.mxu0 0
    %664 = vmatprep.subr.bf16.mxu0 0
    %665 = vmatpush1.bf16.msra.mxu0 0
    %666 = vmatprep.subr.bf16.mxu0 0
    %667 = vmatpush1.bf16.msra.mxu0 0
    %668 = vmatprep.subr.bf16.mxu0 0
    %669 = vmatpush1.bf16.msra.mxu0 0
    %670 = vmatprep.subr.bf16.mxu0 0
    %671 = vmatpush1.bf16.msra.mxu0 0
    %672 = vmatprep.subr.bf16.mxu0 0
    %673 = vmatpush1.bf16.msra.mxu0 0
    %674 = vmatprep.mubr.bf16.mxu0 0
    %675 = vmatmul.mubr.bf16.gmra.mrb[0].mxu0 %v449
    %v676 = vpop.f32.mrb[0].mxu0
    %v677 = vadd.f32 0.0, %v676
    %v678 = vpop.f32.mrb[0].mxu0
    %v679 = vadd.f32 0.0, %v678
    %v680 = vpop.f32.mrb[0].mxu0
    %v681 = vpop.f32.mrb[0].mxu0
    %682 = vdwg.mxu0
    %683 = vmatprep.subr.bf16.mxu0 %v581
    %684 = vmatpush1.bf16.msra.mxu0 %v580
    %685 = vmatprep.subr.bf16.mxu0 %v585
    %686 = vmatpush1.bf16.msra.mxu0 %v584
    %687 = vmatprep.subr.bf16.mxu0 %v589
    %688 = vmatpush1.bf16.msra.mxu0 %v588
    %689 = vmatprep.subr.bf16.mxu0 %v593
    %690 = vmatpush1.bf16.msra.mxu0 %v592
    %691 = vmatprep.subr.bf16.mxu0 %v597
    %692 = vmatpush1.bf16.msra.mxu0 %v596
    %693 = vmatprep.subr.bf16.mxu0 %v601
    %694 = vmatpush1.bf16.msra.mxu0 %v600
    %695 = vmatprep.subr.bf16.mxu0 %v605
    %696 = vmatpush1.bf16.msra.mxu0 %v604
    %697 = vmatprep.subr.bf16.mxu0 %v609
    %698 = vmatpush1.bf16.msra.mxu0 %v608
    %699 = vmatprep.subr.bf16.mxu0 0
    %700 = vmatpush1.bf16.msra.mxu0 0
    %701 = vmatprep.subr.bf16.mxu0 0
    %702 = vmatpush1.bf16.msra.mxu0 0
    %703 = vmatprep.subr.bf16.mxu0 0
    %704 = vmatpush1.bf16.msra.mxu0 0
    %705 = vmatprep.subr.bf16.mxu0 0
    %706 = vmatpush1.bf16.msra.mxu0 0
    %707 = vmatprep.subr.bf16.mxu0 0
    %708 = vmatpush1.bf16.msra.mxu0 0
    %709 = vmatprep.subr.bf16.mxu0 0
    %710 = vmatpush1.bf16.msra.mxu0 0
    %711 = vmatprep.subr.bf16.mxu0 0
    %712 = vmatpush1.bf16.msra.mxu0 0
    %713 = vmatprep.subr.bf16.mxu0 0
    %714 = vmatpush1.bf16.msra.mxu0 0
    %715 = vmatprep.mubr.bf16.mxu0 0
    %716 = vmatmul.mubr.bf16.gmra.mrb[0].mxu0 %v449
    %v717 = vpop.f32.mrb[0].mxu0
    %v718 = vadd.f32 0.0, %v717
    %v719 = vpop.f32.mrb[0].mxu0
    %v720 = vadd.f32 0.0, %v719
    %v721 = vpop.f32.mrb[0].mxu0
    %v722 = vpop.f32.mrb[0].mxu0
    %723 = vdwg.mxu0
    %v724 = vpack.c.bf16 %v448, %v448
    %v725 = vld [vmem:[#allocation9] sm:$0xff]
    %v726 = vld [vmem:[#allocation9 + $0x8] sm:$0xff]
    %v727 = vld [vmem:[#allocation9 + $0x10] sm:$0xff]
    %v728 = vld [vmem:[#allocation9 + $0x18] sm:$0xff]
    %v729 = vld [vmem:[#allocation9 + $0x20] sm:$0xff]
    %v730 = vld [vmem:[#allocation9 + $0x28] sm:$0xff]
    %v731 = vld [vmem:[#allocation9 + $0x30] sm:$0xff]
    %v732 = vld [vmem:[#allocation9 + $0x38] sm:$0xff]
    %v733 = vld [vmem:[#allocation9 + $0x40] sm:$0xff]
    %v734 = vld [vmem:[#allocation9 + $0x48] sm:$0xff]
    %v735 = vld [vmem:[#allocation9 + $0x50] sm:$0xff]
    %v736 = vld [vmem:[#allocation9 + $0x58] sm:$0xff]
    %v737 = vld [vmem:[#allocation9 + $0x60] sm:$0xff]
    %v738 = vld [vmem:[#allocation9 + $0x68] sm:$0xff]
    %v739 = vld [vmem:[#allocation9 + $0x70] sm:$0xff]
    %v740 = vld [vmem:[#allocation9 + $0x78] sm:$0xff]
    %v741 = vld [vmem:[#allocation9 + $0x80] sm:$0xff]
    %v742 = vld [vmem:[#allocation9 + $0x88] sm:$0xff]
    %v743 = vld [vmem:[#allocation9 + $0x90] sm:$0xff]
    %v744 = vld [vmem:[#allocation9 + $0x98] sm:$0xff]
    %v745 = vld [vmem:[#allocation9 + $0xa0] sm:$0xff]
    %v746 = vld [vmem:[#allocation9 + $0xa8] sm:$0xff]
    %v747 = vld [vmem:[#allocation9 + $0xb0] sm:$0xff]
    %v748 = vld [vmem:[#allocation9 + $0xb8] sm:$0xff]
    %v749 = vld [vmem:[#allocation9 + $0xc0] sm:$0xff]
    %v750 = vld [vmem:[#allocation9 + $0xc8] sm:$0xff]
    %v751 = vld [vmem:[#allocation9 + $0xd0] sm:$0xff]
    %v752 = vld [vmem:[#allocation9 + $0xd8] sm:$0xff]
    %v753 = vld [vmem:[#allocation9 + $0xe0] sm:$0xff]
    %v754 = vld [vmem:[#allocation9 + $0xe8] sm:$0xff]
    %v755 = vld [vmem:[#allocation9 + $0xf0] sm:$0xff]
    %v756 = vld [vmem:[#allocation9 + $0xf8] sm:$0xff]
    %v789 = vunpack.c.l.b16 %v725
    %v790 = vunpack.c.h.b16 %v725
    %v791 = vunpack.c.l.b16 %v726
    %v792 = vunpack.c.h.b16 %v726
    %v793 = vunpack.c.l.b16 %v727
    %v794 = vunpack.c.h.b16 %v727
    %v795 = vunpack.c.l.b16 %v728
    %v796 = vunpack.c.h.b16 %v728
    %v797 = vunpack.c.l.b16 %v729
    %v798 = vunpack.c.h.b16 %v729
    %v799 = vunpack.c.l.b16 %v730
    %v800 = vunpack.c.h.b16 %v730
    %v801 = vunpack.c.l.b16 %v731
    %v802 = vunpack.c.h.b16 %v731
    %v803 = vunpack.c.l.b16 %v732
    %v804 = vunpack.c.h.b16 %v732
    %v805 = vunpack.c.l.b16 %v733
    %v806 = vunpack.c.h.b16 %v733
    %v807 = vunpack.c.l.b16 %v734
    %v808 = vunpack.c.h.b16 %v734
    %v809 = vunpack.c.l.b16 %v735
    %v810 = vunpack.c.h.b16 %v735
    %v811 = vunpack.c.l.b16 %v736
    %v812 = vunpack.c.h.b16 %v736
    %v813 = vunpack.c.l.b16 %v737
    %v814 = vunpack.c.h.b16 %v737
    %v815 = vunpack.c.l.b16 %v738
    %v816 = vunpack.c.h.b16 %v738
    %v817 = vunpack.c.l.b16 %v739
    %v818 = vunpack.c.h.b16 %v739
    %v819 = vunpack.c.l.b16 %v740
    %v820 = vunpack.c.h.b16 %v740
    %v821 = vunpack.c.l.b16 %v741
    %v822 = vunpack.c.h.b16 %v741
    %v823 = vunpack.c.l.b16 %v742
    %v824 = vunpack.c.h.b16 %v742
    %v825 = vunpack.c.l.b16 %v743
    %v826 = vunpack.c.h.b16 %v743
    %v827 = vunpack.c.l.b16 %v744
    %v828 = vunpack.c.h.b16 %v744
    %v829 = vunpack.c.l.b16 %v745
    %v830 = vunpack.c.h.b16 %v745
    %v831 = vunpack.c.l.b16 %v746
    %v832 = vunpack.c.h.b16 %v746
    %v833 = vunpack.c.l.b16 %v747
    %v834 = vunpack.c.h.b16 %v747
    %v835 = vunpack.c.l.b16 %v748
    %v836 = vunpack.c.h.b16 %v748
    %v837 = vunpack.c.l.b16 %v749
    %v838 = vunpack.c.h.b16 %v749
    %v839 = vunpack.c.l.b16 %v750
    %v840 = vunpack.c.h.b16 %v750
    %v841 = vunpack.c.l.b16 %v751
    %v842 = vunpack.c.h.b16 %v751
    %v843 = vunpack.c.l.b16 %v752
    %v844 = vunpack.c.h.b16 %v752
    %v845 = vunpack.c.l.b16 %v753
    %v846 = vunpack.c.h.b16 %v753
    %v847 = vunpack.c.l.b16 %v754
    %v848 = vunpack.c.h.b16 %v754
    %v849 = vunpack.c.l.b16 %v755
    %v850 = vunpack.c.h.b16 %v755
    %v851 = vunpack.c.l.b16 %v756
    %v852 = vunpack.c.h.b16 %v756
    %v853 = vpack.c.b16 %v793, %v789
    %v854 = vpack.c.b16 %v794, %v790
    %v855 = vpack.c.b16 %v795, %v791
    %v856 = vpack.c.b16 %v796, %v792
    %v857 = vpack.c.b16 %v801, %v797
    %v858 = vpack.c.b16 %v802, %v798
    %v859 = vpack.c.b16 %v803, %v799
    %v860 = vpack.c.b16 %v804, %v800
    %v861 = vpack.c.b16 %v809, %v805
    %v862 = vpack.c.b16 %v810, %v806
    %v863 = vpack.c.b16 %v811, %v807
    %v864 = vpack.c.b16 %v812, %v808
    %v865 = vpack.c.b16 %v817, %v813
    %v866 = vpack.c.b16 %v818, %v814
    %v867 = vpack.c.b16 %v819, %v815
    %v868 = vpack.c.b16 %v820, %v816
    %v869 = vpack.c.b16 %v825, %v821
    %v870 = vpack.c.b16 %v826, %v822
    %v871 = vpack.c.b16 %v827, %v823
    %v872 = vpack.c.b16 %v828, %v824
    %v873 = vpack.c.b16 %v833, %v829
    %v874 = vpack.c.b16 %v834, %v830
    %v875 = vpack.c.b16 %v835, %v831
    %v876 = vpack.c.b16 %v836, %v832
    %v877 = vpack.c.b16 %v841, %v837
    %v878 = vpack.c.b16 %v842, %v838
    %v879 = vpack.c.b16 %v843, %v839
    %v880 = vpack.c.b16 %v844, %v840
    %v881 = vpack.c.b16 %v849, %v845
    %v882 = vpack.c.b16 %v850, %v846
    %v883 = vpack.c.b16 %v851, %v847
    %v884 = vpack.c.b16 %v852, %v848
    %917 = vmatprep.subr.bf16.mxu0 %v854
    %918 = vmatpush1.bf16.msra.mxu0 %v853
    %919 = vmatprep.subr.bf16.mxu0 %v858
    %920 = vmatpush1.bf16.msra.mxu0 %v857
    %921 = vmatprep.subr.bf16.mxu0 %v862
    %922 = vmatpush1.bf16.msra.mxu0 %v861
    %923 = vmatprep.subr.bf16.mxu0 %v866
    %924 = vmatpush1.bf16.msra.mxu0 %v865
    %925 = vmatprep.subr.bf16.mxu0 %v870
    %926 = vmatpush1.bf16.msra.mxu0 %v869
    %927 = vmatprep.subr.bf16.mxu0 %v874
    %928 = vmatpush1.bf16.msra.mxu0 %v873
    %929 = vmatprep.subr.bf16.mxu0 %v878
    %930 = vmatpush1.bf16.msra.mxu0 %v877
    %931 = vmatprep.subr.bf16.mxu0 %v882
    %932 = vmatpush1.bf16.msra.mxu0 %v881
    %933 = vmatprep.subr.bf16.mxu0 0
    %934 = vmatpush1.bf16.msra.mxu0 0
    %935 = vmatprep.subr.bf16.mxu0 0
    %936 = vmatpush1.bf16.msra.mxu0 0
    %937 = vmatprep.subr.bf16.mxu0 0
    %938 = vmatpush1.bf16.msra.mxu0 0
    %939 = vmatprep.subr.bf16.mxu0 0
    %940 = vmatpush1.bf16.msra.mxu0 0
    %941 = vmatprep.subr.bf16.mxu0 0
    %942 = vmatpush1.bf16.msra.mxu0 0
    %943 = vmatprep.subr.bf16.mxu0 0
    %944 = vmatpush1.bf16.msra.mxu0 0
    %945 = vmatprep.subr.bf16.mxu0 0
    %946 = vmatpush1.bf16.msra.mxu0 0
    %947 = vmatprep.subr.bf16.mxu0 0
    %948 = vmatpush1.bf16.msra.mxu0 0
    %949 = vmatprep.mubr.bf16.mxu0 0
    %950 = vmatmul.mubr.bf16.gmra.mrb[0].mxu0 %v724
    %v951 = vpop.f32.mrb[0].mxu0
    %v952 = vadd.f32 %v677, %v951
    %v953 = vpop.f32.mrb[0].mxu0
    %v954 = vadd.f32 %v679, %v953
    %v955 = vpop.f32.mrb[0].mxu0
    %v956 = vpop.f32.mrb[0].mxu0
    %957 = vdwg.mxu0
    %958 = vmatprep.subr.bf16.mxu0 %v856
    %959 = vmatpush1.bf16.msra.mxu0 %v855
    %960 = vmatprep.subr.bf16.mxu0 %v860
    %961 = vmatpush1.bf16.msra.mxu0 %v859
    %962 = vmatprep.subr.bf16.mxu0 %v864
    %963 = vmatpush1.bf16.msra.mxu0 %v863
    %964 = vmatprep.subr.bf16.mxu0 %v868
    %965 = vmatpush1.bf16.msra.mxu0 %v867
    %966 = vmatprep.subr.bf16.mxu0 %v872
    %967 = vmatpush1.bf16.msra.mxu0 %v871
    %968 = vmatprep.subr.bf16.mxu0 %v876
    %969 = vmatpush1.bf16.msra.mxu0 %v875
    %970 = vmatprep.subr.bf16.mxu0 %v880
    %971 = vmatpush1.bf16.msra.mxu0 %v879
    %972 = vmatprep.subr.bf16.mxu0 %v884
    %973 = vmatpush1.bf16.msra.mxu0 %v883
    %974 = vmatprep.subr.bf16.mxu0 0
    %975 = vmatpush1.bf16.msra.mxu0 0
    %976 = vmatprep.subr.bf16.mxu0 0
    %977 = vmatpush1.bf16.msra.mxu0 0
    %978 = vmatprep.subr.bf16.mxu0 0
    %979 = vmatpush1.bf16.msra.mxu0 0
    %980 = vmatprep.subr.bf16.mxu0 0
    %981 = vmatpush1.bf16.msra.mxu0 0
    %982 = vmatprep.subr.bf16.mxu0 0
    %983 = vmatpush1.bf16.msra.mxu0 0
    %984 = vmatprep.subr.bf16.mxu0 0
    %985 = vmatpush1.bf16.msra.mxu0 0
    %986 = vmatprep.subr.bf16.mxu0 0
    %987 = vmatpush1.bf16.msra.mxu0 0
    %988 = vmatprep.subr.bf16.mxu0 0
    %989 = vmatpush1.bf16.msra.mxu0 0
    %990 = vmatprep.mubr.bf16.mxu0 0
    %991 = vmatmul.mubr.bf16.gmra.mrb[0].mxu0 %v724
    %v992 = vpop.f32.mrb[0].mxu0
    %v993 = vadd.f32 %v718, %v992
    %v994 = vpop.f32.mrb[0].mxu0
    %v995 = vadd.f32 %v720, %v994
    %v996 = vpop.f32.mrb[0].mxu0
    %v997 = vpop.f32.mrb[0].mxu0
    %998 = vdwg.mxu0
    %v1000 = vlaneseq
    %v1001 = vshrl.u32 %v1000, 7
    %v1002 = vsub.s32 0, %v1001
    %v1003 = vrot.slane %v85, %v1002
    %v1004 = vlaneseq
    %v1005 = vshrl.u32 %v1004, 7
    %v1006 = vsub.s32 1, %v1005
    %v1007 = vrot.slane %v85, %v1006
    %v1008 = vlaneseq
    %v1009 = vshrl.u32 %v1008, 7
    %v1010 = vsub.s32 2, %v1009
    %v1011 = vrot.slane %v85, %v1010
    %v1012 = vlaneseq
    %v1013 = vshrl.u32 %v1012, 7
    %v1014 = vsub.s32 3, %v1013
    %v1015 = vrot.slane %v85, %v1014
    %v1020 = vadd.f32 %v952, %v1003
    %v1021 = vadd.f32 %v954, %v1007
    %v1022 = vadd.f32 %v993, %v1011
    %v1023 = vadd.f32 %v995, %v1015
    %v1024 = vxor.u32 %v1020, 2147483648
    %v1025 = vxor.u32 %v1021, 2147483648
    %v1026 = vxor.u32 %v1022, 2147483648
    %v1027 = vmul.f32 %v1024, 1.442695
    %v1028 = vpow.pop %v1027
    %v1029 = vmul.f32 %v1025, 1.442695
    %v1030 = vpow.pop %v1029
    %v1031 = vmul.f32 %v1026, 1.442695
    %v1032 = vpow.pop %v1031
    %v1033 = vadd.f32 %v1028, 1.0
    %v1034 = vadd.f32 %v1030, 1.0
    %v1035 = vadd.f32 %v1032, 1.0
    %v1036 = vrcp.pop %v1033
    %v1037 = vmul.f32 1.0, %v1036
    %v1038 = vrcp.pop %v1034
    %v1039 = vmul.f32 1.0, %v1038
    %v1040 = vrcp.pop %v1035
    %v1041 = vmul.f32 1.0, %v1040
    %v1042 = vtanh.pop %v1023
    %v1043 = vmul.f32 %v1039, %v89
    %v1044 = vmul.f32 %v1037, %v1042
    %v1045 = vadd.f32 %v1043, %v1044
    %v1046 = vtanh.pop %v1045
    %v1047 = vmul.f32 %v1041, %v1046
    %s1048 = scalar_lea.vmem %s0, 8
    %v1049 = vld [vmem:[%s1048] sm:$0xff]
    %1050 = vmatprep.subr.bf16.mxu0 %v221
    %1051 = vmatpush1.bf16.msra.mxu0 %v220
    %1052 = vmatprep.subr.bf16.mxu0 %v225
    %1053 = vmatpush1.bf16.msra.mxu0 %v224
    %1054 = vmatprep.subr.bf16.mxu0 %v229
    %1055 = vmatpush1.bf16.msra.mxu0 %v228
    %1056 = vmatprep.subr.bf16.mxu0 %v233
    %1057 = vmatpush1.bf16.msra.mxu0 %v232
    %1058 = vmatprep.subr.bf16.mxu0 %v237
    %1059 = vmatpush1.bf16.msra.mxu0 %v236
    %1060 = vmatprep.subr.bf16.mxu0 %v241
    %1061 = vmatpush1.bf16.msra.mxu0 %v240
    %1062 = vmatprep.subr.bf16.mxu0 %v245
    %1063 = vmatpush1.bf16.msra.mxu0 %v244
    %1064 = vmatprep.subr.bf16.mxu0 %v249
    %1065 = vmatpush1.bf16.msra.mxu0 %v248
    %1066 = vmatprep.subr.bf16.mxu0 0
    %1067 = vmatpush1.bf16.msra.mxu0 0
    %1068 = vmatprep.subr.bf16.mxu0 0
    %1069 = vmatpush1.bf16.msra.mxu0 0
    %1070 = vmatprep.subr.bf16.mxu0 0
    %1071 = vmatpush1.bf16.msra.mxu0 0
    %1072 = vmatprep.subr.bf16.mxu0 0
    %1073 = vmatpush1.bf16.msra.mxu0 0
    %1074 = vmatprep.subr.bf16.mxu0 0
    %1075 = vmatpush1.bf16.msra.mxu0 0
    %1076 = vmatprep.subr.bf16.mxu0 0
    %1077 = vmatpush1.bf16.msra.mxu0 0
    %1078 = vmatprep.subr.bf16.mxu0 0
    %1079 = vmatpush1.bf16.msra.mxu0 0
    %1080 = vmatprep.subr.bf16.mxu0 0
    %1081 = vmatpush1.bf16.msra.mxu0 0
    %1082 = vmatprep.mubr.bf16.mxu0 0
    %1083 = vmatmul.mubr.bf16.gmra.mrb[0].mxu0 %v724
    %v1084 = vpop.f32.mrb[0].mxu0
    %v1085 = vadd.f32 0.0, %v1084
    %v1086 = vpop.f32.mrb[0].mxu0
    %v1087 = vadd.f32 0.0, %v1086
    %v1088 = vpop.f32.mrb[0].mxu0
    %v1089 = vpop.f32.mrb[0].mxu0
    %1090 = vdwg.mxu0
    %1091 = vmatprep.subr.bf16.mxu0 %v223
    %1092 = vmatpush1.bf16.msra.mxu0 %v222
    %1093 = vmatprep.subr.bf16.mxu0 %v227
    %1094 = vmatpush1.bf16.msra.mxu0 %v226
    %1095 = vmatprep.subr.bf16.mxu0 %v231
    %1096 = vmatpush1.bf16.msra.mxu0 %v230
    %1097 = vmatprep.subr.bf16.mxu0 %v235
    %1098 = vmatpush1.bf16.msra.mxu0 %v234
    %1099 = vmatprep.subr.bf16.mxu0 %v239
    %1100 = vmatpush1.bf16.msra.mxu0 %v238
    %1101 = vmatprep.subr.bf16.mxu0 %v243
    %1102 = vmatpush1.bf16.msra.mxu0 %v242
    %1103 = vmatprep.subr.bf16.mxu0 %v247
    %1104 = vmatpush1.bf16.msra.mxu0 %v246
    %1105 = vmatprep.subr.bf16.mxu0 %v251
    %1106 = vmatpush1.bf16.msra.mxu0 %v250
    %1107 = vmatprep.subr.bf16.mxu0 0
    %1108 = vmatpush1.bf16.msra.mxu0 0
    %1109 = vmatprep.subr.bf16.mxu0 0
    %1110 = vmatpush1.bf16.msra.mxu0 0
    %1111 = vmatprep.subr.bf16.mxu0 0
    %1112 = vmatpush1.bf16.msra.mxu0 0
    %1113 = vmatprep.subr.bf16.mxu0 0
    %1114 = vmatpush1.bf16.msra.mxu0 0
    %1115 = vmatprep.subr.bf16.mxu0 0
    %1116 = vmatpush1.bf16.msra.mxu0 0
    %1117 = vmatprep.subr.bf16.mxu0 0
    %1118 = vmatpush1.bf16.msra.mxu0 0
    %1119 = vmatprep.subr.bf16.mxu0 0
    %1120 = vmatpush1.bf16.msra.mxu0 0
    %1121 = vmatprep.subr.bf16.mxu0 0
    %1122 = vmatpush1.bf16.msra.mxu0 0
    %1123 = vmatprep.mubr.bf16.mxu0 0
    %1124 = vmatmul.mubr.bf16.gmra.mrb[0].mxu0 %v724
    %v1125 = vpop.f32.mrb[0].mxu0
    %v1126 = vadd.f32 0.0, %v1125
    %v1127 = vpop.f32.mrb[0].mxu0
    %v1128 = vadd.f32 0.0, %v1127
    %v1129 = vpop.f32.mrb[0].mxu0
    %v1130 = vpop.f32.mrb[0].mxu0
    %1131 = vdwg.mxu0
    %1133 = vset.pattern.permute.xlu0 0
    %1134 = vperm.xlu0 %1133, %v1049
    %v1135 = vpop.permute.xlu0 %1134
    %v1137 = vmul.f32 %v1135, %v375
    %v1138 = vmul.f32 %v1135, %v379
    %v1139 = vmul.f32 %v1135, %v383
    %v1140 = vmul.f32 %v1135, %v387
    %v1141 = vadd.f32 %v1137, %v400
    %v1142 = vadd.f32 %v1138, %v404
    %v1143 = vadd.f32 %v1139, %v408
    %v1144 = vadd.f32 %v1140, %v412
    %v1145 = vadd.f32 %v1141, %v1085
    %v1146 = vadd.f32 %v1142, %v1087
    %v1147 = vadd.f32 %v1143, %v1126
    %v1148 = vadd.f32 %v1144, %v1128
    %v1149 = vxor.u32 %v1145, 2147483648
    %v1150 = vxor.u32 %v1146, 2147483648
    %v1151 = vxor.u32 %v1147, 2147483648
    %v1152 = vmul.f32 %v1149, 1.442695
    %v1153 = vpow.pop %v1152
    %v1154 = vmul.f32 %v1150, 1.442695
    %v1155 = vpow.pop %v1154
    %v1156 = vmul.f32 %v1151, 1.442695
    %v1157 = vpow.pop %v1156
    %v1158 = vadd.f32 %v1153, 1.0
    %v1159 = vadd.f32 %v1155, 1.0
    %v1160 = vadd.f32 %v1157, 1.0
    %v1161 = vrcp.pop %v1158
    %v1162 = vmul.f32 1.0, %v1161
    %v1163 = vrcp.pop %v1159
    %v1164 = vmul.f32 1.0, %v1163
    %v1165 = vrcp.pop %v1160
    %v1166 = vmul.f32 1.0, %v1165
    %v1167 = vtanh.pop %v1148
    %v1168 = vmul.f32 %v1164, %v446
    %v1169 = vmul.f32 %v1162, %v1167
    %v1170 = vadd.f32 %v1168, %v1169
    %v1171 = vtanh.pop %v1170
    %v1172 = vmul.f32 %v1166, %v1171
    %v1173 = vpack.c.bf16 %v1047, %v1047
    %1174 = vmatprep.subr.bf16.mxu0 %v579
    %1175 = vmatpush1.bf16.msra.mxu0 %v578
    %1176 = vmatprep.subr.bf16.mxu0 %v583
    %1177 = vmatpush1.bf16.msra.mxu0 %v582
    %1178 = vmatprep.subr.bf16.mxu0 %v587
    %1179 = vmatpush1.bf16.msra.mxu0 %v586
    %1180 = vmatprep.subr.bf16.mxu0 %v591
    %1181 = vmatpush1.bf16.msra.mxu0 %v590
    %1182 = vmatprep.subr.bf16.mxu0 %v595
    %1183 = vmatpush1.bf16.msra.mxu0 %v594
    %1184 = vmatprep.subr.bf16.mxu0 %v599
    %1185 = vmatpush1.bf16.msra.mxu0 %v598
    %1186 = vmatprep.subr.bf16.mxu0 %v603
    %1187 = vmatpush1.bf16.msra.mxu0 %v602
    %1188 = vmatprep.subr.bf16.mxu0 %v607
    %1189 = vmatpush1.bf16.msra.mxu0 %v606
    %1190 = vmatprep.subr.bf16.mxu0 0
    %1191 = vmatpush1.bf16.msra.mxu0 0
    %1192 = vmatprep.subr.bf16.mxu0 0
    %1193 = vmatpush1.bf16.msra.mxu0 0
    %1194 = vmatprep.subr.bf16.mxu0 0
    %1195 = vmatpush1.bf16.msra.mxu0 0
    %1196 = vmatprep.subr.bf16.mxu0 0
    %1197 = vmatpush1.bf16.msra.mxu0 0
    %1198 = vmatprep.subr.bf16.mxu0 0
    %1199 = vmatpush1.bf16.msra.mxu0 0
    %1200 = vmatprep.subr.bf16.mxu0 0
    %1201 = vmatpush1.bf16.msra.mxu0 0
    %1202 = vmatprep.subr.bf16.mxu0 0
    %1203 = vmatpush1.bf16.msra.mxu0 0
    %1204 = vmatprep.subr.bf16.mxu0 0
    %1205 = vmatpush1.bf16.msra.mxu0 0
    %1206 = vmatprep.mubr.bf16.mxu0 0
    %1207 = vmatmul.mubr.bf16.gmra.mrb[0].mxu0 %v1173
    %v1208 = vpop.f32.mrb[0].mxu0
    %v1209 = vadd.f32 0.0, %v1208
    %v1210 = vpop.f32.mrb[0].mxu0
    %v1211 = vadd.f32 0.0, %v1210
    %v1212 = vpop.f32.mrb[0].mxu0
    %v1213 = vpop.f32.mrb[0].mxu0
    %1214 = vdwg.mxu0
    %1215 = vmatprep.subr.bf16.mxu0 %v581
    %1216 = vmatpush1.bf16.msra.mxu0 %v580
    %1217 = vmatprep.subr.bf16.mxu0 %v585
    %1218 = vmatpush1.bf16.msra.mxu0 %v584
    %1219 = vmatprep.subr.bf16.mxu0 %v589
    %1220 = vmatpush1.bf16.msra.mxu0 %v588
    %1221 = vmatprep.subr.bf16.mxu0 %v593
    %1222 = vmatpush1.bf16.msra.mxu0 %v592
    %1223 = vmatprep.subr.bf16.mxu0 %v597
    %1224 = vmatpush1.bf16.msra.mxu0 %v596
    %1225 = vmatprep.subr.bf16.mxu0 %v601
    %1226 = vmatpush1.bf16.msra.mxu0 %v600
    %1227 = vmatprep.subr.bf16.mxu0 %v605
    %1228 = vmatpush1.bf16.msra.mxu0 %v604
    %1229 = vmatprep.subr.bf16.mxu0 %v609
    %1230 = vmatpush1.bf16.msra.mxu0 %v608
    %1231 = vmatprep.subr.bf16.mxu0 0
    %1232 = vmatpush1.bf16.msra.mxu0 0
    %1233 = vmatprep.subr.bf16.mxu0 0
    %1234 = vmatpush1.bf16.msra.mxu0 0
    %1235 = vmatprep.subr.bf16.mxu0 0
    %1236 = vmatpush1.bf16.msra.mxu0 0
    %1237 = vmatprep.subr.bf16.mxu0 0
    %1238 = vmatpush1.bf16.msra.mxu0 0
    %1239 = vmatprep.subr.bf16.mxu0 0
    %1240 = vmatpush1.bf16.msra.mxu0 0
    %1241 = vmatprep.subr.bf16.mxu0 0
    %1242 = vmatpush1.bf16.msra.mxu0 0
    %1243 = vmatprep.subr.bf16.mxu0 0
    %1244 = vmatpush1.bf16.msra.mxu0 0
    %1245 = vmatprep.subr.bf16.mxu0 0
    %1246 = vmatpush1.bf16.msra.mxu0 0
    %1247 = vmatprep.mubr.bf16.mxu0 0
    %1248 = vmatmul.mubr.bf16.gmra.mrb[0].mxu0 %v1173
    %v1249 = vpop.f32.mrb[0].mxu0
    %v1250 = vadd.f32 0.0, %v1249
    %v1251 = vpop.f32.mrb[0].mxu0
    %v1252 = vadd.f32 0.0, %v1251
    %v1253 = vpop.f32.mrb[0].mxu0
    %v1254 = vpop.f32.mrb[0].mxu0
    %1255 = vdwg.mxu0
    %v1256 = vpack.c.bf16 %v1172, %v1172
    %1257 = vmatprep.subr.bf16.mxu0 %v854
    %1258 = vmatpush1.bf16.msra.mxu0 %v853
    %1259 = vmatprep.subr.bf16.mxu0 %v858
    %1260 = vmatpush1.bf16.msra.mxu0 %v857
    %1261 = vmatprep.subr.bf16.mxu0 %v862
    %1262 = vmatpush1.bf16.msra.mxu0 %v861
    %1263 = vmatprep.subr.bf16.mxu0 %v866
    %1264 = vmatpush1.bf16.msra.mxu0 %v865
    %1265 = vmatprep.subr.bf16.mxu0 %v870
    %1266 = vmatpush1.bf16.msra.mxu0 %v869
    %1267 = vmatprep.subr.bf16.mxu0 %v874
    %1268 = vmatpush1.bf16.msra.mxu0 %v873
    %1269 = vmatprep.subr.bf16.mxu0 %v878
    %1270 = vmatpush1.bf16.msra.mxu0 %v877
    %1271 = vmatprep.subr.bf16.mxu0 %v882
    %1272 = vmatpush1.bf16.msra.mxu0 %v881
    %1273 = vmatprep.subr.bf16.mxu0 0
    %1274 = vmatpush1.bf16.msra.mxu0 0
    %1275 = vmatprep.subr.bf16.mxu0 0
    %1276 = vmatpush1.bf16.msra.mxu0 0
    %1277 = vmatprep.subr.bf16.mxu0 0
    %1278 = vmatpush1.bf16.msra.mxu0 0
    %1279 = vmatprep.subr.bf16.mxu0 0
    %1280 = vmatpush1.bf16.msra.mxu0 0
    %1281 = vmatprep.subr.bf16.mxu0 0
    %1282 = vmatpush1.bf16.msra.mxu0 0
    %1283 = vmatprep.subr.bf16.mxu0 0
    %1284 = vmatpush1.bf16.msra.mxu0 0
    %1285 = vmatprep.subr.bf16.mxu0 0
    %1286 = vmatpush1.bf16.msra.mxu0 0
    %1287 = vmatprep.subr.bf16.mxu0 0
    %1288 = vmatpush1.bf16.msra.mxu0 0
    %1289 = vmatprep.mubr.bf16.mxu0 0
    %1290 = vmatmul.mubr.bf16.gmra.mrb[0].mxu0 %v1256
    %v1291 = vpop.f32.mrb[0].mxu0
    %v1292 = vadd.f32 %v1209, %v1291
    %v1293 = vpop.f32.mrb[0].mxu0
    %v1294 = vadd.f32 %v1211, %v1293
    %v1295 = vpop.f32.mrb[0].mxu0
    %v1296 = vpop.f32.mrb[0].mxu0
    %1297 = vdwg.mxu0
    %1298 = vmatprep.subr.bf16.mxu0 %v856
    %1299 = vmatpush1.bf16.msra.mxu0 %v855
    %1300 = vmatprep.subr.bf16.mxu0 %v860
    %1301 = vmatpush1.bf16.msra.mxu0 %v859
    %1302 = vmatprep.subr.bf16.mxu0 %v864
    %1303 = vmatpush1.bf16.msra.mxu0 %v863
    %1304 = vmatprep.subr.bf16.mxu0 %v868
    %1305 = vmatpush1.bf16.msra.mxu0 %v867
    %1306 = vmatprep.subr.bf16.mxu0 %v872
    %1307 = vmatpush1.bf16.msra.mxu0 %v871
    %1308 = vmatprep.subr.bf16.mxu0 %v876
    %1309 = vmatpush1.bf16.msra.mxu0 %v875
    %1310 = vmatprep.subr.bf16.mxu0 %v880
    %1311 = vmatpush1.bf16.msra.mxu0 %v879
    %1312 = vmatprep.subr.bf16.mxu0 %v884
    %1313 = vmatpush1.bf16.msra.mxu0 %v883
    %1314 = vmatprep.subr.bf16.mxu0 0
    %1315 = vmatpush1.bf16.msra.mxu0 0
    %1316 = vmatprep.subr.bf16.mxu0 0
    %1317 = vmatpush1.bf16.msra.mxu0 0
    %1318 = vmatprep.subr.bf16.mxu0 0
    %1319 = vmatpush1.bf16.msra.mxu0 0
    %1320 = vmatprep.subr.bf16.mxu0 0
    %1321 = vmatpush1.bf16.msra.mxu0 0
    %1322 = vmatprep.subr.bf16.mxu0 0
    %1323 = vmatpush1.bf16.msra.mxu0 0
    %1324 = vmatprep.subr.bf16.mxu0 0
    %1325 = vmatpush1.bf16.msra.mxu0 0
    %1326 = vmatprep.subr.bf16.mxu0 0
    %1327 = vmatpush1.bf16.msra.mxu0 0
    %1328 = vmatprep.subr.bf16.mxu0 0
    %1329 = vmatpush1.bf16.msra.mxu0 0
    %1330 = vmatprep.mubr.bf16.mxu0 0
    %1331 = vmatmul.mubr.bf16.gmra.mrb[0].mxu0 %v1256
    %v1332 = vpop.f32.mrb[0].mxu0
    %v1333 = vadd.f32 %v1250, %v1332
    %v1334 = vpop.f32.mrb[0].mxu0
    %v1335 = vadd.f32 %v1252, %v1334
    %v1336 = vpop.f32.mrb[0].mxu0
    %v1337 = vpop.f32.mrb[0].mxu0
    %1338 = vdwg.mxu0
    %v1339 = vadd.f32 %v1292, %v1003
    %v1340 = vadd.f32 %v1294, %v1007
    %v1341 = vadd.f32 %v1333, %v1011
    %v1342 = vadd.f32 %v1335, %v1015
    %v1343 = vxor.u32 %v1339, 2147483648
    %v1344 = vxor.u32 %v1340, 2147483648
    %v1345 = vxor.u32 %v1341, 2147483648
    %v1346 = vmul.f32 %v1343, 1.442695
    %v1347 = vpow.pop %v1346
    %v1348 = vmul.f32 %v1344, 1.442695
    %v1349 = vpow.pop %v1348
    %v1350 = vmul.f32 %v1345, 1.442695
    %v1351 = vpow.pop %v1350
    %v1352 = vadd.f32 %v1347, 1.0
    %v1353 = vadd.f32 %v1349, 1.0
    %v1354 = vadd.f32 %v1351, 1.0
    %v1355 = vrcp.pop %v1352
    %v1356 = vmul.f32 1.0, %v1355
    %v1357 = vrcp.pop %v1353
    %v1358 = vmul.f32 1.0, %v1357
    %v1359 = vrcp.pop %v1354
    %v1360 = vmul.f32 1.0, %v1359
    %v1361 = vtanh.pop %v1342
    %v1362 = vmul.f32 %v1358, %v1045
    %v1363 = vmul.f32 %v1356, %v1361
    %v1364 = vadd.f32 %v1362, %v1363
    %v1365 = vtanh.pop %v1364
    %v1366 = vmul.f32 %v1360, %v1365
    %s1367 = scalar_lea.vmem %s0, 16
    %v1368 = vld [vmem:[%s1367] sm:$0xff]
    %1369 = vmatprep.subr.bf16.mxu0 %v221
    %1370 = vmatpush1.bf16.msra.mxu0 %v220
    %1371 = vmatprep.subr.bf16.mxu0 %v225
    %1372 = vmatpush1.bf16.msra.mxu0 %v224
    %1373 = vmatprep.subr.bf16.mxu0 %v229
    %1374 = vmatpush1.bf16.msra.mxu0 %v228
    %1375 = vmatprep.subr.bf16.mxu0 %v233
    %1376 = vmatpush1.bf16.msra.mxu0 %v232
    %1377 = vmatprep.subr.bf16.mxu0 %v237
    %1378 = vmatpush1.bf16.msra.mxu0 %v236
    %1379 = vmatprep.subr.bf16.mxu0 %v241
    %1380 = vmatpush1.bf16.msra.mxu0 %v240
    %1381 = vmatprep.subr.bf16.mxu0 %v245
    %1382 = vmatpush1.bf16.msra.mxu0 %v244
    %1383 = vmatprep.subr.bf16.mxu0 %v249
    %1384 = vmatpush1.bf16.msra.mxu0 %v248
    %1385 = vmatprep.subr.bf16.mxu0 0
    %1386 = vmatpush1.bf16.msra.mxu0 0
    %1387 = vmatprep.subr.bf16.mxu0 0
    %1388 = vmatpush1.bf16.msra.mxu0 0
    %1389 = vmatprep.subr.bf16.mxu0 0
    %1390 = vmatpush1.bf16.msra.mxu0 0
    %1391 = vmatprep.subr.bf16.mxu0 0
    %1392 = vmatpush1.bf16.msra.mxu0 0
    %1393 = vmatprep.subr.bf16.mxu0 0
    %1394 = vmatpush1.bf16.msra.mxu0 0
    %1395 = vmatprep.subr.bf16.mxu0 0
    %1396 = vmatpush1.bf16.msra.mxu0 0
    %1397 = vmatprep.subr.bf16.mxu0 0
    %1398 = vmatpush1.bf16.msra.mxu0 0
    %1399 = vmatprep.subr.bf16.mxu0 0
    %1400 = vmatpush1.bf16.msra.mxu0 0
    %1401 = vmatprep.mubr.bf16.mxu0 0
    %1402 = vmatmul.mubr.bf16.gmra.mrb[0].mxu0 %v1256
    %v1403 = vpop.f32.mrb[0].mxu0
    %v1404 = vadd.f32 0.0, %v1403
    %v1405 = vpop.f32.mrb[0].mxu0
    %v1406 = vadd.f32 0.0, %v1405
    %v1407 = vpop.f32.mrb[0].mxu0
    %v1408 = vpop.f32.mrb[0].mxu0
    %1409 = vdwg.mxu0
    %1410 = vmatprep.subr.bf16.mxu0 %v223
    %1411 = vmatpush1.bf16.msra.mxu0 %v222
    %1412 = vmatprep.subr.bf16.mxu0 %v227
    %1413 = vmatpush1.bf16.msra.mxu0 %v226
    %1414 = vmatprep.subr.bf16.mxu0 %v231
    %1415 = vmatpush1.bf16.msra.mxu0 %v230
    %1416 = vmatprep.subr.bf16.mxu0 %v235
    %1417 = vmatpush1.bf16.msra.mxu0 %v234
    %1418 = vmatprep.subr.bf16.mxu0 %v239
    %1419 = vmatpush1.bf16.msra.mxu0 %v238
    %1420 = vmatprep.subr.bf16.mxu0 %v243
    %1421 = vmatpush1.bf16.msra.mxu0 %v242
    %1422 = vmatprep.subr.bf16.mxu0 %v247
    %1423 = vmatpush1.bf16.msra.mxu0 %v246
    %1424 = vmatprep.subr.bf16.mxu0 %v251
    %1425 = vmatpush1.bf16.msra.mxu0 %v250
    %1426 = vmatprep.subr.bf16.mxu0 0
    %1427 = vmatpush1.bf16.msra.mxu0 0
    %1428 = vmatprep.subr.bf16.mxu0 0
    %1429 = vmatpush1.bf16.msra.mxu0 0
    %1430 = vmatprep.subr.bf16.mxu0 0
    %1431 = vmatpush1.bf16.msra.mxu0 0
    %1432 = vmatprep.subr.bf16.mxu0 0
    %1433 = vmatpush1.bf16.msra.mxu0 0
    %1434 = vmatprep.subr.bf16.mxu0 0
    %1435 = vmatpush1.bf16.msra.mxu0 0
    %1436 = vmatprep.subr.bf16.mxu0 0
    %1437 = vmatpush1.bf16.msra.mxu0 0
    %1438 = vmatprep.subr.bf16.mxu0 0
    %1439 = vmatpush1.bf16.msra.mxu0 0
    %1440 = vmatprep.subr.bf16.mxu0 0
    %1441 = vmatpush1.bf16.msra.mxu0 0
    %1442 = vmatprep.mubr.bf16.mxu0 0
    %1443 = vmatmul.mubr.bf16.gmra.mrb[0].mxu0 %v1256
    %v1444 = vpop.f32.mrb[0].mxu0
    %v1445 = vadd.f32 0.0, %v1444
    %v1446 = vpop.f32.mrb[0].mxu0
    %v1447 = vadd.f32 0.0, %v1446
    %v1448 = vpop.f32.mrb[0].mxu0
    %v1449 = vpop.f32.mrb[0].mxu0
    %1450 = vdwg.mxu0
    %1452 = vset.pattern.permute.xlu0 0
    %1453 = vperm.xlu0 %1452, %v1368
    %v1454 = vpop.permute.xlu0 %1453
    %v1456 = vmul.f32 %v1454, %v375
    %v1457 = vmul.f32 %v1454, %v379
    %v1458 = vmul.f32 %v1454, %v383
    %v1459 = vmul.f32 %v1454, %v387
    %v1460 = vadd.f32 %v1456, %v400
    %v1461 = vadd.f32 %v1457, %v404
    %v1462 = vadd.f32 %v1458, %v408
    %v1463 = vadd.f32 %v1459, %v412
    %v1464 = vadd.f32 %v1460, %v1404
    %v1465 = vadd.f32 %v1461, %v1406
    %v1466 = vadd.f32 %v1462, %v1445
    %v1467 = vadd.f32 %v1463, %v1447
    %v1468 = vxor.u32 %v1464, 2147483648
    %v1469 = vxor.u32 %v1465, 2147483648
    %v1470 = vxor.u32 %v1466, 2147483648
    %v1471 = vmul.f32 %v1468, 1.442695
    %v1472 = vpow.pop %v1471
    %v1473 = vmul.f32 %v1469, 1.442695
    %v1474 = vpow.pop %v1473
    %v1475 = vmul.f32 %v1470, 1.442695
    %v1476 = vpow.pop %v1475
    %v1477 = vadd.f32 %v1472, 1.0
    %v1478 = vadd.f32 %v1474, 1.0
    %v1479 = vadd.f32 %v1476, 1.0
    %v1480 = vrcp.pop %v1477
    %v1481 = vmul.f32 1.0, %v1480
    %v1482 = vrcp.pop %v1478
    %v1483 = vmul.f32 1.0, %v1482
    %v1484 = vrcp.pop %v1479
    %v1485 = vmul.f32 1.0, %v1484
    %v1486 = vtanh.pop %v1467
    %v1487 = vmul.f32 %v1483, %v1170
    %v1488 = vmul.f32 %v1481, %v1486
    %v1489 = vadd.f32 %v1487, %v1488
    %v1490 = vtanh.pop %v1489
    %v1491 = vmul.f32 %v1485, %v1490
    %v1492 = vpack.c.bf16 %v1366, %v1366
    %1493 = vmatprep.subr.bf16.mxu0 %v579
    %1494 = vmatpush1.bf16.msra.mxu0 %v578
    %1495 = vmatprep.subr.bf16.mxu0 %v583
    %1496 = vmatpush1.bf16.msra.mxu0 %v582
    %1497 = vmatprep.subr.bf16.mxu0 %v587
    %1498 = vmatpush1.bf16.msra.mxu0 %v586
    %1499 = vmatprep.subr.bf16.mxu0 %v591
    %1500 = vmatpush1.bf16.msra.mxu0 %v590
    %1501 = vmatprep.subr.bf16.mxu0 %v595
    %1502 = vmatpush1.bf16.msra.mxu0 %v594
    %1503 = vmatprep.subr.bf16.mxu0 %v599
    %1504 = vmatpush1.bf16.msra.mxu0 %v598
    %1505 = vmatprep.subr.bf16.mxu0 %v603
    %1506 = vmatpush1.bf16.msra.mxu0 %v602
    %1507 = vmatprep.subr.bf16.mxu0 %v607
    %1508 = vmatpush1.bf16.msra.mxu0 %v606
    %1509 = vmatprep.subr.bf16.mxu0 0
    %1510 = vmatpush1.bf16.msra.mxu0 0
    %1511 = vmatprep.subr.bf16.mxu0 0
    %1512 = vmatpush1.bf16.msra.mxu0 0
    %1513 = vmatprep.subr.bf16.mxu0 0
    %1514 = vmatpush1.bf16.msra.mxu0 0
    %1515 = vmatprep.subr.bf16.mxu0 0
    %1516 = vmatpush1.bf16.msra.mxu0 0
    %1517 = vmatprep.subr.bf16.mxu0 0
    %1518 = vmatpush1.bf16.msra.mxu0 0
    %1519 = vmatprep.subr.bf16.mxu0 0
    %1520 = vmatpush1.bf16.msra.mxu0 0
    %1521 = vmatprep.subr.bf16.mxu0 0
    %1522 = vmatpush1.bf16.msra.mxu0 0
    %1523 = vmatprep.subr.bf16.mxu0 0
    %1524 = vmatpush1.bf16.msra.mxu0 0
    %1525 = vmatprep.mubr.bf16.mxu0 0
    %1526 = vmatmul.mubr.bf16.gmra.mrb[0].mxu0 %v1492
    %v1527 = vpop.f32.mrb[0].mxu0
    %v1528 = vadd.f32 0.0, %v1527
    %v1529 = vpop.f32.mrb[0].mxu0
    %v1530 = vadd.f32 0.0, %v1529
    %v1531 = vpop.f32.mrb[0].mxu0
    %v1532 = vpop.f32.mrb[0].mxu0
    %1533 = vdwg.mxu0
    %1534 = vmatprep.subr.bf16.mxu0 %v581
    %1535 = vmatpush1.bf16.msra.mxu0 %v580
    %1536 = vmatprep.subr.bf16.mxu0 %v585
    %1537 = vmatpush1.bf16.msra.mxu0 %v584
    %1538 = vmatprep.subr.bf16.mxu0 %v589
    %1539 = vmatpush1.bf16.msra.mxu0 %v588
    %1540 = vmatprep.subr.bf16.mxu0 %v593
    %1541 = vmatpush1.bf16.msra.mxu0 %v592
    %1542 = vmatprep.subr.bf16.mxu0 %v597
    %1543 = vmatpush1.bf16.msra.mxu0 %v596
    %1544 = vmatprep.subr.bf16.mxu0 %v601
    %1545 = vmatpush1.bf16.msra.mxu0 %v600
    %1546 = vmatprep.subr.bf16.mxu0 %v605
    %1547 = vmatpush1.bf16.msra.mxu0 %v604
    %1548 = vmatprep.subr.bf16.mxu0 %v609
    %1549 = vmatpush1.bf16.msra.mxu0 %v608
    %1550 = vmatprep.subr.bf16.mxu0 0
    %1551 = vmatpush1.bf16.msra.mxu0 0
    %1552 = vmatprep.subr.bf16.mxu0 0
    %1553 = vmatpush1.bf16.msra.mxu0 0
    %1554 = vmatprep.subr.bf16.mxu0 0
    %1555 = vmatpush1.bf16.msra.mxu0 0
    %1556 = vmatprep.subr.bf16.mxu0 0
    %1557 = vmatpush1.bf16.msra.mxu0 0
    %1558 = vmatprep.subr.bf16.mxu0 0
    %1559 = vmatpush1.bf16.msra.mxu0 0
    %1560 = vmatprep.subr.bf16.mxu0 0
    %1561 = vmatpush1.bf16.msra.mxu0 0
    %1562 = vmatprep.subr.bf16.mxu0 0
    %1563 = vmatpush1.bf16.msra.mxu0 0
    %1564 = vmatprep.subr.bf16.mxu0 0
    %1565 = vmatpush1.bf16.msra.mxu0 0
    %1566 = vmatprep.mubr.bf16.mxu0 0
    %1567 = vmatmul.mubr.bf16.gmra.mrb[0].mxu0 %v1492
    %v1568 = vpop.f32.mrb[0].mxu0
    %v1569 = vadd.f32 0.0, %v1568
    %v1570 = vpop.f32.mrb[0].mxu0
    %v1571 = vadd.f32 0.0, %v1570
    %v1572 = vpop.f32.mrb[0].mxu0
    %v1573 = vpop.f32.mrb[0].mxu0
    %1574 = vdwg.mxu0
    %v1575 = vpack.c.bf16 %v1491, %v1491
    %1576 = vmatprep.subr.bf16.mxu0 %v854
    %1577 = vmatpush1.bf16.msra.mxu0 %v853
    %1578 = vmatprep.subr.bf16.mxu0 %v858
    %1579 = vmatpush1.bf16.msra.mxu0 %v857
    %1580 = vmatprep.subr.bf16.mxu0 %v862
    %1581 = vmatpush1.bf16.msra.mxu0 %v861
    %1582 = vmatprep.subr.bf16.mxu0 %v866
    %1583 = vmatpush1.bf16.msra.mxu0 %v865
    %1584 = vmatprep.subr.bf16.mxu0 %v870
    %1585 = vmatpush1.bf16.msra.mxu0 %v869
    %1586 = vmatprep.subr.bf16.mxu0 %v874
    %1587 = vmatpush1.bf16.msra.mxu0 %v873
    %1588 = vmatprep.subr.bf16.mxu0 %v878
    %1589 = vmatpush1.bf16.msra.mxu0 %v877
    %1590 = vmatprep.subr.bf16.mxu0 %v882
    %1591 = vmatpush1.bf16.msra.mxu0 %v881
    %1592 = vmatprep.subr.bf16.mxu0 0
    %1593 = vmatpush1.bf16.msra.mxu0 0
    %1594 = vmatprep.subr.bf16.mxu0 0
    %1595 = vmatpush1.bf16.msra.mxu0 0
    %1596 = vmatprep.subr.bf16.mxu0 0
    %1597 = vmatpush1.bf16.msra.mxu0 0
    %1598 = vmatprep.subr.bf16.mxu0 0
    %1599 = vmatpush1.bf16.msra.mxu0 0
    %1600 = vmatprep.subr.bf16.mxu0 0
    %1601 = vmatpush1.bf16.msra.mxu0 0
    %1602 = vmatprep.subr.bf16.mxu0 0
    %1603 = vmatpush1.bf16.msra.mxu0 0
    %1604 = vmatprep.subr.bf16.mxu0 0
    %1605 = vmatpush1.bf16.msra.mxu0 0
    %1606 = vmatprep.subr.bf16.mxu0 0
    %1607 = vmatpush1.bf16.msra.mxu0 0
    %1608 = vmatprep.mubr.bf16.mxu0 0
    %1609 = vmatmul.mubr.bf16.gmra.mrb[0].mxu0 %v1575
    %v1610 = vpop.f32.mrb[0].mxu0
    %v1611 = vadd.f32 %v1528, %v1610
    %v1612 = vpop.f32.mrb[0].mxu0
    %v1613 = vadd.f32 %v1530, %v1612
    %v1614 = vpop.f32.mrb[0].mxu0
    %v1615 = vpop.f32.mrb[0].mxu0
    %1616 = vdwg.mxu0
    %1617 = vmatprep.subr.bf16.mxu0 %v856
    %1618 = vmatpush1.bf16.msra.mxu0 %v855
    %1619 = vmatprep.subr.bf16.mxu0 %v860
    %1620 = vmatpush1.bf16.msra.mxu0 %v859
    %1621 = vmatprep.subr.bf16.mxu0 %v864
    %1622 = vmatpush1.bf16.msra.mxu0 %v863
    %1623 = vmatprep.subr.bf16.mxu0 %v868
    %1624 = vmatpush1.bf16.msra.mxu0 %v867
    %1625 = vmatprep.subr.bf16.mxu0 %v872
    %1626 = vmatpush1.bf16.msra.mxu0 %v871
    %1627 = vmatprep.subr.bf16.mxu0 %v876
    %1628 = vmatpush1.bf16.msra.mxu0 %v875
    %1629 = vmatprep.subr.bf16.mxu0 %v880
    %1630 = vmatpush1.bf16.msra.mxu0 %v879
    %1631 = vmatprep.subr.bf16.mxu0 %v884
    %1632 = vmatpush1.bf16.msra.mxu0 %v883
    %1633 = vmatprep.subr.bf16.mxu0 0
    %1634 = vmatpush1.bf16.msra.mxu0 0
    %1635 = vmatprep.subr.bf16.mxu0 0
    %1636 = vmatpush1.bf16.msra.mxu0 0
    %1637 = vmatprep.subr.bf16.mxu0 0
    %1638 = vmatpush1.bf16.msra.mxu0 0
    %1639 = vmatprep.subr.bf16.mxu0 0
    %1640 = vmatpush1.bf16.msra.mxu0 0
    %1641 = vmatprep.subr.bf16.mxu0 0
    %1642 = vmatpush1.bf16.msra.mxu0 0
    %1643 = vmatprep.subr.bf16.mxu0 0
    %1644 = vmatpush1.bf16.msra.mxu0 0
    %1645 = vmatprep.subr.bf16.mxu0 0
    %1646 = vmatpush1.bf16.msra.mxu0 0
    %1647 = vmatprep.subr.bf16.mxu0 0
    %1648 = vmatpush1.bf16.msra.mxu0 0
    %1649 = vmatprep.mubr.bf16.mxu0 0
    %1650 = vmatmul.mubr.bf16.gmra.mrb[0].mxu0 %v1575
    %v1651 = vpop.f32.mrb[0].mxu0
    %v1652 = vadd.f32 %v1569, %v1651
    %v1653 = vpop.f32.mrb[0].mxu0
    %v1654 = vadd.f32 %v1571, %v1653
    %v1655 = vpop.f32.mrb[0].mxu0
    %v1656 = vpop.f32.mrb[0].mxu0
    %1657 = vdwg.mxu0
    %v1658 = vadd.f32 %v1611, %v1003
    %v1659 = vadd.f32 %v1613, %v1007
    %v1660 = vadd.f32 %v1652, %v1011
    %v1661 = vadd.f32 %v1654, %v1015
    %v1662 = vxor.u32 %v1658, 2147483648
    %v1663 = vxor.u32 %v1659, 2147483648
    %v1664 = vxor.u32 %v1660, 2147483648
    %v1665 = vmul.f32 %v1662, 1.442695
    %v1666 = vpow.pop %v1665
    %v1667 = vmul.f32 %v1663, 1.442695
    %v1668 = vpow.pop %v1667
    %v1669 = vmul.f32 %v1664, 1.442695
    %v1670 = vpow.pop %v1669
    %v1671 = vadd.f32 %v1666, 1.0
    %v1672 = vadd.f32 %v1668, 1.0
    %v1673 = vadd.f32 %v1670, 1.0
    %v1674 = vrcp.pop %v1671
    %v1675 = vmul.f32 1.0, %v1674
    %v1676 = vrcp.pop %v1672
    %v1677 = vmul.f32 1.0, %v1676
    %v1678 = vrcp.pop %v1673
    %v1679 = vmul.f32 1.0, %v1678
    %v1680 = vtanh.pop %v1661
    %v1681 = vmul.f32 %v1677, %v1364
    %v1682 = vmul.f32 %v1675, %v1680
    %v1683 = vadd.f32 %v1681, %v1682
    %v1684 = vtanh.pop %v1683
    %v1685 = vmul.f32 %v1679, %v1684
    %s1686 = scalar_lea.vmem %s0, 24
    %v1687 = vld [vmem:[%s1686] sm:$0xff]
    %1688 = vmatprep.subr.bf16.mxu0 %v221
    %1689 = vmatpush1.bf16.msra.mxu0 %v220
    %1690 = vmatprep.subr.bf16.mxu0 %v225
    %1691 = vmatpush1.bf16.msra.mxu0 %v224
    %1692 = vmatprep.subr.bf16.mxu0 %v229
    %1693 = vmatpush1.bf16.msra.mxu0 %v228
    %1694 = vmatprep.subr.bf16.mxu0 %v233
    %1695 = vmatpush1.bf16.msra.mxu0 %v232
    %1696 = vmatprep.subr.bf16.mxu0 %v237
    %1697 = vmatpush1.bf16.msra.mxu0 %v236
    %1698 = vmatprep.subr.bf16.mxu0 %v241
    %1699 = vmatpush1.bf16.msra.mxu0 %v240
    %1700 = vmatprep.subr.bf16.mxu0 %v245
    %1701 = vmatpush1.bf16.msra.mxu0 %v244
    %1702 = vmatprep.subr.bf16.mxu0 %v249
    %1703 = vmatpush1.bf16.msra.mxu0 %v248
    %1704 = vmatprep.subr.bf16.mxu0 0
    %1705 = vmatpush1.bf16.msra.mxu0 0
    %1706 = vmatprep.subr.bf16.mxu0 0
    %1707 = vmatpush1.bf16.msra.mxu0 0
    %1708 = vmatprep.subr.bf16.mxu0 0
    %1709 = vmatpush1.bf16.msra.mxu0 0
    %1710 = vmatprep.subr.bf16.mxu0 0
    %1711 = vmatpush1.bf16.msra.mxu0 0
    %1712 = vmatprep.subr.bf16.mxu0 0
    %1713 = vmatpush1.bf16.msra.mxu0 0
    %1714 = vmatprep.subr.bf16.mxu0 0
    %1715 = vmatpush1.bf16.msra.mxu0 0
    %1716 = vmatprep.subr.bf16.mxu0 0
    %1717 = vmatpush1.bf16.msra.mxu0 0
    %1718 = vmatprep.subr.bf16.mxu0 0
    %1719 = vmatpush1.bf16.msra.mxu0 0
    %1720 = vmatprep.mubr.bf16.mxu0 0
    %1721 = vmatmul.mubr.bf16.gmra.mrb[0].mxu0 %v1575
    %v1722 = vpop.f32.mrb[0].mxu0
    %v1723 = vadd.f32 0.0, %v1722
    %v1724 = vpop.f32.mrb[0].mxu0
    %v1725 = vadd.f32 0.0, %v1724
    %v1726 = vpop.f32.mrb[0].mxu0
    %v1727 = vpop.f32.mrb[0].mxu0
    %1728 = vdwg.mxu0
    %1729 = vmatprep.subr.bf16.mxu0 %v223
    %1730 = vmatpush1.bf16.msra.mxu0 %v222
    %1731 = vmatprep.subr.bf16.mxu0 %v227
    %1732 = vmatpush1.bf16.msra.mxu0 %v226
    %1733 = vmatprep.subr.bf16.mxu0 %v231
    %1734 = vmatpush1.bf16.msra.mxu0 %v230
    %1735 = vmatprep.subr.bf16.mxu0 %v235
    %1736 = vmatpush1.bf16.msra.mxu0 %v234
    %1737 = vmatprep.subr.bf16.mxu0 %v239
    %1738 = vmatpush1.bf16.msra.mxu0 %v238
    %1739 = vmatprep.subr.bf16.mxu0 %v243
    %1740 = vmatpush1.bf16.msra.mxu0 %v242
    %1741 = vmatprep.subr.bf16.mxu0 %v247
    %1742 = vmatpush1.bf16.msra.mxu0 %v246
    %1743 = vmatprep.subr.bf16.mxu0 %v251
    %1744 = vmatpush1.bf16.msra.mxu0 %v250
    %1745 = vmatprep.subr.bf16.mxu0 0
    %1746 = vmatpush1.bf16.msra.mxu0 0
    %1747 = vmatprep.subr.bf16.mxu0 0
    %1748 = vmatpush1.bf16.msra.mxu0 0
    %1749 = vmatprep.subr.bf16.mxu0 0
    %1750 = vmatpush1.bf16.msra.mxu0 0
    %1751 = vmatprep.subr.bf16.mxu0 0
    %1752 = vmatpush1.bf16.msra.mxu0 0
    %1753 = vmatprep.subr.bf16.mxu0 0
    %1754 = vmatpush1.bf16.msra.mxu0 0
    %1755 = vmatprep.subr.bf16.mxu0 0
    %1756 = vmatpush1.bf16.msra.mxu0 0
    %1757 = vmatprep.subr.bf16.mxu0 0
    %1758 = vmatpush1.bf16.msra.mxu0 0
    %1759 = vmatprep.subr.bf16.mxu0 0
    %1760 = vmatpush1.bf16.msra.mxu0 0
    %1761 = vmatprep.mubr.bf16.mxu0 0
    %1762 = vmatmul.mubr.bf16.gmra.mrb[0].mxu0 %v1575
    %v1763 = vpop.f32.mrb[0].mxu0
    %v1764 = vadd.f32 0.0, %v1763
    %v1765 = vpop.f32.mrb[0].mxu0
    %v1766 = vadd.f32 0.0, %v1765
    %v1767 = vpop.f32.mrb[0].mxu0
    %v1768 = vpop.f32.mrb[0].mxu0
    %1769 = vdwg.mxu0
    %1771 = vset.pattern.permute.xlu0 0
    %1772 = vperm.xlu0 %1771, %v1687
    %v1773 = vpop.permute.xlu0 %1772
    %v1775 = vmul.f32 %v1773, %v375
    %v1776 = vmul.f32 %v1773, %v379
    %v1777 = vmul.f32 %v1773, %v383
    %v1778 = vmul.f32 %v1773, %v387
    %v1779 = vadd.f32 %v1775, %v400
    %v1780 = vadd.f32 %v1776, %v404
    %v1781 = vadd.f32 %v1777, %v408
    %v1782 = vadd.f32 %v1778, %v412
    %v1783 = vadd.f32 %v1779, %v1723
    %v1784 = vadd.f32 %v1780, %v1725
    %v1785 = vadd.f32 %v1781, %v1764
    %v1786 = vadd.f32 %v1782, %v1766
    %v1787 = vxor.u32 %v1783, 2147483648
    %v1788 = vxor.u32 %v1784, 2147483648
    %v1789 = vxor.u32 %v1785, 2147483648
    %v1790 = vmul.f32 %v1787, 1.442695
    %v1791 = vpow.pop %v1790
    %v1792 = vmul.f32 %v1788, 1.442695
    %v1793 = vpow.pop %v1792
    %v1794 = vmul.f32 %v1789, 1.442695
    %v1795 = vpow.pop %v1794
    %v1796 = vadd.f32 %v1791, 1.0
    %v1797 = vadd.f32 %v1793, 1.0
    %v1798 = vadd.f32 %v1795, 1.0
    %v1799 = vrcp.pop %v1796
    %v1800 = vmul.f32 1.0, %v1799
    %v1801 = vrcp.pop %v1797
    %v1802 = vmul.f32 1.0, %v1801
    %v1803 = vrcp.pop %v1798
    %v1804 = vmul.f32 1.0, %v1803
    %v1805 = vtanh.pop %v1786
    %v1806 = vmul.f32 %v1802, %v1489
    %v1807 = vmul.f32 %v1800, %v1805
    %v1808 = vadd.f32 %v1806, %v1807
    %v1809 = vtanh.pop %v1808
    %v1810 = vmul.f32 %v1804, %v1809
    %v1811 = vpack.c.bf16 %v1685, %v1685
    %1812 = vmatprep.subr.bf16.mxu0 %v579
    %1813 = vmatpush1.bf16.msra.mxu0 %v578
    %1814 = vmatprep.subr.bf16.mxu0 %v583
    %1815 = vmatpush1.bf16.msra.mxu0 %v582
    %1816 = vmatprep.subr.bf16.mxu0 %v587
    %1817 = vmatpush1.bf16.msra.mxu0 %v586
    %1818 = vmatprep.subr.bf16.mxu0 %v591
    %1819 = vmatpush1.bf16.msra.mxu0 %v590
    %1820 = vmatprep.subr.bf16.mxu0 %v595
    %1821 = vmatpush1.bf16.msra.mxu0 %v594
    %1822 = vmatprep.subr.bf16.mxu0 %v599
    %1823 = vmatpush1.bf16.msra.mxu0 %v598
    %1824 = vmatprep.subr.bf16.mxu0 %v603
    %1825 = vmatpush1.bf16.msra.mxu0 %v602
    %1826 = vmatprep.subr.bf16.mxu0 %v607
    %1827 = vmatpush1.bf16.msra.mxu0 %v606
    %1828 = vmatprep.subr.bf16.mxu0 0
    %1829 = vmatpush1.bf16.msra.mxu0 0
    %1830 = vmatprep.subr.bf16.mxu0 0
    %1831 = vmatpush1.bf16.msra.mxu0 0
    %1832 = vmatprep.subr.bf16.mxu0 0
    %1833 = vmatpush1.bf16.msra.mxu0 0
    %1834 = vmatprep.subr.bf16.mxu0 0
    %1835 = vmatpush1.bf16.msra.mxu0 0
    %1836 = vmatprep.subr.bf16.mxu0 0
    %1837 = vmatpush1.bf16.msra.mxu0 0
    %1838 = vmatprep.subr.bf16.mxu0 0
    %1839 = vmatpush1.bf16.msra.mxu0 0
    %1840 = vmatprep.subr.bf16.mxu0 0
    %1841 = vmatpush1.bf16.msra.mxu0 0
    %1842 = vmatprep.subr.bf16.mxu0 0
    %1843 = vmatpush1.bf16.msra.mxu0 0
    %1844 = vmatprep.mubr.bf16.mxu0 0
    %1845 = vmatmul.mubr.bf16.gmra.mrb[0].mxu0 %v1811
    %v1846 = vpop.f32.mrb[0].mxu0
    %v1847 = vadd.f32 0.0, %v1846
    %v1848 = vpop.f32.mrb[0].mxu0
    %v1849 = vadd.f32 0.0, %v1848
    %v1850 = vpop.f32.mrb[0].mxu0
    %v1851 = vpop.f32.mrb[0].mxu0
    %1852 = vdwg.mxu0
    %1853 = vmatprep.subr.bf16.mxu0 %v581
    %1854 = vmatpush1.bf16.msra.mxu0 %v580
    %1855 = vmatprep.subr.bf16.mxu0 %v585
    %1856 = vmatpush1.bf16.msra.mxu0 %v584
    %1857 = vmatprep.subr.bf16.mxu0 %v589
    %1858 = vmatpush1.bf16.msra.mxu0 %v588
    %1859 = vmatprep.subr.bf16.mxu0 %v593
    %1860 = vmatpush1.bf16.msra.mxu0 %v592
    %1861 = vmatprep.subr.bf16.mxu0 %v597
    %1862 = vmatpush1.bf16.msra.mxu0 %v596
    %1863 = vmatprep.subr.bf16.mxu0 %v601
    %1864 = vmatpush1.bf16.msra.mxu0 %v600
    %1865 = vmatprep.subr.bf16.mxu0 %v605
    %1866 = vmatpush1.bf16.msra.mxu0 %v604
    %1867 = vmatprep.subr.bf16.mxu0 %v609
    %1868 = vmatpush1.bf16.msra.mxu0 %v608
    %1869 = vmatprep.subr.bf16.mxu0 0
    %1870 = vmatpush1.bf16.msra.mxu0 0
    %1871 = vmatprep.subr.bf16.mxu0 0
    %1872 = vmatpush1.bf16.msra.mxu0 0
    %1873 = vmatprep.subr.bf16.mxu0 0
    %1874 = vmatpush1.bf16.msra.mxu0 0
    %1875 = vmatprep.subr.bf16.mxu0 0
    %1876 = vmatpush1.bf16.msra.mxu0 0
    %1877 = vmatprep.subr.bf16.mxu0 0
    %1878 = vmatpush1.bf16.msra.mxu0 0
    %1879 = vmatprep.subr.bf16.mxu0 0
    %1880 = vmatpush1.bf16.msra.mxu0 0
    %1881 = vmatprep.subr.bf16.mxu0 0
    %1882 = vmatpush1.bf16.msra.mxu0 0
    %1883 = vmatprep.subr.bf16.mxu0 0
    %1884 = vmatpush1.bf16.msra.mxu0 0
    %1885 = vmatprep.mubr.bf16.mxu0 0
    %1886 = vmatmul.mubr.bf16.gmra.mrb[0].mxu0 %v1811
    %v1887 = vpop.f32.mrb[0].mxu0
    %v1888 = vadd.f32 0.0, %v1887
    %v1889 = vpop.f32.mrb[0].mxu0
    %v1890 = vadd.f32 0.0, %v1889
    %v1891 = vpop.f32.mrb[0].mxu0
    %v1892 = vpop.f32.mrb[0].mxu0
    %1893 = vdwg.mxu0
    %v1894 = vpack.c.bf16 %v1810, %v1810
    %1895 = vmatprep.subr.bf16.mxu0 %v854
    %1896 = vmatpush1.bf16.msra.mxu0 %v853
    %1897 = vmatprep.subr.bf16.mxu0 %v858
    %1898 = vmatpush1.bf16.msra.mxu0 %v857
    %1899 = vmatprep.subr.bf16.mxu0 %v862
    %1900 = vmatpush1.bf16.msra.mxu0 %v861
    %1901 = vmatprep.subr.bf16.mxu0 %v866
    %1902 = vmatpush1.bf16.msra.mxu0 %v865
    %1903 = vmatprep.subr.bf16.mxu0 %v870
    %1904 = vmatpush1.bf16.msra.mxu0 %v869
    %1905 = vmatprep.subr.bf16.mxu0 %v874
    %1906 = vmatpush1.bf16.msra.mxu0 %v873
    %1907 = vmatprep.subr.bf16.mxu0 %v878
    %1908 = vmatpush1.bf16.msra.mxu0 %v877
    %1909 = vmatprep.subr.bf16.mxu0 %v882
    %1910 = vmatpush1.bf16.msra.mxu0 %v881
    %1911 = vmatprep.subr.bf16.mxu0 0
    %1912 = vmatpush1.bf16.msra.mxu0 0
    %1913 = vmatprep.subr.bf16.mxu0 0
    %1914 = vmatpush1.bf16.msra.mxu0 0
    %1915 = vmatprep.subr.bf16.mxu0 0
    %1916 = vmatpush1.bf16.msra.mxu0 0
    %1917 = vmatprep.subr.bf16.mxu0 0
    %1918 = vmatpush1.bf16.msra.mxu0 0
    %1919 = vmatprep.subr.bf16.mxu0 0
    %1920 = vmatpush1.bf16.msra.mxu0 0
    %1921 = vmatprep.subr.bf16.mxu0 0
    %1922 = vmatpush1.bf16.msra.mxu0 0
    %1923 = vmatprep.subr.bf16.mxu0 0
    %1924 = vmatpush1.bf16.msra.mxu0 0
    %1925 = vmatprep.subr.bf16.mxu0 0
    %1926 = vmatpush1.bf16.msra.mxu0 0
    %1927 = vmatprep.mubr.bf16.mxu0 0
    %1928 = vmatmul.mubr.bf16.gmra.mrb[0].mxu0 %v1894
    %v1929 = vpop.f32.mrb[0].mxu0
    %v1930 = vadd.f32 %v1847, %v1929
    %v1931 = vpop.f32.mrb[0].mxu0
    %v1932 = vadd.f32 %v1849, %v1931
    %v1933 = vpop.f32.mrb[0].mxu0
    %v1934 = vpop.f32.mrb[0].mxu0
    %1935 = vdwg.mxu0
    %1936 = vmatprep.subr.bf16.mxu0 %v856
    %1937 = vmatpush1.bf16.msra.mxu0 %v855
    %1938 = vmatprep.subr.bf16.mxu0 %v860
    %1939 = vmatpush1.bf16.msra.mxu0 %v859
    %1940 = vmatprep.subr.bf16.mxu0 %v864
    %1941 = vmatpush1.bf16.msra.mxu0 %v863
    %1942 = vmatprep.subr.bf16.mxu0 %v868
    %1943 = vmatpush1.bf16.msra.mxu0 %v867
    %1944 = vmatprep.subr.bf16.mxu0 %v872
    %1945 = vmatpush1.bf16.msra.mxu0 %v871
    %1946 = vmatprep.subr.bf16.mxu0 %v876
    %1947 = vmatpush1.bf16.msra.mxu0 %v875
    %1948 = vmatprep.subr.bf16.mxu0 %v880
    %1949 = vmatpush1.bf16.msra.mxu0 %v879
    %1950 = vmatprep.subr.bf16.mxu0 %v884
    %1951 = vmatpush1.bf16.msra.mxu0 %v883
    %1952 = vmatprep.subr.bf16.mxu0 0
    %1953 = vmatpush1.bf16.msra.mxu0 0
    %1954 = vmatprep.subr.bf16.mxu0 0
    %1955 = vmatpush1.bf16.msra.mxu0 0
    %1956 = vmatprep.subr.bf16.mxu0 0
    %1957 = vmatpush1.bf16.msra.mxu0 0
    %1958 = vmatprep.subr.bf16.mxu0 0
    %1959 = vmatpush1.bf16.msra.mxu0 0
    %1960 = vmatprep.subr.bf16.mxu0 0
    %1961 = vmatpush1.bf16.msra.mxu0 0
    %1962 = vmatprep.subr.bf16.mxu0 0
    %1963 = vmatpush1.bf16.msra.mxu0 0
    %1964 = vmatprep.subr.bf16.mxu0 0
    %1965 = vmatpush1.bf16.msra.mxu0 0
    %1966 = vmatprep.subr.bf16.mxu0 0
    %1967 = vmatpush1.bf16.msra.mxu0 0
    %1968 = vmatprep.mubr.bf16.mxu0 0
    %1969 = vmatmul.mubr.bf16.gmra.mrb[0].mxu0 %v1894
    %v1970 = vpop.f32.mrb[0].mxu0
    %v1971 = vadd.f32 %v1888, %v1970
    %v1972 = vpop.f32.mrb[0].mxu0
    %v1973 = vadd.f32 %v1890, %v1972
    %v1974 = vpop.f32.mrb[0].mxu0
    %v1975 = vpop.f32.mrb[0].mxu0
    %1976 = vdwg.mxu0
    %v1977 = vadd.f32 %v1930, %v1003
    %v1978 = vadd.f32 %v1932, %v1007
    %v1979 = vadd.f32 %v1971, %v1011
    %v1980 = vadd.f32 %v1973, %v1015
    %v1981 = vxor.u32 %v1977, 2147483648
    %v1982 = vxor.u32 %v1978, 2147483648
    %v1983 = vxor.u32 %v1979, 2147483648
    %v1984 = vmul.f32 %v1981, 1.442695
    %v1985 = vpow.pop %v1984
    %v1986 = vmul.f32 %v1982, 1.442695
    %v1987 = vpow.pop %v1986
    %v1988 = vmul.f32 %v1983, 1.442695
    %v1989 = vpow.pop %v1988
    %v1990 = vadd.f32 %v1985, 1.0
    %v1991 = vadd.f32 %v1987, 1.0
    %v1992 = vadd.f32 %v1989, 1.0
    %v1993 = vrcp.pop %v1990
    %v1994 = vmul.f32 1.0, %v1993
    %v1995 = vrcp.pop %v1991
    %v1996 = vmul.f32 1.0, %v1995
    %v1997 = vrcp.pop %v1992
    %v1998 = vmul.f32 1.0, %v1997
    %v1999 = vtanh.pop %v1980
    %v2000 = vmul.f32 %v1996, %v1683
    %v2001 = vmul.f32 %v1994, %v1999
    %v2002 = vadd.f32 %v2000, %v2001
    %v2003 = vtanh.pop %v2002
    %v2004 = vmul.f32 %v1998, %v2003
    %s2005 = scalar_lea.vmem %s0, 32
    %v2006 = vld [vmem:[%s2005] sm:$0xff]
    %2007 = vmatprep.subr.bf16.mxu0 %v221
    %2008 = vmatpush1.bf16.msra.mxu0 %v220
    %2009 = vmatprep.subr.bf16.mxu0 %v225
    %2010 = vmatpush1.bf16.msra.mxu0 %v224
    %2011 = vmatprep.subr.bf16.mxu0 %v229
    %2012 = vmatpush1.bf16.msra.mxu0 %v228
    %2013 = vmatprep.subr.bf16.mxu0 %v233
    %2014 = vmatpush1.bf16.msra.mxu0 %v232
    %2015 = vmatprep.subr.bf16.mxu0 %v237
    %2016 = vmatpush1.bf16.msra.mxu0 %v236
    %2017 = vmatprep.subr.bf16.mxu0 %v241
    %2018 = vmatpush1.bf16.msra.mxu0 %v240
    %2019 = vmatprep.subr.bf16.mxu0 %v245
    %2020 = vmatpush1.bf16.msra.mxu0 %v244
    %2021 = vmatprep.subr.bf16.mxu0 %v249
    %2022 = vmatpush1.bf16.msra.mxu0 %v248
    %2023 = vmatprep.subr.bf16.mxu0 0
    %2024 = vmatpush1.bf16.msra.mxu0 0
    %2025 = vmatprep.subr.bf16.mxu0 0
    %2026 = vmatpush1.bf16.msra.mxu0 0
    %2027 = vmatprep.subr.bf16.mxu0 0
    %2028 = vmatpush1.bf16.msra.mxu0 0
    %2029 = vmatprep.subr.bf16.mxu0 0
    %2030 = vmatpush1.bf16.msra.mxu0 0
    %2031 = vmatprep.subr.bf16.mxu0 0
    %2032 = vmatpush1.bf16.msra.mxu0 0
    %2033 = vmatprep.subr.bf16.mxu0 0
    %2034 = vmatpush1.bf16.msra.mxu0 0
    %2035 = vmatprep.subr.bf16.mxu0 0
    %2036 = vmatpush1.bf16.msra.mxu0 0
    %2037 = vmatprep.subr.bf16.mxu0 0
    %2038 = vmatpush1.bf16.msra.mxu0 0
    %2039 = vmatprep.mubr.bf16.mxu0 0
    %2040 = vmatmul.mubr.bf16.gmra.mrb[0].mxu0 %v1894
    %v2041 = vpop.f32.mrb[0].mxu0
    %v2042 = vadd.f32 0.0, %v2041
    %v2043 = vpop.f32.mrb[0].mxu0
    %v2044 = vadd.f32 0.0, %v2043
    %v2045 = vpop.f32.mrb[0].mxu0
    %v2046 = vpop.f32.mrb[0].mxu0
    %2047 = vdwg.mxu0
    %2048 = vmatprep.subr.bf16.mxu0 %v223
    %2049 = vmatpush1.bf16.msra.mxu0 %v222
    %2050 = vmatprep.subr.bf16.mxu0 %v227
    %2051 = vmatpush1.bf16.msra.mxu0 %v226
    %2052 = vmatprep.subr.bf16.mxu0 %v231
    %2053 = vmatpush1.bf16.msra.mxu0 %v230
    %2054 = vmatprep.subr.bf16.mxu0 %v235
    %2055 = vmatpush1.bf16.msra.mxu0 %v234
    %2056 = vmatprep.subr.bf16.mxu0 %v239
    %2057 = vmatpush1.bf16.msra.mxu0 %v238
    %2058 = vmatprep.subr.bf16.mxu0 %v243
    %2059 = vmatpush1.bf16.msra.mxu0 %v242
    %2060 = vmatprep.subr.bf16.mxu0 %v247
    %2061 = vmatpush1.bf16.msra.mxu0 %v246
    %2062 = vmatprep.subr.bf16.mxu0 %v251
    %2063 = vmatpush1.bf16.msra.mxu0 %v250
    %2064 = vmatprep.subr.bf16.mxu0 0
    %2065 = vmatpush1.bf16.msra.mxu0 0
    %2066 = vmatprep.subr.bf16.mxu0 0
    %2067 = vmatpush1.bf16.msra.mxu0 0
    %2068 = vmatprep.subr.bf16.mxu0 0
    %2069 = vmatpush1.bf16.msra.mxu0 0
    %2070 = vmatprep.subr.bf16.mxu0 0
    %2071 = vmatpush1.bf16.msra.mxu0 0
    %2072 = vmatprep.subr.bf16.mxu0 0
    %2073 = vmatpush1.bf16.msra.mxu0 0
    %2074 = vmatprep.subr.bf16.mxu0 0
    %2075 = vmatpush1.bf16.msra.mxu0 0
    %2076 = vmatprep.subr.bf16.mxu0 0
    %2077 = vmatpush1.bf16.msra.mxu0 0
    %2078 = vmatprep.subr.bf16.mxu0 0
    %2079 = vmatpush1.bf16.msra.mxu0 0
    %2080 = vmatprep.mubr.bf16.mxu0 0
    %2081 = vmatmul.mubr.bf16.gmra.mrb[0].mxu0 %v1894
    %v2082 = vpop.f32.mrb[0].mxu0
    %v2083 = vadd.f32 0.0, %v2082
    %v2084 = vpop.f32.mrb[0].mxu0
    %v2085 = vadd.f32 0.0, %v2084
    %v2086 = vpop.f32.mrb[0].mxu0
    %v2087 = vpop.f32.mrb[0].mxu0
    %2088 = vdwg.mxu0
    %2090 = vset.pattern.permute.xlu0 0
    %2091 = vperm.xlu0 %2090, %v2006
    %v2092 = vpop.permute.xlu0 %2091
    %v2094 = vmul.f32 %v2092, %v375
    %v2095 = vmul.f32 %v2092, %v379
    %v2096 = vmul.f32 %v2092, %v383
    %v2097 = vmul.f32 %v2092, %v387
    %v2098 = vadd.f32 %v2094, %v400
    %v2099 = vadd.f32 %v2095, %v404
    %v2100 = vadd.f32 %v2096, %v408
    %v2101 = vadd.f32 %v2097, %v412
    %v2102 = vadd.f32 %v2098, %v2042
    %v2103 = vadd.f32 %v2099, %v2044
    %v2104 = vadd.f32 %v2100, %v2083
    %v2105 = vadd.f32 %v2101, %v2085
    %v2106 = vxor.u32 %v2102, 2147483648
    %v2107 = vxor.u32 %v2103, 2147483648
    %v2108 = vxor.u32 %v2104, 2147483648
    %v2109 = vmul.f32 %v2106, 1.442695
    %v2110 = vpow.pop %v2109
    %v2111 = vmul.f32 %v2107, 1.442695
    %v2112 = vpow.pop %v2111
    %v2113 = vmul.f32 %v2108, 1.442695
    %v2114 = vpow.pop %v2113
    %v2115 = vadd.f32 %v2110, 1.0
    %v2116 = vadd.f32 %v2112, 1.0
    %v2117 = vadd.f32 %v2114, 1.0
    %v2118 = vrcp.pop %v2115
    %v2119 = vmul.f32 1.0, %v2118
    %v2120 = vrcp.pop %v2116
    %v2121 = vmul.f32 1.0, %v2120
    %v2122 = vrcp.pop %v2117
    %v2123 = vmul.f32 1.0, %v2122
    %v2124 = vtanh.pop %v2105
    %v2125 = vmul.f32 %v2121, %v1808
    %v2126 = vmul.f32 %v2119, %v2124
    %v2127 = vadd.f32 %v2125, %v2126
    %v2128 = vtanh.pop %v2127
    %v2129 = vmul.f32 %v2123, %v2128
    %v2130 = vpack.c.bf16 %v2004, %v2004
    %2131 = vmatprep.subr.bf16.mxu0 %v579
    %2132 = vmatpush1.bf16.msra.mxu0 %v578
    %2133 = vmatprep.subr.bf16.mxu0 %v583
    %2134 = vmatpush1.bf16.msra.mxu0 %v582
    %2135 = vmatprep.subr.bf16.mxu0 %v587
    %2136 = vmatpush1.bf16.msra.mxu0 %v586
    %2137 = vmatprep.subr.bf16.mxu0 %v591
    %2138 = vmatpush1.bf16.msra.mxu0 %v590
    %2139 = vmatprep.subr.bf16.mxu0 %v595
    %2140 = vmatpush1.bf16.msra.mxu0 %v594
    %2141 = vmatprep.subr.bf16.mxu0 %v599
    %2142 = vmatpush1.bf16.msra.mxu0 %v598
    %2143 = vmatprep.subr.bf16.mxu0 %v603
    %2144 = vmatpush1.bf16.msra.mxu0 %v602
    %2145 = vmatprep.subr.bf16.mxu0 %v607
    %2146 = vmatpush1.bf16.msra.mxu0 %v606
    %2147 = vmatprep.subr.bf16.mxu0 0
    %2148 = vmatpush1.bf16.msra.mxu0 0
    %2149 = vmatprep.subr.bf16.mxu0 0
    %2150 = vmatpush1.bf16.msra.mxu0 0
    %2151 = vmatprep.subr.bf16.mxu0 0
    %2152 = vmatpush1.bf16.msra.mxu0 0
    %2153 = vmatprep.subr.bf16.mxu0 0
    %2154 = vmatpush1.bf16.msra.mxu0 0
    %2155 = vmatprep.subr.bf16.mxu0 0
    %2156 = vmatpush1.bf16.msra.mxu0 0
    %2157 = vmatprep.subr.bf16.mxu0 0
    %2158 = vmatpush1.bf16.msra.mxu0 0
    %2159 = vmatprep.subr.bf16.mxu0 0
    %2160 = vmatpush1.bf16.msra.mxu0 0
    %2161 = vmatprep.subr.bf16.mxu0 0
    %2162 = vmatpush1.bf16.msra.mxu0 0
    %2163 = vmatprep.mubr.bf16.mxu0 0
    %2164 = vmatmul.mubr.bf16.gmra.mrb[0].mxu0 %v2130
    %v2165 = vpop.f32.mrb[0].mxu0
    %v2166 = vadd.f32 0.0, %v2165
    %v2167 = vpop.f32.mrb[0].mxu0
    %v2168 = vadd.f32 0.0, %v2167
    %v2169 = vpop.f32.mrb[0].mxu0
    %v2170 = vpop.f32.mrb[0].mxu0
    %2171 = vdwg.mxu0
    %2172 = vmatprep.subr.bf16.mxu0 %v581
    %2173 = vmatpush1.bf16.msra.mxu0 %v580
    %2174 = vmatprep.subr.bf16.mxu0 %v585
    %2175 = vmatpush1.bf16.msra.mxu0 %v584
    %2176 = vmatprep.subr.bf16.mxu0 %v589
    %2177 = vmatpush1.bf16.msra.mxu0 %v588
    %2178 = vmatprep.subr.bf16.mxu0 %v593
    %2179 = vmatpush1.bf16.msra.mxu0 %v592
    %2180 = vmatprep.subr.bf16.mxu0 %v597
    %2181 = vmatpush1.bf16.msra.mxu0 %v596
    %2182 = vmatprep.subr.bf16.mxu0 %v601
    %2183 = vmatpush1.bf16.msra.mxu0 %v600
    %2184 = vmatprep.subr.bf16.mxu0 %v605
    %2185 = vmatpush1.bf16.msra.mxu0 %v604
    %2186 = vmatprep.subr.bf16.mxu0 %v609
    %2187 = vmatpush1.bf16.msra.mxu0 %v608
    %2188 = vmatprep.subr.bf16.mxu0 0
    %2189 = vmatpush1.bf16.msra.mxu0 0
    %2190 = vmatprep.subr.bf16.mxu0 0
    %2191 = vmatpush1.bf16.msra.mxu0 0
    %2192 = vmatprep.subr.bf16.mxu0 0
    %2193 = vmatpush1.bf16.msra.mxu0 0
    %2194 = vmatprep.subr.bf16.mxu0 0
    %2195 = vmatpush1.bf16.msra.mxu0 0
    %2196 = vmatprep.subr.bf16.mxu0 0
    %2197 = vmatpush1.bf16.msra.mxu0 0
    %2198 = vmatprep.subr.bf16.mxu0 0
    %2199 = vmatpush1.bf16.msra.mxu0 0
    %2200 = vmatprep.subr.bf16.mxu0 0
    %2201 = vmatpush1.bf16.msra.mxu0 0
    %2202 = vmatprep.subr.bf16.mxu0 0
    %2203 = vmatpush1.bf16.msra.mxu0 0
    %2204 = vmatprep.mubr.bf16.mxu0 0
    %2205 = vmatmul.mubr.bf16.gmra.mrb[0].mxu0 %v2130
    %v2206 = vpop.f32.mrb[0].mxu0
    %v2207 = vadd.f32 0.0, %v2206
    %v2208 = vpop.f32.mrb[0].mxu0
    %v2209 = vadd.f32 0.0, %v2208
    %v2210 = vpop.f32.mrb[0].mxu0
    %v2211 = vpop.f32.mrb[0].mxu0
    %2212 = vdwg.mxu0
    %v2213 = vpack.c.bf16 %v2129, %v2129
    %2214 = vmatprep.subr.bf16.mxu0 %v854
    %2215 = vmatpush1.bf16.msra.mxu0 %v853
    %2216 = vmatprep.subr.bf16.mxu0 %v858
    %2217 = vmatpush1.bf16.msra.mxu0 %v857
    %2218 = vmatprep.subr.bf16.mxu0 %v862
    %2219 = vmatpush1.bf16.msra.mxu0 %v861
    %2220 = vmatprep.subr.bf16.mxu0 %v866
    %2221 = vmatpush1.bf16.msra.mxu0 %v865
    %2222 = vmatprep.subr.bf16.mxu0 %v870
    %2223 = vmatpush1.bf16.msra.mxu0 %v869
    %2224 = vmatprep.subr.bf16.mxu0 %v874
    %2225 = vmatpush1.bf16.msra.mxu0 %v873
    %2226 = vmatprep.subr.bf16.mxu0 %v878
    %2227 = vmatpush1.bf16.msra.mxu0 %v877
    %2228 = vmatprep.subr.bf16.mxu0 %v882
    %2229 = vmatpush1.bf16.msra.mxu0 %v881
    %2230 = vmatprep.subr.bf16.mxu0 0
    %2231 = vmatpush1.bf16.msra.mxu0 0
    %2232 = vmatprep.subr.bf16.mxu0 0
    %2233 = vmatpush1.bf16.msra.mxu0 0
    %2234 = vmatprep.subr.bf16.mxu0 0
    %2235 = vmatpush1.bf16.msra.mxu0 0
    %2236 = vmatprep.subr.bf16.mxu0 0
    %2237 = vmatpush1.bf16.msra.mxu0 0
    %2238 = vmatprep.subr.bf16.mxu0 0
    %2239 = vmatpush1.bf16.msra.mxu0 0
    %2240 = vmatprep.subr.bf16.mxu0 0
    %2241 = vmatpush1.bf16.msra.mxu0 0
    %2242 = vmatprep.subr.bf16.mxu0 0
    %2243 = vmatpush1.bf16.msra.mxu0 0
    %2244 = vmatprep.subr.bf16.mxu0 0
    %2245 = vmatpush1.bf16.msra.mxu0 0
    %2246 = vmatprep.mubr.bf16.mxu0 0
    %2247 = vmatmul.mubr.bf16.gmra.mrb[0].mxu0 %v2213
    %v2248 = vpop.f32.mrb[0].mxu0
    %v2249 = vadd.f32 %v2166, %v2248
    %v2250 = vpop.f32.mrb[0].mxu0
    %v2251 = vadd.f32 %v2168, %v2250
    %v2252 = vpop.f32.mrb[0].mxu0
    %v2253 = vpop.f32.mrb[0].mxu0
    %2254 = vdwg.mxu0
    %2255 = vmatprep.subr.bf16.mxu0 %v856
    %2256 = vmatpush1.bf16.msra.mxu0 %v855
    %2257 = vmatprep.subr.bf16.mxu0 %v860
    %2258 = vmatpush1.bf16.msra.mxu0 %v859
    %2259 = vmatprep.subr.bf16.mxu0 %v864
    %2260 = vmatpush1.bf16.msra.mxu0 %v863
    %2261 = vmatprep.subr.bf16.mxu0 %v868
    %2262 = vmatpush1.bf16.msra.mxu0 %v867
    %2263 = vmatprep.subr.bf16.mxu0 %v872
    %2264 = vmatpush1.bf16.msra.mxu0 %v871
    %2265 = vmatprep.subr.bf16.mxu0 %v876
    %2266 = vmatpush1.bf16.msra.mxu0 %v875
    %2267 = vmatprep.subr.bf16.mxu0 %v880
    %2268 = vmatpush1.bf16.msra.mxu0 %v879
    %2269 = vmatprep.subr.bf16.mxu0 %v884
    %2270 = vmatpush1.bf16.msra.mxu0 %v883
    %2271 = vmatprep.subr.bf16.mxu0 0
    %2272 = vmatpush1.bf16.msra.mxu0 0
    %2273 = vmatprep.subr.bf16.mxu0 0
    %2274 = vmatpush1.bf16.msra.mxu0 0
    %2275 = vmatprep.subr.bf16.mxu0 0
    %2276 = vmatpush1.bf16.msra.mxu0 0
    %2277 = vmatprep.subr.bf16.mxu0 0
    %2278 = vmatpush1.bf16.msra.mxu0 0
    %2279 = vmatprep.subr.bf16.mxu0 0
    %2280 = vmatpush1.bf16.msra.mxu0 0
    %2281 = vmatprep.subr.bf16.mxu0 0
    %2282 = vmatpush1.bf16.msra.mxu0 0
    %2283 = vmatprep.subr.bf16.mxu0 0
    %2284 = vmatpush1.bf16.msra.mxu0 0
    %2285 = vmatprep.subr.bf16.mxu0 0
    %2286 = vmatpush1.bf16.msra.mxu0 0
    %2287 = vmatprep.mubr.bf16.mxu0 0
    %2288 = vmatmul.mubr.bf16.gmra.mrb[0].mxu0 %v2213
    %v2289 = vpop.f32.mrb[0].mxu0
    %v2290 = vadd.f32 %v2207, %v2289
    %v2291 = vpop.f32.mrb[0].mxu0
    %v2292 = vadd.f32 %v2209, %v2291
    %v2293 = vpop.f32.mrb[0].mxu0
    %v2294 = vpop.f32.mrb[0].mxu0
    %2295 = vdwg.mxu0
    %v2296 = vadd.f32 %v2249, %v1003
    %v2297 = vadd.f32 %v2251, %v1007
    %v2298 = vadd.f32 %v2290, %v1011
    %v2299 = vadd.f32 %v2292, %v1015
    %v2300 = vxor.u32 %v2296, 2147483648
    %v2301 = vxor.u32 %v2297, 2147483648
    %v2302 = vxor.u32 %v2298, 2147483648
    %v2303 = vmul.f32 %v2300, 1.442695
    %v2304 = vpow.pop %v2303
    %v2305 = vmul.f32 %v2301, 1.442695
    %v2306 = vpow.pop %v2305
    %v2307 = vmul.f32 %v2302, 1.442695
    %v2308 = vpow.pop %v2307
    %v2309 = vadd.f32 %v2304, 1.0
    %v2310 = vadd.f32 %v2306, 1.0
    %v2311 = vadd.f32 %v2308, 1.0
    %v2312 = vrcp.pop %v2309
    %v2313 = vmul.f32 1.0, %v2312
    %v2314 = vrcp.pop %v2310
    %v2315 = vmul.f32 1.0, %v2314
    %v2316 = vrcp.pop %v2311
    %v2317 = vmul.f32 1.0, %v2316
    %v2318 = vtanh.pop %v2299
    %v2319 = vmul.f32 %v2315, %v2002
    %v2320 = vmul.f32 %v2313, %v2318
    %v2321 = vadd.f32 %v2319, %v2320
    %v2322 = vtanh.pop %v2321
    %v2323 = vmul.f32 %v2317, %v2322
    %s2324 = scalar_lea.vmem %s0, 40
    %v2325 = vld [vmem:[%s2324] sm:$0xff]
    %2326 = vmatprep.subr.bf16.mxu0 %v221
    %2327 = vmatpush1.bf16.msra.mxu0 %v220
    %2328 = vmatprep.subr.bf16.mxu0 %v225
    %2329 = vmatpush1.bf16.msra.mxu0 %v224
    %2330 = vmatprep.subr.bf16.mxu0 %v229
    %2331 = vmatpush1.bf16.msra.mxu0 %v228
    %2332 = vmatprep.subr.bf16.mxu0 %v233
    %2333 = vmatpush1.bf16.msra.mxu0 %v232
    %2334 = vmatprep.subr.bf16.mxu0 %v237
    %2335 = vmatpush1.bf16.msra.mxu0 %v236
    %2336 = vmatprep.subr.bf16.mxu0 %v241
    %2337 = vmatpush1.bf16.msra.mxu0 %v240
    %2338 = vmatprep.subr.bf16.mxu0 %v245
    %2339 = vmatpush1.bf16.msra.mxu0 %v244
    %2340 = vmatprep.subr.bf16.mxu0 %v249
    %2341 = vmatpush1.bf16.msra.mxu0 %v248
    %2342 = vmatprep.subr.bf16.mxu0 0
    %2343 = vmatpush1.bf16.msra.mxu0 0
    %2344 = vmatprep.subr.bf16.mxu0 0
    %2345 = vmatpush1.bf16.msra.mxu0 0
    %2346 = vmatprep.subr.bf16.mxu0 0
    %2347 = vmatpush1.bf16.msra.mxu0 0
    %2348 = vmatprep.subr.bf16.mxu0 0
    %2349 = vmatpush1.bf16.msra.mxu0 0
    %2350 = vmatprep.subr.bf16.mxu0 0
    %2351 = vmatpush1.bf16.msra.mxu0 0
    %2352 = vmatprep.subr.bf16.mxu0 0
    %2353 = vmatpush1.bf16.msra.mxu0 0
    %2354 = vmatprep.subr.bf16.mxu0 0
    %2355 = vmatpush1.bf16.msra.mxu0 0
    %2356 = vmatprep.subr.bf16.mxu0 0
    %2357 = vmatpush1.bf16.msra.mxu0 0
    %2358 = vmatprep.mubr.bf16.mxu0 0
    %2359 = vmatmul.mubr.bf16.gmra.mrb[0].mxu0 %v2213
    %v2360 = vpop.f32.mrb[0].mxu0
    %v2361 = vadd.f32 0.0, %v2360
    %v2362 = vpop.f32.mrb[0].mxu0
    %v2363 = vadd.f32 0.0, %v2362
    %v2364 = vpop.f32.mrb[0].mxu0
    %v2365 = vpop.f32.mrb[0].mxu0
    %2366 = vdwg.mxu0
    %2367 = vmatprep.subr.bf16.mxu0 %v223
    %2368 = vmatpush1.bf16.msra.mxu0 %v222
    %2369 = vmatprep.subr.bf16.mxu0 %v227
    %2370 = vmatpush1.bf16.msra.mxu0 %v226
    %2371 = vmatprep.subr.bf16.mxu0 %v231
    %2372 = vmatpush1.bf16.msra.mxu0 %v230
    %2373 = vmatprep.subr.bf16.mxu0 %v235
    %2374 = vmatpush1.bf16.msra.mxu0 %v234
    %2375 = vmatprep.subr.bf16.mxu0 %v239
    %2376 = vmatpush1.bf16.msra.mxu0 %v238
    %2377 = vmatprep.subr.bf16.mxu0 %v243
    %2378 = vmatpush1.bf16.msra.mxu0 %v242
    %2379 = vmatprep.subr.bf16.mxu0 %v247
    %2380 = vmatpush1.bf16.msra.mxu0 %v246
    %2381 = vmatprep.subr.bf16.mxu0 %v251
    %2382 = vmatpush1.bf16.msra.mxu0 %v250
    %2383 = vmatprep.subr.bf16.mxu0 0
    %2384 = vmatpush1.bf16.msra.mxu0 0
    %2385 = vmatprep.subr.bf16.mxu0 0
    %2386 = vmatpush1.bf16.msra.mxu0 0
    %2387 = vmatprep.subr.bf16.mxu0 0
    %2388 = vmatpush1.bf16.msra.mxu0 0
    %2389 = vmatprep.subr.bf16.mxu0 0
    %2390 = vmatpush1.bf16.msra.mxu0 0
    %2391 = vmatprep.subr.bf16.mxu0 0
    %2392 = vmatpush1.bf16.msra.mxu0 0
    %2393 = vmatprep.subr.bf16.mxu0 0
    %2394 = vmatpush1.bf16.msra.mxu0 0
    %2395 = vmatprep.subr.bf16.mxu0 0
    %2396 = vmatpush1.bf16.msra.mxu0 0
    %2397 = vmatprep.subr.bf16.mxu0 0
    %2398 = vmatpush1.bf16.msra.mxu0 0
    %2399 = vmatprep.mubr.bf16.mxu0 0
    %2400 = vmatmul.mubr.bf16.gmra.mrb[0].mxu0 %v2213
    %v2401 = vpop.f32.mrb[0].mxu0
    %v2402 = vadd.f32 0.0, %v2401
    %v2403 = vpop.f32.mrb[0].mxu0
    %v2404 = vadd.f32 0.0, %v2403
    %v2405 = vpop.f32.mrb[0].mxu0
    %v2406 = vpop.f32.mrb[0].mxu0
    %2407 = vdwg.mxu0
    %2409 = vset.pattern.permute.xlu0 0
    %2410 = vperm.xlu0 %2409, %v2325
    %v2411 = vpop.permute.xlu0 %2410
    %v2413 = vmul.f32 %v2411, %v375
    %v2414 = vmul.f32 %v2411, %v379
    %v2415 = vmul.f32 %v2411, %v383
    %v2416 = vmul.f32 %v2411, %v387
    %v2417 = vadd.f32 %v2413, %v400
    %v2418 = vadd.f32 %v2414, %v404
    %v2419 = vadd.f32 %v2415, %v408
    %v2420 = vadd.f32 %v2416, %v412
    %v2421 = vadd.f32 %v2417, %v2361
    %v2422 = vadd.f32 %v2418, %v2363
    %v2423 = vadd.f32 %v2419, %v2402
    %v2424 = vadd.f32 %v2420, %v2404
    %v2425 = vxor.u32 %v2421, 2147483648
    %v2426 = vxor.u32 %v2422, 2147483648
    %v2427 = vxor.u32 %v2423, 2147483648
    %v2428 = vmul.f32 %v2425, 1.442695
    %v2429 = vpow.pop %v2428
    %v2430 = vmul.f32 %v2426, 1.442695
    %v2431 = vpow.pop %v2430
    %v2432 = vmul.f32 %v2427, 1.442695
    %v2433 = vpow.pop %v2432
    %v2434 = vadd.f32 %v2429, 1.0
    %v2435 = vadd.f32 %v2431, 1.0
    %v2436 = vadd.f32 %v2433, 1.0
    %v2437 = vrcp.pop %v2434
    %v2438 = vmul.f32 1.0, %v2437
    %v2439 = vrcp.pop %v2435
    %v2440 = vmul.f32 1.0, %v2439
    %v2441 = vrcp.pop %v2436
    %v2442 = vmul.f32 1.0, %v2441
    %v2443 = vtanh.pop %v2424
    %v2444 = vmul.f32 %v2440, %v2127
    %v2445 = vmul.f32 %v2438, %v2443
    %v2446 = vadd.f32 %v2444, %v2445
    %v2447 = vtanh.pop %v2446
    %v2448 = vmul.f32 %v2442, %v2447
    %v2449 = vpack.c.bf16 %v2323, %v2323
    %2450 = vmatprep.subr.bf16.mxu0 %v579
    %2451 = vmatpush1.bf16.msra.mxu0 %v578
    %2452 = vmatprep.subr.bf16.mxu0 %v583
    %2453 = vmatpush1.bf16.msra.mxu0 %v582
    %2454 = vmatprep.subr.bf16.mxu0 %v587
    %2455 = vmatpush1.bf16.msra.mxu0 %v586
    %2456 = vmatprep.subr.bf16.mxu0 %v591
    %2457 = vmatpush1.bf16.msra.mxu0 %v590
    %2458 = vmatprep.subr.bf16.mxu0 %v595
    %2459 = vmatpush1.bf16.msra.mxu0 %v594
    %2460 = vmatprep.subr.bf16.mxu0 %v599
    %2461 = vmatpush1.bf16.msra.mxu0 %v598
    %2462 = vmatprep.subr.bf16.mxu0 %v603
    %2463 = vmatpush1.bf16.msra.mxu0 %v602
    %2464 = vmatprep.subr.bf16.mxu0 %v607
    %2465 = vmatpush1.bf16.msra.mxu0 %v606
    %2466 = vmatprep.subr.bf16.mxu0 0
    %2467 = vmatpush1.bf16.msra.mxu0 0
    %2468 = vmatprep.subr.bf16.mxu0 0
    %2469 = vmatpush1.bf16.msra.mxu0 0
    %2470 = vmatprep.subr.bf16.mxu0 0
    %2471 = vmatpush1.bf16.msra.mxu0 0
    %2472 = vmatprep.subr.bf16.mxu0 0
    %2473 = vmatpush1.bf16.msra.mxu0 0
    %2474 = vmatprep.subr.bf16.mxu0 0
    %2475 = vmatpush1.bf16.msra.mxu0 0
    %2476 = vmatprep.subr.bf16.mxu0 0
    %2477 = vmatpush1.bf16.msra.mxu0 0
    %2478 = vmatprep.subr.bf16.mxu0 0
    %2479 = vmatpush1.bf16.msra.mxu0 0
    %2480 = vmatprep.subr.bf16.mxu0 0
    %2481 = vmatpush1.bf16.msra.mxu0 0
    %2482 = vmatprep.mubr.bf16.mxu0 0
    %2483 = vmatmul.mubr.bf16.gmra.mrb[0].mxu0 %v2449
    %v2484 = vpop.f32.mrb[0].mxu0
    %v2485 = vadd.f32 0.0, %v2484
    %v2486 = vpop.f32.mrb[0].mxu0
    %v2487 = vadd.f32 0.0, %v2486
    %v2488 = vpop.f32.mrb[0].mxu0
    %v2489 = vpop.f32.mrb[0].mxu0
    %2490 = vdwg.mxu0
    %2491 = vmatprep.subr.bf16.mxu0 %v581
    %2492 = vmatpush1.bf16.msra.mxu0 %v580
    %2493 = vmatprep.subr.bf16.mxu0 %v585
    %2494 = vmatpush1.bf16.msra.mxu0 %v584
    %2495 = vmatprep.subr.bf16.mxu0 %v589
    %2496 = vmatpush1.bf16.msra.mxu0 %v588
    %2497 = vmatprep.subr.bf16.mxu0 %v593
    %2498 = vmatpush1.bf16.msra.mxu0 %v592
    %2499 = vmatprep.subr.bf16.mxu0 %v597
    %2500 = vmatpush1.bf16.msra.mxu0 %v596
    %2501 = vmatprep.subr.bf16.mxu0 %v601
    %2502 = vmatpush1.bf16.msra.mxu0 %v600
    %2503 = vmatprep.subr.bf16.mxu0 %v605
    %2504 = vmatpush1.bf16.msra.mxu0 %v604
    %2505 = vmatprep.subr.bf16.mxu0 %v609
    %2506 = vmatpush1.bf16.msra.mxu0 %v608
    %2507 = vmatprep.subr.bf16.mxu0 0
    %2508 = vmatpush1.bf16.msra.mxu0 0
    %2509 = vmatprep.subr.bf16.mxu0 0
    %2510 = vmatpush1.bf16.msra.mxu0 0
    %2511 = vmatprep.subr.bf16.mxu0 0
    %2512 = vmatpush1.bf16.msra.mxu0 0
    %2513 = vmatprep.subr.bf16.mxu0 0
    %2514 = vmatpush1.bf16.msra.mxu0 0
    %2515 = vmatprep.subr.bf16.mxu0 0
    %2516 = vmatpush1.bf16.msra.mxu0 0
    %2517 = vmatprep.subr.bf16.mxu0 0
    %2518 = vmatpush1.bf16.msra.mxu0 0
    %2519 = vmatprep.subr.bf16.mxu0 0
    %2520 = vmatpush1.bf16.msra.mxu0 0
    %2521 = vmatprep.subr.bf16.mxu0 0
    %2522 = vmatpush1.bf16.msra.mxu0 0
    %2523 = vmatprep.mubr.bf16.mxu0 0
    %2524 = vmatmul.mubr.bf16.gmra.mrb[0].mxu0 %v2449
    %v2525 = vpop.f32.mrb[0].mxu0
    %v2526 = vadd.f32 0.0, %v2525
    %v2527 = vpop.f32.mrb[0].mxu0
    %v2528 = vadd.f32 0.0, %v2527
    %v2529 = vpop.f32.mrb[0].mxu0
    %v2530 = vpop.f32.mrb[0].mxu0
    %2531 = vdwg.mxu0
    %v2532 = vpack.c.bf16 %v2448, %v2448
    %2533 = vmatprep.subr.bf16.mxu0 %v854
    %2534 = vmatpush1.bf16.msra.mxu0 %v853
    %2535 = vmatprep.subr.bf16.mxu0 %v858
    %2536 = vmatpush1.bf16.msra.mxu0 %v857
    %2537 = vmatprep.subr.bf16.mxu0 %v862
    %2538 = vmatpush1.bf16.msra.mxu0 %v861
    %2539 = vmatprep.subr.bf16.mxu0 %v866
    %2540 = vmatpush1.bf16.msra.mxu0 %v865
    %2541 = vmatprep.subr.bf16.mxu0 %v870
    %2542 = vmatpush1.bf16.msra.mxu0 %v869
    %2543 = vmatprep.subr.bf16.mxu0 %v874
    %2544 = vmatpush1.bf16.msra.mxu0 %v873
    %2545 = vmatprep.subr.bf16.mxu0 %v878
    %2546 = vmatpush1.bf16.msra.mxu0 %v877
    %2547 = vmatprep.subr.bf16.mxu0 %v882
    %2548 = vmatpush1.bf16.msra.mxu0 %v881
    %2549 = vmatprep.subr.bf16.mxu0 0
    %2550 = vmatpush1.bf16.msra.mxu0 0
    %2551 = vmatprep.subr.bf16.mxu0 0
    %2552 = vmatpush1.bf16.msra.mxu0 0
    %2553 = vmatprep.subr.bf16.mxu0 0
    %2554 = vmatpush1.bf16.msra.mxu0 0
    %2555 = vmatprep.subr.bf16.mxu0 0
    %2556 = vmatpush1.bf16.msra.mxu0 0
    %2557 = vmatprep.subr.bf16.mxu0 0
    %2558 = vmatpush1.bf16.msra.mxu0 0
    %2559 = vmatprep.subr.bf16.mxu0 0
    %2560 = vmatpush1.bf16.msra.mxu0 0
    %2561 = vmatprep.subr.bf16.mxu0 0
    %2562 = vmatpush1.bf16.msra.mxu0 0
    %2563 = vmatprep.subr.bf16.mxu0 0
    %2564 = vmatpush1.bf16.msra.mxu0 0
    %2565 = vmatprep.mubr.bf16.mxu0 0
    %2566 = vmatmul.mubr.bf16.gmra.mrb[0].mxu0 %v2532
    %v2567 = vpop.f32.mrb[0].mxu0
    %v2568 = vadd.f32 %v2485, %v2567
    %v2569 = vpop.f32.mrb[0].mxu0
    %v2570 = vadd.f32 %v2487, %v2569
    %v2571 = vpop.f32.mrb[0].mxu0
    %v2572 = vpop.f32.mrb[0].mxu0
    %2573 = vdwg.mxu0
    %2574 = vmatprep.subr.bf16.mxu0 %v856
    %2575 = vmatpush1.bf16.msra.mxu0 %v855
    %2576 = vmatprep.subr.bf16.mxu0 %v860
    %2577 = vmatpush1.bf16.msra.mxu0 %v859
    %2578 = vmatprep.subr.bf16.mxu0 %v864
    %2579 = vmatpush1.bf16.msra.mxu0 %v863
    %2580 = vmatprep.subr.bf16.mxu0 %v868
    %2581 = vmatpush1.bf16.msra.mxu0 %v867
    %2582 = vmatprep.subr.bf16.mxu0 %v872
    %2583 = vmatpush1.bf16.msra.mxu0 %v871
    %2584 = vmatprep.subr.bf16.mxu0 %v876
    %2585 = vmatpush1.bf16.msra.mxu0 %v875
    %2586 = vmatprep.subr.bf16.mxu0 %v880
    %2587 = vmatpush1.bf16.msra.mxu0 %v879
    %2588 = vmatprep.subr.bf16.mxu0 %v884
    %2589 = vmatpush1.bf16.msra.mxu0 %v883
    %2590 = vmatprep.subr.bf16.mxu0 0
    %2591 = vmatpush1.bf16.msra.mxu0 0
    %2592 = vmatprep.subr.bf16.mxu0 0
    %2593 = vmatpush1.bf16.msra.mxu0 0
    %2594 = vmatprep.subr.bf16.mxu0 0
    %2595 = vmatpush1.bf16.msra.mxu0 0
    %2596 = vmatprep.subr.bf16.mxu0 0
    %2597 = vmatpush1.bf16.msra.mxu0 0
    %2598 = vmatprep.subr.bf16.mxu0 0
    %2599 = vmatpush1.bf16.msra.mxu0 0
    %2600 = vmatprep.subr.bf16.mxu0 0
    %2601 = vmatpush1.bf16.msra.mxu0 0
    %2602 = vmatprep.subr.bf16.mxu0 0
    %2603 = vmatpush1.bf16.msra.mxu0 0
    %2604 = vmatprep.subr.bf16.mxu0 0
    %2605 = vmatpush1.bf16.msra.mxu0 0
    %2606 = vmatprep.mubr.bf16.mxu0 0
    %2607 = vmatmul.mubr.bf16.gmra.mrb[0].mxu0 %v2532
    %v2608 = vpop.f32.mrb[0].mxu0
    %v2609 = vadd.f32 %v2526, %v2608
    %v2610 = vpop.f32.mrb[0].mxu0
    %v2611 = vadd.f32 %v2528, %v2610
    %v2612 = vpop.f32.mrb[0].mxu0
    %v2613 = vpop.f32.mrb[0].mxu0
    %2614 = vdwg.mxu0
    %v2615 = vadd.f32 %v2568, %v1003
    %v2616 = vadd.f32 %v2570, %v1007
    %v2617 = vadd.f32 %v2609, %v1011
    %v2618 = vadd.f32 %v2611, %v1015
    %v2619 = vxor.u32 %v2615, 2147483648
    %v2620 = vxor.u32 %v2616, 2147483648
    %v2621 = vxor.u32 %v2617, 2147483648
    %v2622 = vmul.f32 %v2619, 1.442695
    %v2623 = vpow.pop %v2622
    %v2624 = vmul.f32 %v2620, 1.442695
    %v2625 = vpow.pop %v2624
    %v2626 = vmul.f32 %v2621, 1.442695
    %v2627 = vpow.pop %v2626
    %v2628 = vadd.f32 %v2623, 1.0
    %v2629 = vadd.f32 %v2625, 1.0
    %v2630 = vadd.f32 %v2627, 1.0
    %v2631 = vrcp.pop %v2628
    %v2632 = vmul.f32 1.0, %v2631
    %v2633 = vrcp.pop %v2629
    %v2634 = vmul.f32 1.0, %v2633
    %v2635 = vrcp.pop %v2630
    %v2636 = vmul.f32 1.0, %v2635
    %v2637 = vtanh.pop %v2618
    %v2638 = vmul.f32 %v2634, %v2321
    %v2639 = vmul.f32 %v2632, %v2637
    %v2640 = vadd.f32 %v2638, %v2639
    %v2641 = vtanh.pop %v2640
    %v2642 = vmul.f32 %v2636, %v2641
    %s2643 = scalar_lea.vmem %s0, 48
    %v2644 = vld [vmem:[%s2643] sm:$0xff]
    %2645 = vmatprep.subr.bf16.mxu0 %v221
    %2646 = vmatpush1.bf16.msra.mxu0 %v220
    %2647 = vmatprep.subr.bf16.mxu0 %v225
    %2648 = vmatpush1.bf16.msra.mxu0 %v224
    %2649 = vmatprep.subr.bf16.mxu0 %v229
    %2650 = vmatpush1.bf16.msra.mxu0 %v228
    %2651 = vmatprep.subr.bf16.mxu0 %v233
    %2652 = vmatpush1.bf16.msra.mxu0 %v232
    %2653 = vmatprep.subr.bf16.mxu0 %v237
    %2654 = vmatpush1.bf16.msra.mxu0 %v236
    %2655 = vmatprep.subr.bf16.mxu0 %v241
    %2656 = vmatpush1.bf16.msra.mxu0 %v240
    %2657 = vmatprep.subr.bf16.mxu0 %v245
    %2658 = vmatpush1.bf16.msra.mxu0 %v244
    %2659 = vmatprep.subr.bf16.mxu0 %v249
    %2660 = vmatpush1.bf16.msra.mxu0 %v248
    %2661 = vmatprep.subr.bf16.mxu0 0
    %2662 = vmatpush1.bf16.msra.mxu0 0
    %2663 = vmatprep.subr.bf16.mxu0 0
    %2664 = vmatpush1.bf16.msra.mxu0 0
    %2665 = vmatprep.subr.bf16.mxu0 0
    %2666 = vmatpush1.bf16.msra.mxu0 0
    %2667 = vmatprep.subr.bf16.mxu0 0
    %2668 = vmatpush1.bf16.msra.mxu0 0
    %2669 = vmatprep.subr.bf16.mxu0 0
    %2670 = vmatpush1.bf16.msra.mxu0 0
    %2671 = vmatprep.subr.bf16.mxu0 0
    %2672 = vmatpush1.bf16.msra.mxu0 0
    %2673 = vmatprep.subr.bf16.mxu0 0
    %2674 = vmatpush1.bf16.msra.mxu0 0
    %2675 = vmatprep.subr.bf16.mxu0 0
    %2676 = vmatpush1.bf16.msra.mxu0 0
    %2677 = vmatprep.mubr.bf16.mxu0 0
    %2678 = vmatmul.mubr.bf16.gmra.mrb[0].mxu0 %v2532
    %v2679 = vpop.f32.mrb[0].mxu0
    %v2680 = vadd.f32 0.0, %v2679
    %v2681 = vpop.f32.mrb[0].mxu0
    %v2682 = vadd.f32 0.0, %v2681
    %v2683 = vpop.f32.mrb[0].mxu0
    %v2684 = vpop.f32.mrb[0].mxu0
    %2685 = vdwg.mxu0
    %2686 = vmatprep.subr.bf16.mxu0 %v223
    %2687 = vmatpush1.bf16.msra.mxu0 %v222
    %2688 = vmatprep.subr.bf16.mxu0 %v227
    %2689 = vmatpush1.bf16.msra.mxu0 %v226
    %2690 = vmatprep.subr.bf16.mxu0 %v231
    %2691 = vmatpush1.bf16.msra.mxu0 %v230
    %2692 = vmatprep.subr.bf16.mxu0 %v235
    %2693 = vmatpush1.bf16.msra.mxu0 %v234
    %2694 = vmatprep.subr.bf16.mxu0 %v239
    %2695 = vmatpush1.bf16.msra.mxu0 %v238
    %2696 = vmatprep.subr.bf16.mxu0 %v243
    %2697 = vmatpush1.bf16.msra.mxu0 %v242
    %2698 = vmatprep.subr.bf16.mxu0 %v247
    %2699 = vmatpush1.bf16.msra.mxu0 %v246
    %2700 = vmatprep.subr.bf16.mxu0 %v251
    %2701 = vmatpush1.bf16.msra.mxu0 %v250
    %2702 = vmatprep.subr.bf16.mxu0 0
    %2703 = vmatpush1.bf16.msra.mxu0 0
    %2704 = vmatprep.subr.bf16.mxu0 0
    %2705 = vmatpush1.bf16.msra.mxu0 0
    %2706 = vmatprep.subr.bf16.mxu0 0
    %2707 = vmatpush1.bf16.msra.mxu0 0
    %2708 = vmatprep.subr.bf16.mxu0 0
    %2709 = vmatpush1.bf16.msra.mxu0 0
    %2710 = vmatprep.subr.bf16.mxu0 0
    %2711 = vmatpush1.bf16.msra.mxu0 0
    %2712 = vmatprep.subr.bf16.mxu0 0
    %2713 = vmatpush1.bf16.msra.mxu0 0
    %2714 = vmatprep.subr.bf16.mxu0 0
    %2715 = vmatpush1.bf16.msra.mxu0 0
    %2716 = vmatprep.subr.bf16.mxu0 0
    %2717 = vmatpush1.bf16.msra.mxu0 0
    %2718 = vmatprep.mubr.bf16.mxu0 0
    %2719 = vmatmul.mubr.bf16.gmra.mrb[0].mxu0 %v2532
    %v2720 = vpop.f32.mrb[0].mxu0
    %v2721 = vadd.f32 0.0, %v2720
    %v2722 = vpop.f32.mrb[0].mxu0
    %v2723 = vadd.f32 0.0, %v2722
    %v2724 = vpop.f32.mrb[0].mxu0
    %v2725 = vpop.f32.mrb[0].mxu0
    %2726 = vdwg.mxu0
    %2728 = vset.pattern.permute.xlu0 0
    %2729 = vperm.xlu0 %2728, %v2644
    %v2730 = vpop.permute.xlu0 %2729
    %v2732 = vmul.f32 %v2730, %v375
    %v2733 = vmul.f32 %v2730, %v379
    %v2734 = vmul.f32 %v2730, %v383
    %v2735 = vmul.f32 %v2730, %v387
    %v2736 = vadd.f32 %v2732, %v400
    %v2737 = vadd.f32 %v2733, %v404
    %v2738 = vadd.f32 %v2734, %v408
    %v2739 = vadd.f32 %v2735, %v412
    %v2740 = vadd.f32 %v2736, %v2680
    %v2741 = vadd.f32 %v2737, %v2682
    %v2742 = vadd.f32 %v2738, %v2721
    %v2743 = vadd.f32 %v2739, %v2723
    %v2744 = vxor.u32 %v2740, 2147483648
    %v2745 = vxor.u32 %v2741, 2147483648
    %v2746 = vxor.u32 %v2742, 2147483648
    %v2747 = vmul.f32 %v2744, 1.442695
    %v2748 = vpow.pop %v2747
    %v2749 = vmul.f32 %v2745, 1.442695
    %v2750 = vpow.pop %v2749
    %v2751 = vmul.f32 %v2746, 1.442695
    %v2752 = vpow.pop %v2751
    %v2753 = vadd.f32 %v2748, 1.0
    %v2754 = vadd.f32 %v2750, 1.0
    %v2755 = vadd.f32 %v2752, 1.0
    %v2756 = vrcp.pop %v2753
    %v2757 = vmul.f32 1.0, %v2756
    %v2758 = vrcp.pop %v2754
    %v2759 = vmul.f32 1.0, %v2758
    %v2760 = vrcp.pop %v2755
    %v2761 = vmul.f32 1.0, %v2760
    %v2762 = vtanh.pop %v2743
    %v2763 = vmul.f32 %v2759, %v2446
    %v2764 = vmul.f32 %v2757, %v2762
    %v2765 = vadd.f32 %v2763, %v2764
    %v2766 = vtanh.pop %v2765
    %v2767 = vmul.f32 %v2761, %v2766
    %v2768 = vpack.c.bf16 %v2642, %v2642
    %2769 = vmatprep.subr.bf16.mxu0 %v579
    %2770 = vmatpush1.bf16.msra.mxu0 %v578
    %2771 = vmatprep.subr.bf16.mxu0 %v583
    %2772 = vmatpush1.bf16.msra.mxu0 %v582
    %2773 = vmatprep.subr.bf16.mxu0 %v587
    %2774 = vmatpush1.bf16.msra.mxu0 %v586
    %2775 = vmatprep.subr.bf16.mxu0 %v591
    %2776 = vmatpush1.bf16.msra.mxu0 %v590
    %2777 = vmatprep.subr.bf16.mxu0 %v595
    %2778 = vmatpush1.bf16.msra.mxu0 %v594
    %2779 = vmatprep.subr.bf16.mxu0 %v599
    %2780 = vmatpush1.bf16.msra.mxu0 %v598
    %2781 = vmatprep.subr.bf16.mxu0 %v603
    %2782 = vmatpush1.bf16.msra.mxu0 %v602
    %2783 = vmatprep.subr.bf16.mxu0 %v607
    %2784 = vmatpush1.bf16.msra.mxu0 %v606
    %2785 = vmatprep.subr.bf16.mxu0 0
    %2786 = vmatpush1.bf16.msra.mxu0 0
    %2787 = vmatprep.subr.bf16.mxu0 0
    %2788 = vmatpush1.bf16.msra.mxu0 0
    %2789 = vmatprep.subr.bf16.mxu0 0
    %2790 = vmatpush1.bf16.msra.mxu0 0
    %2791 = vmatprep.subr.bf16.mxu0 0
    %2792 = vmatpush1.bf16.msra.mxu0 0
    %2793 = vmatprep.subr.bf16.mxu0 0
    %2794 = vmatpush1.bf16.msra.mxu0 0
    %2795 = vmatprep.subr.bf16.mxu0 0
    %2796 = vmatpush1.bf16.msra.mxu0 0
    %2797 = vmatprep.subr.bf16.mxu0 0
    %2798 = vmatpush1.bf16.msra.mxu0 0
    %2799 = vmatprep.subr.bf16.mxu0 0
    %2800 = vmatpush1.bf16.msra.mxu0 0
    %2801 = vmatprep.mubr.bf16.mxu0 0
    %2802 = vmatmul.mubr.bf16.gmra.mrb[0].mxu0 %v2768
    %v2803 = vpop.f32.mrb[0].mxu0
    %v2804 = vadd.f32 0.0, %v2803
    %v2805 = vpop.f32.mrb[0].mxu0
    %v2806 = vadd.f32 0.0, %v2805
    %v2807 = vpop.f32.mrb[0].mxu0
    %v2808 = vpop.f32.mrb[0].mxu0
    %2809 = vdwg.mxu0
    %2810 = vmatprep.subr.bf16.mxu0 %v581
    %2811 = vmatpush1.bf16.msra.mxu0 %v580
    %2812 = vmatprep.subr.bf16.mxu0 %v585
    %2813 = vmatpush1.bf16.msra.mxu0 %v584
    %2814 = vmatprep.subr.bf16.mxu0 %v589
    %2815 = vmatpush1.bf16.msra.mxu0 %v588
    %2816 = vmatprep.subr.bf16.mxu0 %v593
    %2817 = vmatpush1.bf16.msra.mxu0 %v592
    %2818 = vmatprep.subr.bf16.mxu0 %v597
    %2819 = vmatpush1.bf16.msra.mxu0 %v596
    %2820 = vmatprep.subr.bf16.mxu0 %v601
    %2821 = vmatpush1.bf16.msra.mxu0 %v600
    %2822 = vmatprep.subr.bf16.mxu0 %v605
    %2823 = vmatpush1.bf16.msra.mxu0 %v604
    %2824 = vmatprep.subr.bf16.mxu0 %v609
    %2825 = vmatpush1.bf16.msra.mxu0 %v608
    %2826 = vmatprep.subr.bf16.mxu0 0
    %2827 = vmatpush1.bf16.msra.mxu0 0
    %2828 = vmatprep.subr.bf16.mxu0 0
    %2829 = vmatpush1.bf16.msra.mxu0 0
    %2830 = vmatprep.subr.bf16.mxu0 0
    %2831 = vmatpush1.bf16.msra.mxu0 0
    %2832 = vmatprep.subr.bf16.mxu0 0
    %2833 = vmatpush1.bf16.msra.mxu0 0
    %2834 = vmatprep.subr.bf16.mxu0 0
    %2835 = vmatpush1.bf16.msra.mxu0 0
    %2836 = vmatprep.subr.bf16.mxu0 0
    %2837 = vmatpush1.bf16.msra.mxu0 0
    %2838 = vmatprep.subr.bf16.mxu0 0
    %2839 = vmatpush1.bf16.msra.mxu0 0
    %2840 = vmatprep.subr.bf16.mxu0 0
    %2841 = vmatpush1.bf16.msra.mxu0 0
    %2842 = vmatprep.mubr.bf16.mxu0 0
    %2843 = vmatmul.mubr.bf16.gmra.mrb[0].mxu0 %v2768
    %v2844 = vpop.f32.mrb[0].mxu0
    %v2845 = vadd.f32 0.0, %v2844
    %v2846 = vpop.f32.mrb[0].mxu0
    %v2847 = vadd.f32 0.0, %v2846
    %v2848 = vpop.f32.mrb[0].mxu0
    %v2849 = vpop.f32.mrb[0].mxu0
    %2850 = vdwg.mxu0
    %v2851 = vpack.c.bf16 %v2767, %v2767
    %2852 = vmatprep.subr.bf16.mxu0 %v854
    %2853 = vmatpush1.bf16.msra.mxu0 %v853
    %2854 = vmatprep.subr.bf16.mxu0 %v858
    %2855 = vmatpush1.bf16.msra.mxu0 %v857
    %2856 = vmatprep.subr.bf16.mxu0 %v862
    %2857 = vmatpush1.bf16.msra.mxu0 %v861
    %2858 = vmatprep.subr.bf16.mxu0 %v866
    %2859 = vmatpush1.bf16.msra.mxu0 %v865
    %2860 = vmatprep.subr.bf16.mxu0 %v870
    %2861 = vmatpush1.bf16.msra.mxu0 %v869
    %2862 = vmatprep.subr.bf16.mxu0 %v874
    %2863 = vmatpush1.bf16.msra.mxu0 %v873
    %2864 = vmatprep.subr.bf16.mxu0 %v878
    %2865 = vmatpush1.bf16.msra.mxu0 %v877
    %2866 = vmatprep.subr.bf16.mxu0 %v882
    %2867 = vmatpush1.bf16.msra.mxu0 %v881
    %2868 = vmatprep.subr.bf16.mxu0 0
    %2869 = vmatpush1.bf16.msra.mxu0 0
    %2870 = vmatprep.subr.bf16.mxu0 0
    %2871 = vmatpush1.bf16.msra.mxu0 0
    %2872 = vmatprep.subr.bf16.mxu0 0
    %2873 = vmatpush1.bf16.msra.mxu0 0
    %2874 = vmatprep.subr.bf16.mxu0 0
    %2875 = vmatpush1.bf16.msra.mxu0 0
    %2876 = vmatprep.subr.bf16.mxu0 0
    %2877 = vmatpush1.bf16.msra.mxu0 0
    %2878 = vmatprep.subr.bf16.mxu0 0
    %2879 = vmatpush1.bf16.msra.mxu0 0
    %2880 = vmatprep.subr.bf16.mxu0 0
    %2881 = vmatpush1.bf16.msra.mxu0 0
    %2882 = vmatprep.subr.bf16.mxu0 0
    %2883 = vmatpush1.bf16.msra.mxu0 0
    %2884 = vmatprep.mubr.bf16.mxu0 0
    %2885 = vmatmul.mubr.bf16.gmra.mrb[0].mxu0 %v2851
    %v2886 = vpop.f32.mrb[0].mxu0
    %v2887 = vadd.f32 %v2804, %v2886
    %v2888 = vpop.f32.mrb[0].mxu0
    %v2889 = vadd.f32 %v2806, %v2888
    %v2890 = vpop.f32.mrb[0].mxu0
    %v2891 = vpop.f32.mrb[0].mxu0
    %2892 = vdwg.mxu0
    %2893 = vmatprep.subr.bf16.mxu0 %v856
    %2894 = vmatpush1.bf16.msra.mxu0 %v855
    %2895 = vmatprep.subr.bf16.mxu0 %v860
    %2896 = vmatpush1.bf16.msra.mxu0 %v859
    %2897 = vmatprep.subr.bf16.mxu0 %v864
    %2898 = vmatpush1.bf16.msra.mxu0 %v863
    %2899 = vmatprep.subr.bf16.mxu0 %v868
    %2900 = vmatpush1.bf16.msra.mxu0 %v867
    %2901 = vmatprep.subr.bf16.mxu0 %v872
    %2902 = vmatpush1.bf16.msra.mxu0 %v871
    %2903 = vmatprep.subr.bf16.mxu0 %v876
    %2904 = vmatpush1.bf16.msra.mxu0 %v875
    %2905 = vmatprep.subr.bf16.mxu0 %v880
    %2906 = vmatpush1.bf16.msra.mxu0 %v879
    %2907 = vmatprep.subr.bf16.mxu0 %v884
    %2908 = vmatpush1.bf16.msra.mxu0 %v883
    %2909 = vmatprep.subr.bf16.mxu0 0
    %2910 = vmatpush1.bf16.msra.mxu0 0
    %2911 = vmatprep.subr.bf16.mxu0 0
    %2912 = vmatpush1.bf16.msra.mxu0 0
    %2913 = vmatprep.subr.bf16.mxu0 0
    %2914 = vmatpush1.bf16.msra.mxu0 0
    %2915 = vmatprep.subr.bf16.mxu0 0
    %2916 = vmatpush1.bf16.msra.mxu0 0
    %2917 = vmatprep.subr.bf16.mxu0 0
    %2918 = vmatpush1.bf16.msra.mxu0 0
    %2919 = vmatprep.subr.bf16.mxu0 0
    %2920 = vmatpush1.bf16.msra.mxu0 0
    %2921 = vmatprep.subr.bf16.mxu0 0
    %2922 = vmatpush1.bf16.msra.mxu0 0
    %2923 = vmatprep.subr.bf16.mxu0 0
    %2924 = vmatpush1.bf16.msra.mxu0 0
    %2925 = vmatprep.mubr.bf16.mxu0 0
    %2926 = vmatmul.mubr.bf16.gmra.mrb[0].mxu0 %v2851
    %v2927 = vpop.f32.mrb[0].mxu0
    %v2928 = vadd.f32 %v2845, %v2927
    %v2929 = vpop.f32.mrb[0].mxu0
    %v2930 = vadd.f32 %v2847, %v2929
    %v2931 = vpop.f32.mrb[0].mxu0
    %v2932 = vpop.f32.mrb[0].mxu0
    %2933 = vdwg.mxu0
    %v2934 = vadd.f32 %v2887, %v1003
    %v2935 = vadd.f32 %v2889, %v1007
    %v2936 = vadd.f32 %v2928, %v1011
    %v2937 = vadd.f32 %v2930, %v1015
    %v2938 = vxor.u32 %v2934, 2147483648
    %v2939 = vxor.u32 %v2935, 2147483648
    %v2940 = vxor.u32 %v2936, 2147483648
    %v2941 = vmul.f32 %v2938, 1.442695
    %v2942 = vpow.pop %v2941
    %v2943 = vmul.f32 %v2939, 1.442695
    %v2944 = vpow.pop %v2943
    %v2945 = vmul.f32 %v2940, 1.442695
    %v2946 = vpow.pop %v2945
    %v2947 = vadd.f32 %v2942, 1.0
    %v2948 = vadd.f32 %v2944, 1.0
    %v2949 = vadd.f32 %v2946, 1.0
    %v2950 = vrcp.pop %v2947
    %v2951 = vmul.f32 1.0, %v2950
    %v2952 = vrcp.pop %v2948
    %v2953 = vmul.f32 1.0, %v2952
    %v2954 = vrcp.pop %v2949
    %v2955 = vmul.f32 1.0, %v2954
    %v2956 = vtanh.pop %v2937
    %v2957 = vmul.f32 %v2953, %v2640
    %v2958 = vmul.f32 %v2951, %v2956
    %v2959 = vadd.f32 %v2957, %v2958
    %v2960 = vtanh.pop %v2959
    %v2961 = vmul.f32 %v2955, %v2960
    %s2962 = scalar_lea.vmem %s0, 56
    %v2963 = vld [vmem:[%s2962] sm:$0xff]
    %2964 = vmatprep.subr.bf16.mxu0 %v221
    %2965 = vmatpush1.bf16.msra.mxu0 %v220
    %2966 = vmatprep.subr.bf16.mxu0 %v225
    %2967 = vmatpush1.bf16.msra.mxu0 %v224
    %2968 = vmatprep.subr.bf16.mxu0 %v229
    %2969 = vmatpush1.bf16.msra.mxu0 %v228
    %2970 = vmatprep.subr.bf16.mxu0 %v233
    %2971 = vmatpush1.bf16.msra.mxu0 %v232
    %2972 = vmatprep.subr.bf16.mxu0 %v237
    %2973 = vmatpush1.bf16.msra.mxu0 %v236
    %2974 = vmatprep.subr.bf16.mxu0 %v241
    %2975 = vmatpush1.bf16.msra.mxu0 %v240
    %2976 = vmatprep.subr.bf16.mxu0 %v245
    %2977 = vmatpush1.bf16.msra.mxu0 %v244
    %2978 = vmatprep.subr.bf16.mxu0 %v249
    %2979 = vmatpush1.bf16.msra.mxu0 %v248
    %2980 = vmatprep.subr.bf16.mxu0 0
    %2981 = vmatpush1.bf16.msra.mxu0 0
    %2982 = vmatprep.subr.bf16.mxu0 0
    %2983 = vmatpush1.bf16.msra.mxu0 0
    %2984 = vmatprep.subr.bf16.mxu0 0
    %2985 = vmatpush1.bf16.msra.mxu0 0
    %2986 = vmatprep.subr.bf16.mxu0 0
    %2987 = vmatpush1.bf16.msra.mxu0 0
    %2988 = vmatprep.subr.bf16.mxu0 0
    %2989 = vmatpush1.bf16.msra.mxu0 0
    %2990 = vmatprep.subr.bf16.mxu0 0
    %2991 = vmatpush1.bf16.msra.mxu0 0
    %2992 = vmatprep.subr.bf16.mxu0 0
    %2993 = vmatpush1.bf16.msra.mxu0 0
    %2994 = vmatprep.subr.bf16.mxu0 0
    %2995 = vmatpush1.bf16.msra.mxu0 0
    %2996 = vmatprep.mubr.bf16.mxu0 0
    %2997 = vmatmul.mubr.bf16.gmra.mrb[0].mxu0 %v2851
    %v2998 = vpop.f32.mrb[0].mxu0
    %v2999 = vadd.f32 0.0, %v2998
    %v3000 = vpop.f32.mrb[0].mxu0
    %v3001 = vadd.f32 0.0, %v3000
    %v3002 = vpop.f32.mrb[0].mxu0
    %v3003 = vpop.f32.mrb[0].mxu0
    %3004 = vdwg.mxu0
    %3005 = vmatprep.subr.bf16.mxu0 %v223
    %3006 = vmatpush1.bf16.msra.mxu0 %v222
    %3007 = vmatprep.subr.bf16.mxu0 %v227
    %3008 = vmatpush1.bf16.msra.mxu0 %v226
    %3009 = vmatprep.subr.bf16.mxu0 %v231
    %3010 = vmatpush1.bf16.msra.mxu0 %v230
    %3011 = vmatprep.subr.bf16.mxu0 %v235
    %3012 = vmatpush1.bf16.msra.mxu0 %v234
    %3013 = vmatprep.subr.bf16.mxu0 %v239
    %3014 = vmatpush1.bf16.msra.mxu0 %v238
    %3015 = vmatprep.subr.bf16.mxu0 %v243
    %3016 = vmatpush1.bf16.msra.mxu0 %v242
    %3017 = vmatprep.subr.bf16.mxu0 %v247
    %3018 = vmatpush1.bf16.msra.mxu0 %v246
    %3019 = vmatprep.subr.bf16.mxu0 %v251
    %3020 = vmatpush1.bf16.msra.mxu0 %v250
    %3021 = vmatprep.subr.bf16.mxu0 0
    %3022 = vmatpush1.bf16.msra.mxu0 0
    %3023 = vmatprep.subr.bf16.mxu0 0
    %3024 = vmatpush1.bf16.msra.mxu0 0
    %3025 = vmatprep.subr.bf16.mxu0 0
    %3026 = vmatpush1.bf16.msra.mxu0 0
    %3027 = vmatprep.subr.bf16.mxu0 0
    %3028 = vmatpush1.bf16.msra.mxu0 0
    %3029 = vmatprep.subr.bf16.mxu0 0
    %3030 = vmatpush1.bf16.msra.mxu0 0
    %3031 = vmatprep.subr.bf16.mxu0 0
    %3032 = vmatpush1.bf16.msra.mxu0 0
    %3033 = vmatprep.subr.bf16.mxu0 0
    %3034 = vmatpush1.bf16.msra.mxu0 0
    %3035 = vmatprep.subr.bf16.mxu0 0
    %3036 = vmatpush1.bf16.msra.mxu0 0
    %3037 = vmatprep.mubr.bf16.mxu0 0
    %3038 = vmatmul.mubr.bf16.gmra.mrb[0].mxu0 %v2851
    %v3039 = vpop.f32.mrb[0].mxu0
    %v3040 = vadd.f32 0.0, %v3039
    %v3041 = vpop.f32.mrb[0].mxu0
    %v3042 = vadd.f32 0.0, %v3041
    %v3043 = vpop.f32.mrb[0].mxu0
    %v3044 = vpop.f32.mrb[0].mxu0
    %3045 = vdwg.mxu0
    %3047 = vset.pattern.permute.xlu0 0
    %3048 = vperm.xlu0 %3047, %v2963
    %v3049 = vpop.permute.xlu0 %3048
    %v3051 = vmul.f32 %v3049, %v375
    %v3052 = vmul.f32 %v3049, %v379
    %v3053 = vmul.f32 %v3049, %v383
    %v3054 = vmul.f32 %v3049, %v387
    %v3055 = vadd.f32 %v3051, %v400
    %v3056 = vadd.f32 %v3052, %v404
    %v3057 = vadd.f32 %v3053, %v408
    %v3058 = vadd.f32 %v3054, %v412
    %v3059 = vadd.f32 %v3055, %v2999
    %v3060 = vadd.f32 %v3056, %v3001
    %v3061 = vadd.f32 %v3057, %v3040
    %v3062 = vadd.f32 %v3058, %v3042
    %v3063 = vxor.u32 %v3059, 2147483648
    %v3064 = vxor.u32 %v3060, 2147483648
    %v3065 = vxor.u32 %v3061, 2147483648
    %v3066 = vmul.f32 %v3063, 1.442695
    %v3067 = vpow.pop %v3066
    %v3068 = vmul.f32 %v3064, 1.442695
    %v3069 = vpow.pop %v3068
    %v3070 = vmul.f32 %v3065, 1.442695
    %v3071 = vpow.pop %v3070
    %v3072 = vadd.f32 %v3067, 1.0
    %v3073 = vadd.f32 %v3069, 1.0
    %v3074 = vadd.f32 %v3071, 1.0
    %v3075 = vrcp.pop %v3072
    %v3076 = vmul.f32 1.0, %v3075
    %v3077 = vrcp.pop %v3073
    %v3078 = vmul.f32 1.0, %v3077
    %v3079 = vrcp.pop %v3074
    %v3080 = vmul.f32 1.0, %v3079
    %v3081 = vtanh.pop %v3062
    %v3082 = vmul.f32 %v3078, %v2765
    %v3083 = vmul.f32 %v3076, %v3081
    %v3084 = vadd.f32 %v3082, %v3083
    %v3085 = vtanh.pop %v3084
    %v3086 = vmul.f32 %v3080, %v3085
    %v3087 = vpack.c.bf16 %v2961, %v2961
    %3088 = vmatprep.subr.bf16.mxu0 %v579
    %3089 = vmatpush1.bf16.msra.mxu0 %v578
    %3090 = vmatprep.subr.bf16.mxu0 %v583
    %3091 = vmatpush1.bf16.msra.mxu0 %v582
    %3092 = vmatprep.subr.bf16.mxu0 %v587
    %3093 = vmatpush1.bf16.msra.mxu0 %v586
    %3094 = vmatprep.subr.bf16.mxu0 %v591
    %3095 = vmatpush1.bf16.msra.mxu0 %v590
    %3096 = vmatprep.subr.bf16.mxu0 %v595
    %3097 = vmatpush1.bf16.msra.mxu0 %v594
    %3098 = vmatprep.subr.bf16.mxu0 %v599
    %3099 = vmatpush1.bf16.msra.mxu0 %v598
    %3100 = vmatprep.subr.bf16.mxu0 %v603
    %3101 = vmatpush1.bf16.msra.mxu0 %v602
    %3102 = vmatprep.subr.bf16.mxu0 %v607
    %3103 = vmatpush1.bf16.msra.mxu0 %v606
    %3104 = vmatprep.subr.bf16.mxu0 0
    %3105 = vmatpush1.bf16.msra.mxu0 0
    %3106 = vmatprep.subr.bf16.mxu0 0
    %3107 = vmatpush1.bf16.msra.mxu0 0
    %3108 = vmatprep.subr.bf16.mxu0 0
    %3109 = vmatpush1.bf16.msra.mxu0 0
    %3110 = vmatprep.subr.bf16.mxu0 0
    %3111 = vmatpush1.bf16.msra.mxu0 0
    %3112 = vmatprep.subr.bf16.mxu0 0
    %3113 = vmatpush1.bf16.msra.mxu0 0
    %3114 = vmatprep.subr.bf16.mxu0 0
    %3115 = vmatpush1.bf16.msra.mxu0 0
    %3116 = vmatprep.subr.bf16.mxu0 0
    %3117 = vmatpush1.bf16.msra.mxu0 0
    %3118 = vmatprep.subr.bf16.mxu0 0
    %3119 = vmatpush1.bf16.msra.mxu0 0
    %3120 = vmatprep.mubr.bf16.mxu0 0
    %3121 = vmatmul.mubr.bf16.gmra.mrb[0].mxu0 %v3087
    %v3122 = vpop.f32.mrb[0].mxu0
    %v3123 = vadd.f32 0.0, %v3122
    %v3124 = vpop.f32.mrb[0].mxu0
    %v3125 = vadd.f32 0.0, %v3124
    %v3126 = vpop.f32.mrb[0].mxu0
    %v3127 = vpop.f32.mrb[0].mxu0
    %3128 = vdwg.mxu0
    %3129 = vmatprep.subr.bf16.mxu0 %v581
    %3130 = vmatpush1.bf16.msra.mxu0 %v580
    %3131 = vmatprep.subr.bf16.mxu0 %v585
    %3132 = vmatpush1.bf16.msra.mxu0 %v584
    %3133 = vmatprep.subr.bf16.mxu0 %v589
    %3134 = vmatpush1.bf16.msra.mxu0 %v588
    %3135 = vmatprep.subr.bf16.mxu0 %v593
    %3136 = vmatpush1.bf16.msra.mxu0 %v592
    %3137 = vmatprep.subr.bf16.mxu0 %v597
    %3138 = vmatpush1.bf16.msra.mxu0 %v596
    %3139 = vmatprep.subr.bf16.mxu0 %v601
    %3140 = vmatpush1.bf16.msra.mxu0 %v600
    %3141 = vmatprep.subr.bf16.mxu0 %v605
    %3142 = vmatpush1.bf16.msra.mxu0 %v604
    %3143 = vmatprep.subr.bf16.mxu0 %v609
    %3144 = vmatpush1.bf16.msra.mxu0 %v608
    %3145 = vmatprep.subr.bf16.mxu0 0
    %3146 = vmatpush1.bf16.msra.mxu0 0
    %3147 = vmatprep.subr.bf16.mxu0 0
    %3148 = vmatpush1.bf16.msra.mxu0 0
    %3149 = vmatprep.subr.bf16.mxu0 0
    %3150 = vmatpush1.bf16.msra.mxu0 0
    %3151 = vmatprep.subr.bf16.mxu0 0
    %3152 = vmatpush1.bf16.msra.mxu0 0
    %3153 = vmatprep.subr.bf16.mxu0 0
    %3154 = vmatpush1.bf16.msra.mxu0 0
    %3155 = vmatprep.subr.bf16.mxu0 0
    %3156 = vmatpush1.bf16.msra.mxu0 0
    %3157 = vmatprep.subr.bf16.mxu0 0
    %3158 = vmatpush1.bf16.msra.mxu0 0
    %3159 = vmatprep.subr.bf16.mxu0 0
    %3160 = vmatpush1.bf16.msra.mxu0 0
    %3161 = vmatprep.mubr.bf16.mxu0 0
    %3162 = vmatmul.mubr.bf16.gmra.mrb[0].mxu0 %v3087
    %v3163 = vpop.f32.mrb[0].mxu0
    %v3164 = vadd.f32 0.0, %v3163
    %v3165 = vpop.f32.mrb[0].mxu0
    %v3166 = vadd.f32 0.0, %v3165
    %v3167 = vpop.f32.mrb[0].mxu0
    %v3168 = vpop.f32.mrb[0].mxu0
    %3169 = vdwg.mxu0
    %v3170 = vpack.c.bf16 %v3086, %v3086
    %3171 = vmatprep.subr.bf16.mxu0 %v854
    %3172 = vmatpush1.bf16.msra.mxu0 %v853
    %3173 = vmatprep.subr.bf16.mxu0 %v858
    %3174 = vmatpush1.bf16.msra.mxu0 %v857
    %3175 = vmatprep.subr.bf16.mxu0 %v862
    %3176 = vmatpush1.bf16.msra.mxu0 %v861
    %3177 = vmatprep.subr.bf16.mxu0 %v866
    %3178 = vmatpush1.bf16.msra.mxu0 %v865
    %3179 = vmatprep.subr.bf16.mxu0 %v870
    %3180 = vmatpush1.bf16.msra.mxu0 %v869
    %3181 = vmatprep.subr.bf16.mxu0 %v874
    %3182 = vmatpush1.bf16.msra.mxu0 %v873
    %3183 = vmatprep.subr.bf16.mxu0 %v878
    %3184 = vmatpush1.bf16.msra.mxu0 %v877
    %3185 = vmatprep.subr.bf16.mxu0 %v882
    %3186 = vmatpush1.bf16.msra.mxu0 %v881
    %3187 = vmatprep.subr.bf16.mxu0 0
    %3188 = vmatpush1.bf16.msra.mxu0 0
    %3189 = vmatprep.subr.bf16.mxu0 0
    %3190 = vmatpush1.bf16.msra.mxu0 0
    %3191 = vmatprep.subr.bf16.mxu0 0
    %3192 = vmatpush1.bf16.msra.mxu0 0
    %3193 = vmatprep.subr.bf16.mxu0 0
    %3194 = vmatpush1.bf16.msra.mxu0 0
    %3195 = vmatprep.subr.bf16.mxu0 0
    %3196 = vmatpush1.bf16.msra.mxu0 0
    %3197 = vmatprep.subr.bf16.mxu0 0
    %3198 = vmatpush1.bf16.msra.mxu0 0
    %3199 = vmatprep.subr.bf16.mxu0 0
    %3200 = vmatpush1.bf16.msra.mxu0 0
    %3201 = vmatprep.subr.bf16.mxu0 0
    %3202 = vmatpush1.bf16.msra.mxu0 0
    %3203 = vmatprep.mubr.bf16.mxu0 0
    %3204 = vmatmul.mubr.bf16.gmra.mrb[0].mxu0 %v3170
    %v3205 = vpop.f32.mrb[0].mxu0
    %v3206 = vadd.f32 %v3123, %v3205
    %v3207 = vpop.f32.mrb[0].mxu0
    %v3208 = vadd.f32 %v3125, %v3207
    %v3209 = vpop.f32.mrb[0].mxu0
    %v3210 = vpop.f32.mrb[0].mxu0
    %3211 = vdwg.mxu0
    %3212 = vmatprep.subr.bf16.mxu0 %v856
    %3213 = vmatpush1.bf16.msra.mxu0 %v855
    %3214 = vmatprep.subr.bf16.mxu0 %v860
    %3215 = vmatpush1.bf16.msra.mxu0 %v859
    %3216 = vmatprep.subr.bf16.mxu0 %v864
    %3217 = vmatpush1.bf16.msra.mxu0 %v863
    %3218 = vmatprep.subr.bf16.mxu0 %v868
    %3219 = vmatpush1.bf16.msra.mxu0 %v867
    %3220 = vmatprep.subr.bf16.mxu0 %v872
    %3221 = vmatpush1.bf16.msra.mxu0 %v871
    %3222 = vmatprep.subr.bf16.mxu0 %v876
    %3223 = vmatpush1.bf16.msra.mxu0 %v875
    %3224 = vmatprep.subr.bf16.mxu0 %v880
    %3225 = vmatpush1.bf16.msra.mxu0 %v879
    %3226 = vmatprep.subr.bf16.mxu0 %v884
    %3227 = vmatpush1.bf16.msra.mxu0 %v883
    %3228 = vmatprep.subr.bf16.mxu0 0
    %3229 = vmatpush1.bf16.msra.mxu0 0
    %3230 = vmatprep.subr.bf16.mxu0 0
    %3231 = vmatpush1.bf16.msra.mxu0 0
    %3232 = vmatprep.subr.bf16.mxu0 0
    %3233 = vmatpush1.bf16.msra.mxu0 0
    %3234 = vmatprep.subr.bf16.mxu0 0
    %3235 = vmatpush1.bf16.msra.mxu0 0
    %3236 = vmatprep.subr.bf16.mxu0 0
    %3237 = vmatpush1.bf16.msra.mxu0 0
    %3238 = vmatprep.subr.bf16.mxu0 0
    %3239 = vmatpush1.bf16.msra.mxu0 0
    %3240 = vmatprep.subr.bf16.mxu0 0
    %3241 = vmatpush1.bf16.msra.mxu0 0
    %3242 = vmatprep.subr.bf16.mxu0 0
    %3243 = vmatpush1.bf16.msra.mxu0 0
    %3244 = vmatprep.mubr.bf16.mxu0 0
    %3245 = vmatmul.mubr.bf16.gmra.mrb[0].mxu0 %v3170
    %v3246 = vpop.f32.mrb[0].mxu0
    %v3247 = vadd.f32 %v3164, %v3246
    %v3248 = vpop.f32.mrb[0].mxu0
    %v3249 = vadd.f32 %v3166, %v3248
    %v3250 = vpop.f32.mrb[0].mxu0
    %v3251 = vpop.f32.mrb[0].mxu0
    %3252 = vdwg.mxu0
    %v3253 = vadd.f32 %v3206, %v1003
    %v3254 = vadd.f32 %v3208, %v1007
    %v3255 = vadd.f32 %v3247, %v1011
    %v3256 = vadd.f32 %v3249, %v1015
    %v3257 = vxor.u32 %v3253, 2147483648
    %v3258 = vxor.u32 %v3254, 2147483648
    %v3259 = vxor.u32 %v3255, 2147483648
    %v3260 = vmul.f32 %v3257, 1.442695
    %v3261 = vpow.pop %v3260
    %v3262 = vmul.f32 %v3258, 1.442695
    %v3263 = vpow.pop %v3262
    %v3264 = vmul.f32 %v3259, 1.442695
    %v3265 = vpow.pop %v3264
    %v3266 = vadd.f32 %v3261, 1.0
    %v3267 = vadd.f32 %v3263, 1.0
    %v3268 = vadd.f32 %v3265, 1.0
    %v3269 = vrcp.pop %v3266
    %v3270 = vmul.f32 1.0, %v3269
    %v3271 = vrcp.pop %v3267
    %v3272 = vmul.f32 1.0, %v3271
    %v3273 = vrcp.pop %v3268
    %v3274 = vmul.f32 1.0, %v3273
    %v3275 = vtanh.pop %v3256
    %v3276 = vmul.f32 %v3272, %v2959
    %v3277 = vmul.f32 %v3270, %v3275
    %v3278 = vadd.f32 %v3276, %v3277
    %v3279 = vtanh.pop %v3278
    %v3280 = vmul.f32 %v3274, %v3279
    %3281 = vst [vmem:[#allocation2] sm:$0xff] %v3086
    %3282 = vst [vmem:[#allocation3] sm:$0xff] %v3084
    %3283 = vst [vmem:[#allocation4] sm:$0xff] %v3280
    %3284 = vst [vmem:[#allocation5] sm:$0xff] %v3278
    // Predicated region
    $region54: #{tpu_custom_call.1} parent=1 // pred_check
      %p3285 = pneg %p75
    $region55: #{tpu_custom_call.1} parent=1 // pred_check_branch
      %3287 = sbr.rel (%p3285) target = $region57
    $region56: #{tpu_custom_call.1} parent=1 // pred_region
      %v3288 = vpack.c.bf16 %v3280, %v3280
      %v3289 = vld [vmem:[%s7] sm:$0xf]
      %v3290 = vld [vmem:[%s7 + $0x4] sm:$0xf]
      %v3291 = vld [vmem:[%s7 + $0x8] sm:$0xf]
      %v3292 = vld [vmem:[%s7 + $0xc] sm:$0xf]
      %v3293 = vld [vmem:[%s7 + $0x10] sm:$0xf]
      %v3294 = vld [vmem:[%s7 + $0x14] sm:$0xf]
      %v3295 = vld [vmem:[%s7 + $0x18] sm:$0xf]
      %v3296 = vld [vmem:[%s7 + $0x1c] sm:$0xf]
      %v3297 = vld [vmem:[%s7 + $0x20] sm:$0xf]
      %v3298 = vld [vmem:[%s7 + $0x24] sm:$0xf]
      %v3299 = vld [vmem:[%s7 + $0x28] sm:$0xf]
      %v3300 = vld [vmem:[%s7 + $0x2c] sm:$0xf]
      %v3301 = vld [vmem:[%s7 + $0x30] sm:$0xf]
      %v3302 = vld [vmem:[%s7 + $0x34] sm:$0xf]
      %v3303 = vld [vmem:[%s7 + $0x38] sm:$0xf]
      %v3304 = vld [vmem:[%s7 + $0x3c] sm:$0xf]
      %v3305 = vld [vmem:[%s8] sm:$0x1]
      %v3307 = vlaneseq
      %v3308 = vshrl.u32 %v3307, 7
      %v3309 = vsub.s32 0, %v3308
      %v3310 = vrot.slane %v3305, %v3309
      %v3328 = vunpack.c.l.b16 %v3289
      %v3329 = vunpack.c.l.b16 %v3290
      %v3330 = vunpack.c.l.b16 %v3291
      %v3331 = vunpack.c.l.b16 %v3292
      %v3332 = vunpack.c.l.b16 %v3293
      %v3333 = vunpack.c.l.b16 %v3294
      %v3334 = vunpack.c.l.b16 %v3295
      %v3335 = vunpack.c.l.b16 %v3296
      %v3336 = vunpack.c.l.b16 %v3297
      %v3337 = vunpack.c.l.b16 %v3298
      %v3338 = vunpack.c.l.b16 %v3299
      %v3339 = vunpack.c.l.b16 %v3300
      %v3340 = vunpack.c.l.b16 %v3301
      %v3341 = vunpack.c.l.b16 %v3302
      %v3342 = vunpack.c.l.b16 %v3303
      %v3343 = vunpack.c.l.b16 %v3304
      %v3344 = vpack.c.b16 %v3329, %v3328
      %v3345 = vpack.c.b16 %v3331, %v3330
      %v3346 = vpack.c.b16 %v3333, %v3332
      %v3347 = vpack.c.b16 %v3335, %v3334
      %v3348 = vpack.c.b16 %v3337, %v3336
      %v3349 = vpack.c.b16 %v3339, %v3338
      %v3350 = vpack.c.b16 %v3341, %v3340
      %v3351 = vpack.c.b16 %v3343, %v3342
      %3360 = vmatprep.subr.bf16.mxu0 0
      %3361 = vmatpush1.bf16.msra.mxu0 %v3344
      %3362 = vmatprep.subr.bf16.mxu0 0
      %3363 = vmatpush1.bf16.msra.mxu0 %v3345
      %3364 = vmatprep.subr.bf16.mxu0 0
      %3365 = vmatpush1.bf16.msra.mxu0 %v3346
      %3366 = vmatprep.subr.bf16.mxu0 0
      %3367 = vmatpush1.bf16.msra.mxu0 %v3347
      %3368 = vmatprep.subr.bf16.mxu0 0
      %3369 = vmatpush1.bf16.msra.mxu0 %v3348
      %3370 = vmatprep.subr.bf16.mxu0 0
      %3371 = vmatpush1.bf16.msra.mxu0 %v3349
      %3372 = vmatprep.subr.bf16.mxu0 0
      %3373 = vmatpush1.bf16.msra.mxu0 %v3350
      %3374 = vmatprep.subr.bf16.mxu0 0
      %3375 = vmatpush1.bf16.msra.mxu0 %v3351
      %3376 = vmatprep.subr.bf16.mxu0 0
      %3377 = vmatpush1.bf16.msra.mxu0 0
      %3378 = vmatprep.subr.bf16.mxu0 0
      %3379 = vmatpush1.bf16.msra.mxu0 0
      %3380 = vmatprep.subr.bf16.mxu0 0
      %3381 = vmatpush1.bf16.msra.mxu0 0
      %3382 = vmatprep.subr.bf16.mxu0 0
      %3383 = vmatpush1.bf16.msra.mxu0 0
      %3384 = vmatprep.subr.bf16.mxu0 0
      %3385 = vmatpush1.bf16.msra.mxu0 0
      %3386 = vmatprep.subr.bf16.mxu0 0
      %3387 = vmatpush1.bf16.msra.mxu0 0
      %3388 = vmatprep.subr.bf16.mxu0 0
      %3389 = vmatpush1.bf16.msra.mxu0 0
      %3390 = vmatprep.subr.bf16.mxu0 0
      %3391 = vmatpush1.bf16.msra.mxu0 0
      %3392 = vmatprep.mubr.bf16.mxu0 0
      %3393 = vmatmul.mubr.bf16.gmra.mrb[0].mxu0 %v3288
      %v3394 = vpop.f32.mrb[0].mxu0
      %v3395 = vadd.f32 %v3310, %v3394
      %v3396 = vpop.f32.mrb[0].mxu0
      %v3397 = vpop.f32.mrb[0].mxu0
      %v3398 = vpop.f32.mrb[0].mxu0
      %3399 = vdwg.mxu0
      %3400 = vst [vmem:[#allocation12] sm:$0xff] %v3395
    $region57: #{tpu_custom_call.1} parent=1 // pred_fallthru
      _
    // Predicated region
    $region58: #{tpu_custom_call.1} parent=1 // pred_check
      _
    $region59: #{tpu_custom_call.1} parent=1 // pred_check_branch
      %3402 = sbr.rel (0) target = $region61
    $region60: #{tpu_custom_call.1} parent=1 // pred_region
      %s3404 = ssub.s32 128, 128
      %3405 = vsyncadd [#allocation8], %s3404
      %s3407 = sshll.u32 [#allocation12], 4
      %s3408 = int_to_ptr.vmem [resolvable:$true] %s3407
      %3410 = dma.vmem_to_hbm [thread:$0]  %s3408, 128, %s9, [#allocation8]
    $region61: #{tpu_custom_call.1} parent=1 // pred_fallthru
      _
    // Predicated region
    $region62: #{tpu_custom_call.1} parent=1 // pred_check
      _
    $region63: #{tpu_custom_call.1} parent=1 // pred_check_branch
      %3412 = sbr.rel (0) target = $region65
    $region64: #{tpu_custom_call.1} parent=1 // pred_region
      %3413 = dma.done [#allocation8], 128
    $region65: #{tpu_custom_call.1} parent=1 // pred_fallthru
      _
    %3414 = vsyncpa [#allocation7], 1
    %3415 = vsyncpa [#allocation10], 1
    %3416 = vsyncpa [#allocation8], 1

</llo_original>
